<compile_context>
chip_gen: v6e
topology: v6e:2x2x1
jax: 0.10.0
libtpu: 0.0.40
codegen_flags: <defaults>
</compile_context>

<pallas_src>
import functools

import jax
import jax.numpy as jnp
from jax.experimental import pallas as pl
from jax.experimental.pallas import tpu as pltpu


_PAD_TAGS = 128       # padded tag width per head (lane-dense classifier output)
_NEG = -1e30          # bias for padding columns -> never win softmax / argmax


# ---------------------------------------------------------------------------
# Param fusion helpers — run ONCE at param-build time (outside the per-call
# traced forward).  Gate order within a direction is PyTorch's i, f, g, o.
# Column layout of every fused (..., 8H) tensor: [fwd i f g o | bwd i f g o].
# ---------------------------------------------------------------------------
def fuse_bilstm_params(wih, whh, b, compute_dtype=jnp.bfloat16):
    """(2,4,D,H),(2,4,H,H),(2,4,1,H) ->
       wih_f (D, 8H) bf16, whh_f (2H, 8H) f32 block-diagonal, b_f (1, 8H) f32."""
    D, H = wih.shape[2], wih.shape[3]
    wih_f = jnp.transpose(wih, (2, 0, 1, 3)).reshape(D, 8 * H).astype(compute_dtype)
    whh_f = jnp.zeros((2 * H, 8 * H), jnp.float32)
    for d in range(2):
        blk = jnp.transpose(whh[d], (1, 0, 2)).reshape(H, 4 * H)      # (H, 4H)
        whh_f = whh_f.at[d * H:(d + 1) * H, d * 4 * H:(d + 1) * 4 * H].set(blk)
    b_f = jnp.transpose(b, (2, 0, 1, 3)).reshape(1, 8 * H).astype(jnp.float32)
    return wih_f, whh_f, b_f


def fuse_classifier_params(W_upos, b_upos, W_xpos, b_xpos,
                           compute_dtype=jnp.bfloat16):
    """Both heads padded to 128 lanes and concatenated -> (Dh, 256), (1, 256)."""
    def pad(W, b):
        n = W.shape[1]
        assert n <= _PAD_TAGS
        Wp = jnp.pad(W, ((0, 0), (0, _PAD_TAGS - n)))
        bp = jnp.pad(b, ((0, 0), (0, _PAD_TAGS - n)), constant_values=_NEG)
        return Wp, bp
    Wu, bu = pad(W_upos, b_upos)
    Wx, bx = pad(W_xpos, b_xpos)
    W_f = jnp.concatenate([Wu, Wx], axis=1).astype(compute_dtype)      # (Dh, 256)
    b_f = jnp.concatenate([bu, bx], axis=1).astype(jnp.float32)        # (1, 256)
    return W_f, b_f


# ---------------------------------------------------------------------------
# Pallas kernel 1: fused bidirectional single-layer LSTM, whole sequence in
# VMEM, static in-kernel time loop (grid=(1,)), ONE MXU push per step.
# ---------------------------------------------------------------------------
def _bilstm_kernel(x_ref, wih_ref, whh_ref, b_ref, out_ref, hfin_ref, zin_sc, *, T):
    TB, _ = x_ref.shape                 # TB = T * B (rows in (t, b) order)
    B = TB // T
    H8 = wih_ref.shape[1]
    H = H8 // 8
    H4 = 4 * H
    f32 = jnp.float32

    # ---- hoisted, non-recurrent input projection -----------------------------
    # One (T*B, D) x (D, 8H) bf16 matmul over the full sequence; bias folded
    # in once here.  Result stays in a lane-dense (TB, 8H) VMEM scratch.
    x = x_ref[...].astype(wih_ref.dtype)
    zin_sc[...] = (jnp.dot(x, wih_ref[...], preferred_element_type=f32)
                   + b_ref[...])

    whh = whh_ref[...]                  # (2H, 8H) block-diagonal over directions

    h_f = jnp.zeros((B, H), f32)
    c_f = jnp.zeros((B, H), f32)
    h_b = jnp.zeros((B, H), f32)
    c_b = jnp.zeros((B, H), f32)
    hs_f, hs_b = [], []

    # ---- serial recurrence: fwd and bwd fused in one static time loop --------
    # Forward walks t = 0..T-1, backward walks T-1..0 (index only, no reverse).
    for t in range(T):
        tf, tb = t, T - 1 - t
        h_cat = jnp.concatenate([h_f, h_b], axis=1)                    # (B, 2H)
        zr = jnp.dot(h_cat, whh, preferred_element_type=f32)           # (B, 8H)
        z_f = zin_sc[tf * B:(tf + 1) * B, 0:H4] + zr[:, 0:H4]
        z_b = zin_sc[tb * B:(tb + 1) * B, H4:2 * H4] + zr[:, H4:2 * H4]
        s_f = jax.nn.sigmoid(z_f)                                      # (B, 4H)
        s_b = jax.nn.sigmoid(z_b)
        g_f = jnp.tanh(z_f[:, 2 * H:3 * H])
        g_b = jnp.tanh(z_b[:, 2 * H:3 * H])
        # gate peeling via static lane slices (i, f, g, o)
        c_f = s_f[:, H:2 * H] * c_f + s_f[:, 0:H] * g_f
        c_b = s_b[:, H:2 * H] * c_b + s_b[:, 0:H] * g_b
        h_f = s_f[:, 3 * H:4 * H] * jnp.tanh(c_f)
        h_b = s_b[:, 3 * H:4 * H] * jnp.tanh(c_b)
        hs_f.append(h_f)
        hs_b.append(h_b)

    # ---- bulk lane/sublane-dense stores (no per-step masked vst) -------------
    out_f = jnp.concatenate(hs_f, axis=0)            # (TB, H) in time order
    out_b = jnp.concatenate(hs_b[::-1], axis=0)      # (TB, H) back to time order
    out_ref[...] = jnp.concatenate([out_f, out_b], axis=1)             # (TB, 2H)
    # final hidden states of both directions (== torch h_n, concatenated)
    hfin_ref[...] = jnp.concatenate([h_f, h_b], axis=1)                # (B, 2H)


def bilstm(x, T, wih_f, whh_f, b_f):
    """Fused bidirectional single-layer LSTM.

    x:     (T*B, D) float32, rows in (t, b) order (time-major, flattened).
    wih_f: (D, 8H)  bf16 fused input weights  [fwd i f g o | bwd i f g o].
    whh_f: (2H, 8H) f32 block-diagonal fused recurrent weights.
    b_f:   (1, 8H)  f32 fused combined bias (b_ih + b_hh).

    Returns:
      out:  (T*B, 2H) concatenated [fwd ; bwd] hidden states, same row order.
      hfin: (B, 2H)   final hidden state of each direction (torch h_n layout).
    """
    TB, D = x.shape
    B = TB // T
    H = whh_f.shape[0] // 2
    kernel = functools.partial(_bilstm_kernel, T=T)
    return pl.pallas_call(
        kernel,
        out_shape=(
            jax.ShapeDtypeStruct((TB, 2 * H), jnp.float32),
            jax.ShapeDtypeStruct((B, 2 * H), jnp.float32),
        ),
        grid=(1,),
        in_specs=[
            pl.BlockSpec((TB, D), lambda i: (0, 0)),
            pl.BlockSpec((D, 8 * H), lambda i: (0, 0)),
            pl.BlockSpec((2 * H, 8 * H), lambda i: (0, 0)),
            pl.BlockSpec((1, 8 * H), lambda i: (0, 0)),
        ],
        out_specs=(
            pl.BlockSpec((TB, 2 * H), lambda i: (0, 0)),
            pl.BlockSpec((B, 2 * H), lambda i: (0, 0)),
        ),
        scratch_shapes=[pltpu.VMEM((TB, 8 * H), jnp.float32)],
        compiler_params=pltpu.CompilerParams(
            dimension_semantics=("arbitrary",)),
    )(x, wih_f, whh_f, b_f)


# ---------------------------------------------------------------------------
# Pallas kernel 2: both ClassifyLayers fused — one (Dh, 256) matmul, two
# lane-aligned log-softmax reductions, lane-dense (N, 128) stores per head.
# ---------------------------------------------------------------------------
def _classify_kernel(x_ref, w_ref, b_ref, out_ref):
    x = x_ref[...].astype(w_ref.dtype)                                 # (N, Dh)
    logits = (jnp.dot(x, w_ref[...], preferred_element_type=jnp.float32)
              + b_ref[...])                                            # (N, 256)
    for head in range(2):                                              # upos, xpos
        z = logits[:, head * _PAD_TAGS:(head + 1) * _PAD_TAGS]
        m = jnp.max(z, axis=-1, keepdims=True)
        zz = z - m
        lse = jnp.log(jnp.sum(jnp.exp(zz), axis=-1, keepdims=True))
        out_ref[head] = zz - lse


def classify_fused(x, W_f, b_f):
    """x: (N, Dh); W_f (Dh, 256) bf16; b_f (1, 256) f32 (padding cols ~ -inf).

    Returns log-probs, shape (2, N, 128); columns >= n_tags are ~-inf."""
    N, Dh = x.shape
    P = _PAD_TAGS
    return pl.pallas_call(
        _classify_kernel,
        out_shape=jax.ShapeDtypeStruct((2, N, P), jnp.float32),
        grid=(1,),
        in_specs=[
            pl.BlockSpec((N, Dh), lambda i: (0, 0)),
            pl.BlockSpec((Dh, 2 * P), lambda i: (0, 0)),
            pl.BlockSpec((1, 2 * P), lambda i: (0, 0)),
        ],
        out_specs=pl.BlockSpec((2, N, P), lambda i: (0, 0, 0)),
    )(x, W_f, b_f)


# ---------------------------------------------------------------------------
# Model wrapper (eval mode: dropout and the training-only L2 term are no-ops).
# ---------------------------------------------------------------------------
def model_forward(params, word_inp, chars_inp, y_upos, y_xpos, *, n_upos, n_xpos):
    B, T = word_inp.shape
    L = chars_inp.shape[1]

    # --- embeddings, gathered directly in time-major (t, b) token order so no
    #     large activation transposes are needed (only tiny int index arrays).
    tok_ids_tb = word_inp.T.reshape(-1)                                   # (T*B,)
    word_emb = jnp.take(params["word_table"], tok_ids_tb, axis=0)         # (T*B, wd)

    chars_tb = chars_inp.reshape(B, T, L).transpose(1, 0, 2).reshape(T * B, L)
    char_x = jnp.take(params["char_table"], chars_tb.T.reshape(-1), axis=0)  # (L*T*B, cd)

    # char BiLSTM: only the FINAL hidden states of both directions are used
    # (torch h_n).
    # TODO(synk): pack_padded_sequence / chars_real_indices reorder not
    # reproduced (fixed char length, identity reorder assumed).
    _, chars_h = bilstm(char_x, L, params["char_wih_f"], params["char_whh_f"],
                        params["char_b_f"])                                # (T*B, 4*cd)

    emb = jnp.concatenate([word_emb, chars_h], axis=-1)                    # (T*B, wd+4cd)
    # F.dropout(emb, p, training=False) is identity in eval mode.

    # encoder BiLSTM over sentences (batch B, length T)
    enc_out, _ = bilstm(emb, T, params["enc_wih_f"], params["enc_whh_f"],
                        params["enc_b_f"])                                 # (T*B, 2*hid)

    # fused upos/xpos classifiers (weights pre-padded/pre-stacked at init)
    logp = classify_fused(enc_out, params["cls_W_f"], params["cls_b_f"])   # (2, T*B, 128)

    y_u = y_upos.T.reshape(-1)                                             # (t, b) order
    y_x = y_xpos.T.reshape(-1)

    preds_u = jnp.argmax(logp[0, :, :n_upos], axis=-1).reshape(T, B).T     # (B, T)
    preds_x = jnp.argmax(logp[1, :, :n_xpos], axis=-1).reshape(T, B).T

    # TODO(synk): ClassifyLayer source not provided; assuming mean-NLL over tokens
    # (no padding mask / ignore_index).
    nll_u = -jnp.mean(jnp.take_along_axis(logp[0], y_u[:, None], axis=-1))
    nll_x = -jnp.mean(jnp.take_along_axis(logp[1], y_x[:, None], axis=-1))
    loss = nll_u + nll_x
    return (preds_u, preds_x), loss


# ---------------------------------------------------------------------------
# Deterministic parameter init + example run.
# ---------------------------------------------------------------------------
def _lstm_params(key, d_in, d_hid):
    k1, k2, k3 = jax.random.split(key, 3)
    wih = jax.random.normal(k1, (2, 4, d_in, d_hid), jnp.float32) * 0.1   # (dir, gate, D, H)
    whh = jax.random.normal(k2, (2, 4, d_hid, d_hid), jnp.float32) * 0.1
    b = jax.random.normal(k3, (2, 4, 1, d_hid), jnp.float32) * 0.1        # b_ih + b_hh combined
    return wih, whh, b


if __name__ == "__main__":
    # small shapes consistent with the module
    B, T, L = 2, 8, 6
    word_vocab, word_dim = 50, 16
    char_vocab, char_dim = 30, 8
    char_hid = 2 * char_dim                 # nn.LSTM(char_dim, char_dim * 2, bidirectional)
    hidden_dim = 32                         # opt.hidden_dim, depth = 1
    enc_in = word_dim + 4 * char_dim        # no elmo, no cluster
    n_upos, n_xpos = 8, 12

    key = jax.random.PRNGKey(0)
    ks = jax.random.split(key, 12)

    char_wih, char_whh, char_b = _lstm_params(ks[2], char_dim, char_hid)
    enc_wih, enc_whh, enc_b = _lstm_params(ks[4], enc_in, hidden_dim)

    # one-time gate/direction fusion of the LSTM weights (outside the forward)
    char_wih_f, char_whh_f, char_b_f = fuse_bilstm_params(char_wih, char_whh, char_b)
    enc_wih_f, enc_whh_f, enc_b_f = fuse_bilstm_params(enc_wih, enc_whh, enc_b)

    W_upos = jax.random.normal(ks[6], (2 * hidden_dim, n_upos), jnp.float32) * 0.1
    b_upos = jax.random.normal(ks[7], (1, n_upos), jnp.float32) * 0.1
    W_xpos = jax.random.normal(ks[8], (2 * hidden_dim, n_xpos), jnp.float32) * 0.1
    b_xpos = jax.random.normal(ks[9], (1, n_xpos), jnp.float32) * 0.1
    cls_W_f, cls_b_f = fuse_classifier_params(W_upos, b_upos, W_xpos, b_xpos)

    params = {
        "word_table": jax.random.normal(ks[0], (word_vocab, word_dim), jnp.float32) * 0.1,
        "char_table": jax.random.normal(ks[1], (char_vocab, char_dim), jnp.float32) * 0.1,
        "char_wih_f": char_wih_f, "char_whh_f": char_whh_f, "char_b_f": char_b_f,
        "enc_wih_f": enc_wih_f, "enc_whh_f": enc_whh_f, "enc_b_f": enc_b_f,
        "cls_W_f": cls_W_f, "cls_b_f": cls_b_f,
    }

    word_inp = jax.random.randint(ks[10], (B, T), 0, word_vocab, jnp.int32)
    chars_inp = jax.random.randint(ks[11], (B * T, L), 0, char_vocab, jnp.int32)
    y_upos = jax.random.randint(jax.random.PRNGKey(1), (B, T), 0, n_upos, jnp.int32)
    y_xpos = jax.random.randint(jax.random.PRNGKey(2), (B, T), 0, n_xpos, jnp.int32)

    fwd = jax.jit(functools.partial(model_forward, n_upos=n_upos, n_xpos=n_xpos))
    (out_upos, out_xpos), loss = fwd(params, word_inp, chars_inp, y_upos, y_xpos)
    jax.block_until_ready((out_upos, out_xpos, loss))

    assert out_upos.shape == (B, T) and out_xpos.shape == (B, T)
    assert loss.shape == () and bool(jnp.isfinite(loss))
    print("KERNEL_OK")
</pallas_src>

<mosaic_0001>
module attributes {stable_mosaic.version = 11 : i64} {
  func.func @_bilstm_kernel(%arg0: i32, %arg1: memref<96x8xf32, #tpu.memory_space<vmem>>, %arg2: memref<8x128xbf16, #tpu.memory_space<vmem>>, %arg3: memref<32x128xf32, #tpu.memory_space<vmem>>, %arg4: memref<1x128xf32, #tpu.memory_space<vmem>>, %arg5: memref<96x32xf32, #tpu.memory_space<vmem>>, %arg6: memref<16x32xf32, #tpu.memory_space<vmem>>, %arg7: memref<96x128xf32, #tpu.memory_space<vmem>>) attributes {dimension_semantics = [#tpu.dimension_semantics<arbitrary>], iteration_bounds = array<i64: 1>, scalar_prefetch = 0 : i64, scratch_operands = 1 : i64, tpu.core_type = #tpu.core_type<tc>, window_params = [{pipeline_mode = #tpu.pipeline_mode<synchronous>, transform_indices = @transform_0, window_bounds = array<i64: 96, 8>}, {pipeline_mode = #tpu.pipeline_mode<synchronous>, transform_indices = @transform_1, window_bounds = array<i64: 8, 128>}, {pipeline_mode = #tpu.pipeline_mode<synchronous>, transform_indices = @transform_2, window_bounds = array<i64: 32, 128>}, {pipeline_mode = #tpu.pipeline_mode<synchronous>, transform_indices = @transform_3, window_bounds = array<i64: 1, 128>}, {pipeline_mode = #tpu.pipeline_mode<synchronous>, transform_indices = @transform_4, window_bounds = array<i64: 96, 32>}, {pipeline_mode = #tpu.pipeline_mode<synchronous>, transform_indices = @transform_5, window_bounds = array<i64: 16, 32>}]} {
    %c0 = arith.constant 0 : index
    %c0_0 = arith.constant 0 : index
    %0 = vector.load %arg1[%c0, %c0_0] : memref<96x8xf32, #tpu.memory_space<vmem>>, vector<96x8xf32>
    %1 = arith.truncf %0 : vector<96x8xf32> to vector<96x8xbf16>
    %c0_1 = arith.constant 0 : index
    %c0_2 = arith.constant 0 : index
    %2 = vector.load %arg2[%c0_1, %c0_2] : memref<8x128xbf16, #tpu.memory_space<vmem>>, vector<8x128xbf16>
    %cst = arith.constant dense<0.000000e+00> : vector<96x128xf32>
    %3 = tpu.matmul %1, %2, %cst {dimension_numbers = #tpu.dot_dimension_numbers<[1], [0], [0], [1], [0, 0, 1, 1], [], []>} : vector<96x8xbf16>, vector<8x128xbf16>, vector<96x128xf32> -> vector<96x128xf32>
    %c0_3 = arith.constant 0 : index
    %c0_4 = arith.constant 0 : index
    %4 = vector.load %arg4[%c0_3, %c0_4] : memref<1x128xf32, #tpu.memory_space<vmem>>, vector<1x128xf32>
    %5 = vector.broadcast %4 : vector<1x128xf32> to vector<96x128xf32>
    %6 = arith.addf %3, %5 : vector<96x128xf32>
    %c0_5 = arith.constant 0 : index
    %c0_6 = arith.constant 0 : index
    %7 = vector.load %arg7[%c0_5, %c0_6] : memref<96x128xf32, #tpu.memory_space<vmem>>, vector<96x128xf32>
    tpu.vector_store %arg7[%c0_5, %c0_6], %6 {strides = array<i32>} : memref<96x128xf32, #tpu.memory_space<vmem>>, vector<96x128xf32>,
    %c0_7 = arith.constant 0 : index
    %c0_8 = arith.constant 0 : index
    %8 = vector.load %arg3[%c0_7, %c0_8] : memref<32x128xf32, #tpu.memory_space<vmem>>, vector<32x128xf32>
    %cst_9 = arith.constant 0.000000e+00 : f32
    %9 = vector.broadcast %cst_9 : f32 to vector<16x16xf32>
    %cst_10 = arith.constant 0.000000e+00 : f32
    %10 = vector.broadcast %cst_10 : f32 to vector<16x16xf32>
    %cst_11 = arith.constant 0.000000e+00 : f32
    %11 = vector.broadcast %cst_11 : f32 to vector<16x16xf32>
    %cst_12 = arith.constant 0.000000e+00 : f32
    %12 = vector.broadcast %cst_12 : f32 to vector<16x16xf32>
    %13 = tpu.concatenate %9, %11 in 1 : vector<16x16xf32>, vector<16x16xf32> -> vector<16x32xf32>
    %cst_13 = arith.constant dense<0.000000e+00> : vector<16x128xf32>
    %14 = tpu.matmul %13, %8, %cst_13 {dimension_numbers = #tpu.dot_dimension_numbers<[1], [0], [0], [1], [0, 0, 1, 1], [], []>} : vector<16x32xf32>, vector<32x128xf32>, vector<16x128xf32> -> vector<16x128xf32>
    %c0_14 = arith.constant 0 : index
    %c0_15 = arith.constant 0 : index
    %15 = vector.load %arg7[%c0_14, %c0_15] : memref<96x128xf32, #tpu.memory_space<vmem>>, vector<16x64xf32>
    %16 = vector.extract_strided_slice %14 {offsets = [0, 0], sizes = [16, 64], strides = [1, 1]} : vector<16x128xf32> to vector<16x64xf32>
    %17 = arith.addf %15, %16 : vector<16x64xf32>
    %c80 = arith.constant 80 : index
    %c64 = arith.constant 64 : index
    %18 = vector.load %arg7[%c80, %c64] : memref<96x128xf32, #tpu.memory_space<vmem>>, vector<16x64xf32>
    %19 = vector.extract_strided_slice %14 {offsets = [0, 64], sizes = [16, 64], strides = [1, 1]} : vector<16x128xf32> to vector<16x64xf32>
    %20 = arith.addf %18, %19 : vector<16x64xf32>
    %21 = arith.negf %17 : vector<16x64xf32>
    %22 = math.exp %21 : vector<16x64xf32>
    %cst_16 = arith.constant 1.000000e+00 : f32
    %23 = vector.broadcast %cst_16 : f32 to vector<16x64xf32>
    %24 = arith.addf %23, %22 : vector<16x64xf32>
    %25 = arith.divf %23, %24 : vector<16x64xf32>
    %26 = arith.negf %20 : vector<16x64xf32>
    %27 = math.exp %26 : vector<16x64xf32>
    %cst_17 = arith.constant 1.000000e+00 : f32
    %28 = vector.broadcast %cst_17 : f32 to vector<16x64xf32>
    %29 = arith.addf %28, %27 : vector<16x64xf32>
    %30 = arith.divf %28, %29 : vector<16x64xf32>
    %31 = vector.extract_strided_slice %17 {offsets = [0, 32], sizes = [16, 16], strides = [1, 1]} : vector<16x64xf32> to vector<16x16xf32>
    %32 = math.tanh %31 : vector<16x16xf32>
    %33 = vector.extract_strided_slice %20 {offsets = [0, 32], sizes = [16, 16], strides = [1, 1]} : vector<16x64xf32> to vector<16x16xf32>
    %34 = math.tanh %33 : vector<16x16xf32>
    %35 = vector.extract_strided_slice %25 {offsets = [0, 16], sizes = [16, 16], strides = [1, 1]} : vector<16x64xf32> to vector<16x16xf32>
    %36 = arith.mulf %35, %10 : vector<16x16xf32>
    %37 = vector.extract_strided_slice %25 {offsets = [0, 0], sizes = [16, 16], strides = [1, 1]} : vector<16x64xf32> to vector<16x16xf32>
    %38 = arith.mulf %37, %32 : vector<16x16xf32>
    %39 = arith.addf %36, %38 : vector<16x16xf32>
    %40 = vector.extract_strided_slice %30 {offsets = [0, 16], sizes = [16, 16], strides = [1, 1]} : vector<16x64xf32> to vector<16x16xf32>
    %41 = arith.mulf %40, %12 : vector<16x16xf32>
    %42 = vector.extract_strided_slice %30 {offsets = [0, 0], sizes = [16, 16], strides = [1, 1]} : vector<16x64xf32> to vector<16x16xf32>
    %43 = arith.mulf %42, %34 : vector<16x16xf32>
    %44 = arith.addf %41, %43 : vector<16x16xf32>
    %45 = vector.extract_strided_slice %25 {offsets = [0, 48], sizes = [16, 16], strides = [1, 1]} : vector<16x64xf32> to vector<16x16xf32>
    %46 = math.tanh %39 : vector<16x16xf32>
    %47 = arith.mulf %45, %46 : vector<16x16xf32>
    %48 = vector.extract_strided_slice %30 {offsets = [0, 48], sizes = [16, 16], strides = [1, 1]} : vector<16x64xf32> to vector<16x16xf32>
    %49 = math.tanh %44 : vector<16x16xf32>
    %50 = arith.mulf %48, %49 : vector<16x16xf32>
    %51 = tpu.concatenate %47, %50 in 1 : vector<16x16xf32>, vector<16x16xf32> -> vector<16x32xf32>
    %cst_18 = arith.constant dense<0.000000e+00> : vector<16x128xf32>
    %52 = tpu.matmul %51, %8, %cst_18 {dimension_numbers = #tpu.dot_dimension_numbers<[1], [0], [0], [1], [0, 0, 1, 1], [], []>} : vector<16x32xf32>, vector<32x128xf32>, vector<16x128xf32> -> vector<16x128xf32>
    %c16 = arith.constant 16 : index
    %c0_19 = arith.constant 0 : index
    %53 = vector.load %arg7[%c16, %c0_19] : memref<96x128xf32, #tpu.memory_space<vmem>>, vector<16x64xf32>
    %54 = vector.extract_strided_slice %52 {offsets = [0, 0], sizes = [16, 64], strides = [1, 1]} : vector<16x128xf32> to vector<16x64xf32>
    %55 = arith.addf %53, %54 : vector<16x64xf32>
    %c64_20 = arith.constant 64 : index
    %c64_21 = arith.constant 64 : index
    %56 = vector.load %arg7[%c64_20, %c64_21] : memref<96x128xf32, #tpu.memory_space<vmem>>, vector<16x64xf32>
    %57 = vector.extract_strided_slice %52 {offsets = [0, 64], sizes = [16, 64], strides = [1, 1]} : vector<16x128xf32> to vector<16x64xf32>
    %58 = arith.addf %56, %57 : vector<16x64xf32>
    %59 = arith.negf %55 : vector<16x64xf32>
    %60 = math.exp %59 : vector<16x64xf32>
    %cst_22 = arith.constant 1.000000e+00 : f32
    %61 = vector.broadcast %cst_22 : f32 to vector<16x64xf32>
    %62 = arith.addf %61, %60 : vector<16x64xf32>
    %63 = arith.divf %61, %62 : vector<16x64xf32>
    %64 = arith.negf %58 : vector<16x64xf32>
    %65 = math.exp %64 : vector<16x64xf32>
    %cst_23 = arith.constant 1.000000e+00 : f32
    %66 = vector.broadcast %cst_23 : f32 to vector<16x64xf32>
    %67 = arith.addf %66, %65 : vector<16x64xf32>
    %68 = arith.divf %66, %67 : vector<16x64xf32>
    %69 = vector.extract_strided_slice %55 {offsets = [0, 32], sizes = [16, 16], strides = [1, 1]} : vector<16x64xf32> to vector<16x16xf32>
    %70 = math.tanh %69 : vector<16x16xf32>
    %71 = vector.extract_strided_slice %58 {offsets = [0, 32], sizes = [16, 16], strides = [1, 1]} : vector<16x64xf32> to vector<16x16xf32>
    %72 = math.tanh %71 : vector<16x16xf32>
    %73 = vector.extract_strided_slice %63 {offsets = [0, 16], sizes = [16, 16], strides = [1, 1]} : vector<16x64xf32> to vector<16x16xf32>
    %74 = arith.mulf %73, %39 : vector<16x16xf32>
    %75 = vector.extract_strided_slice %63 {offsets = [0, 0], sizes = [16, 16], strides = [1, 1]} : vector<16x64xf32> to vector<16x16xf32>
    %76 = arith.mulf %75, %70 : vector<16x16xf32>
    %77 = arith.addf %74, %76 : vector<16x16xf32>
    %78 = vector.extract_strided_slice %68 {offsets = [0, 16], sizes = [16, 16], strides = [1, 1]} : vector<16x64xf32> to vector<16x16xf32>
    %79 = arith.mulf %78, %44 : vector<16x16xf32>
    %80 = vector.extract_strided_slice %68 {offsets = [0, 0], sizes = [16, 16], strides = [1, 1]} : vector<16x64xf32> to vector<16x16xf32>
    %81 = arith.mulf %80, %72 : vector<16x16xf32>
    %82 = arith.addf %79, %81 : vector<16x16xf32>
    %83 = vector.extract_strided_slice %63 {offsets = [0, 48], sizes = [16, 16], strides = [1, 1]} : vector<16x64xf32> to vector<16x16xf32>
    %84 = math.tanh %77 : vector<16x16xf32>
    %85 = arith.mulf %83, %84 : vector<16x16xf32>
    %86 = vector.extract_strided_slice %68 {offsets = [0, 48], sizes = [16, 16], strides = [1, 1]} : vector<16x64xf32> to vector<16x16xf32>
    %87 = math.tanh %82 : vector<16x16xf32>
    %88 = arith.mulf %86, %87 : vector<16x16xf32>
    %89 = tpu.concatenate %85, %88 in 1 : vector<16x16xf32>, vector<16x16xf32> -> vector<16x32xf32>
    %cst_24 = arith.constant dense<0.000000e+00> : vector<16x128xf32>
    %90 = tpu.matmul %89, %8, %cst_24 {dimension_numbers = #tpu.dot_dimension_numbers<[1], [0], [0], [1], [0, 0, 1, 1], [], []>} : vector<16x32xf32>, vector<32x128xf32>, vector<16x128xf32> -> vector<16x128xf32>
    %c32 = arith.constant 32 : index
    %c0_25 = arith.constant 0 : index
    %91 = vector.load %arg7[%c32, %c0_25] : memref<96x128xf32, #tpu.memory_space<vmem>>, vector<16x64xf32>
    %92 = vector.extract_strided_slice %90 {offsets = [0, 0], sizes = [16, 64], strides = [1, 1]} : vector<16x128xf32> to vector<16x64xf32>
    %93 = arith.addf %91, %92 : vector<16x64xf32>
    %c48 = arith.constant 48 : index
    %c64_26 = arith.constant 64 : index
    %94 = vector.load %arg7[%c48, %c64_26] : memref<96x128xf32, #tpu.memory_space<vmem>>, vector<16x64xf32>
    %95 = vector.extract_strided_slice %90 {offsets = [0, 64], sizes = [16, 64], strides = [1, 1]} : vector<16x128xf32> to vector<16x64xf32>
    %96 = arith.addf %94, %95 : vector<16x64xf32>
    %97 = arith.negf %93 : vector<16x64xf32>
    %98 = math.exp %97 : vector<16x64xf32>
    %cst_27 = arith.constant 1.000000e+00 : f32
    %99 = vector.broadcast %cst_27 : f32 to vector<16x64xf32>
    %100 = arith.addf %99, %98 : vector<16x64xf32>
    %101 = arith.divf %99, %100 : vector<16x64xf32>
    %102 = arith.negf %96 : vector<16x64xf32>
    %103 = math.exp %102 : vector<16x64xf32>
    %cst_28 = arith.constant 1.000000e+00 : f32
    %104 = vector.broadcast %cst_28 : f32 to vector<16x64xf32>
    %105 = arith.addf %104, %103 : vector<16x64xf32>
    %106 = arith.divf %104, %105 : vector<16x64xf32>
    %107 = vector.extract_strided_slice %93 {offsets = [0, 32], sizes = [16, 16], strides = [1, 1]} : vector<16x64xf32> to vector<16x16xf32>
    %108 = math.tanh %107 : vector<16x16xf32>
    %109 = vector.extract_strided_slice %96 {offsets = [0, 32], sizes = [16, 16], strides = [1, 1]} : vector<16x64xf32> to vector<16x16xf32>
    %110 = math.tanh %109 : vector<16x16xf32>
    %111 = vector.extract_strided_slice %101 {offsets = [0, 16], sizes = [16, 16], strides = [1, 1]} : vector<16x64xf32> to vector<16x16xf32>
    %112 = arith.mulf %111, %77 : vector<16x16xf32>
    %113 = vector.extract_strided_slice %101 {offsets = [0, 0], sizes = [16, 16], strides = [1, 1]} : vector<16x64xf32> to vector<16x16xf32>
    %114 = arith.mulf %113, %108 : vector<16x16xf32>
    %115 = arith.addf %112, %114 : vector<16x16xf32>
    %116 = vector.extract_strided_slice %106 {offsets = [0, 16], sizes = [16, 16], strides = [1, 1]} : vector<16x64xf32> to vector<16x16xf32>
    %117 = arith.mulf %116, %82 : vector<16x16xf32>
    %118 = vector.extract_strided_slice %106 {offsets = [0, 0], sizes = [16, 16], strides = [1, 1]} : vector<16x64xf32> to vector<16x16xf32>
    %119 = arith.mulf %118, %110 : vector<16x16xf32>
    %120 = arith.addf %117, %119 : vector<16x16xf32>
    %121 = vector.extract_strided_slice %101 {offsets = [0, 48], sizes = [16, 16], strides = [1, 1]} : vector<16x64xf32> to vector<16x16xf32>
    %122 = math.tanh %115 : vector<16x16xf32>
    %123 = arith.mulf %121, %122 : vector<16x16xf32>
    %124 = vector.extract_strided_slice %106 {offsets = [0, 48], sizes = [16, 16], strides = [1, 1]} : vector<16x64xf32> to vector<16x16xf32>
    %125 = math.tanh %120 : vector<16x16xf32>
    %126 = arith.mulf %124, %125 : vector<16x16xf32>
    %127 = tpu.concatenate %123, %126 in 1 : vector<16x16xf32>, vector<16x16xf32> -> vector<16x32xf32>
    %cst_29 = arith.constant dense<0.000000e+00> : vector<16x128xf32>
    %128 = tpu.matmul %127, %8, %cst_29 {dimension_numbers = #tpu.dot_dimension_numbers<[1], [0], [0], [1], [0, 0, 1, 1], [], []>} : vector<16x32xf32>, vector<32x128xf32>, vector<16x128xf32> -> vector<16x128xf32>
    %c48_30 = arith.constant 48 : index
    %c0_31 = arith.constant 0 : index
    %129 = vector.load %arg7[%c48_30, %c0_31] : memref<96x128xf32, #tpu.memory_space<vmem>>, vector<16x64xf32>
    %130 = vector.extract_strided_slice %128 {offsets = [0, 0], sizes = [16, 64], strides = [1, 1]} : vector<16x128xf32> to vector<16x64xf32>
    %131 = arith.addf %129, %130 : vector<16x64xf32>
    %c32_32 = arith.constant 32 : index
    %c64_33 = arith.constant 64 : index
    %132 = vector.load %arg7[%c32_32, %c64_33] : memref<96x128xf32, #tpu.memory_space<vmem>>, vector<16x64xf32>
    %133 = vector.extract_strided_slice %128 {offsets = [0, 64], sizes = [16, 64], strides = [1, 1]} : vector<16x128xf32> to vector<16x64xf32>
    %134 = arith.addf %132, %133 : vector<16x64xf32>
    %135 = arith.negf %131 : vector<16x64xf32>
    %136 = math.exp %135 : vector<16x64xf32>
    %cst_34 = arith.constant 1.000000e+00 : f32
    %137 = vector.broadcast %cst_34 : f32 to vector<16x64xf32>
    %138 = arith.addf %137, %136 : vector<16x64xf32>
    %139 = arith.divf %137, %138 : vector<16x64xf32>
    %140 = arith.negf %134 : vector<16x64xf32>
    %141 = math.exp %140 : vector<16x64xf32>
    %cst_35 = arith.constant 1.000000e+00 : f32
    %142 = vector.broadcast %cst_35 : f32 to vector<16x64xf32>
    %143 = arith.addf %142, %141 : vector<16x64xf32>
    %144 = arith.divf %142, %143 : vector<16x64xf32>
    %145 = vector.extract_strided_slice %131 {offsets = [0, 32], sizes = [16, 16], strides = [1, 1]} : vector<16x64xf32> to vector<16x16xf32>
    %146 = math.tanh %145 : vector<16x16xf32>
    %147 = vector.extract_strided_slice %134 {offsets = [0, 32], sizes = [16, 16], strides = [1, 1]} : vector<16x64xf32> to vector<16x16xf32>
    %148 = math.tanh %147 : vector<16x16xf32>
    %149 = vector.extract_strided_slice %139 {offsets = [0, 16], sizes = [16, 16], strides = [1, 1]} : vector<16x64xf32> to vector<16x16xf32>
    %150 = arith.mulf %149, %115 : vector<16x16xf32>
    %151 = vector.extract_strided_slice %139 {offsets = [0, 0], sizes = [16, 16], strides = [1, 1]} : vector<16x64xf32> to vector<16x16xf32>
    %152 = arith.mulf %151, %146 : vector<16x16xf32>
    %153 = arith.addf %150, %152 : vector<16x16xf32>
    %154 = vector.extract_strided_slice %144 {offsets = [0, 16], sizes = [16, 16], strides = [1, 1]} : vector<16x64xf32> to vector<16x16xf32>
    %155 = arith.mulf %154, %120 : vector<16x16xf32>
    %156 = vector.extract_strided_slice %144 {offsets = [0, 0], sizes = [16, 16], strides = [1, 1]} : vector<16x64xf32> to vector<16x16xf32>
    %157 = arith.mulf %156, %148 : vector<16x16xf32>
    %158 = arith.addf %155, %157 : vector<16x16xf32>
    %159 = vector.extract_strided_slice %139 {offsets = [0, 48], sizes = [16, 16], strides = [1, 1]} : vector<16x64xf32> to vector<16x16xf32>
    %160 = math.tanh %153 : vector<16x16xf32>
    %161 = arith.mulf %159, %160 : vector<16x16xf32>
    %162 = vector.extract_strided_slice %144 {offsets = [0, 48], sizes = [16, 16], strides = [1, 1]} : vector<16x64xf32> to vector<16x16xf32>
    %163 = math.tanh %158 : vector<16x16xf32>
    %164 = arith.mulf %162, %163 : vector<16x16xf32>
    %165 = tpu.concatenate %161, %164 in 1 : vector<16x16xf32>, vector<16x16xf32> -> vector<16x32xf32>
    %cst_36 = arith.constant dense<0.000000e+00> : vector<16x128xf32>
    %166 = tpu.matmul %165, %8, %cst_36 {dimension_numbers = #tpu.dot_dimension_numbers<[1], [0], [0], [1], [0, 0, 1, 1], [], []>} : vector<16x32xf32>, vector<32x128xf32>, vector<16x128xf32> -> vector<16x128xf32>
    %c64_37 = arith.constant 64 : index
    %c0_38 = arith.constant 0 : index
    %167 = vector.load %arg7[%c64_37, %c0_38] : memref<96x128xf32, #tpu.memory_space<vmem>>, vector<16x64xf32>
    %168 = vector.extract_strided_slice %166 {offsets = [0, 0], sizes = [16, 64], strides = [1, 1]} : vector<16x128xf32> to vector<16x64xf32>
    %169 = arith.addf %167, %168 : vector<16x64xf32>
    %c16_39 = arith.constant 16 : index
    %c64_40 = arith.constant 64 : index
    %170 = vector.load %arg7[%c16_39, %c64_40] : memref<96x128xf32, #tpu.memory_space<vmem>>, vector<16x64xf32>
    %171 = vector.extract_strided_slice %166 {offsets = [0, 64], sizes = [16, 64], strides = [1, 1]} : vector<16x128xf32> to vector<16x64xf32>
    %172 = arith.addf %170, %171 : vector<16x64xf32>
    %173 = arith.negf %169 : vector<16x64xf32>
    %174 = math.exp %173 : vector<16x64xf32>
    %cst_41 = arith.constant 1.000000e+00 : f32
    %175 = vector.broadcast %cst_41 : f32 to vector<16x64xf32>
    %176 = arith.addf %175, %174 : vector<16x64xf32>
    %177 = arith.divf %175, %176 : vector<16x64xf32>
    %178 = arith.negf %172 : vector<16x64xf32>
    %179 = math.exp %178 : vector<16x64xf32>
    %cst_42 = arith.constant 1.000000e+00 : f32
    %180 = vector.broadcast %cst_42 : f32 to vector<16x64xf32>
    %181 = arith.addf %180, %179 : vector<16x64xf32>
    %182 = arith.divf %180, %181 : vector<16x64xf32>
    %183 = vector.extract_strided_slice %169 {offsets = [0, 32], sizes = [16, 16], strides = [1, 1]} : vector<16x64xf32> to vector<16x16xf32>
    %184 = math.tanh %183 : vector<16x16xf32>
    %185 = vector.extract_strided_slice %172 {offsets = [0, 32], sizes = [16, 16], strides = [1, 1]} : vector<16x64xf32> to vector<16x16xf32>
    %186 = math.tanh %185 : vector<16x16xf32>
    %187 = vector.extract_strided_slice %177 {offsets = [0, 16], sizes = [16, 16], strides = [1, 1]} : vector<16x64xf32> to vector<16x16xf32>
    %188 = arith.mulf %187, %153 : vector<16x16xf32>
    %189 = vector.extract_strided_slice %177 {offsets = [0, 0], sizes = [16, 16], strides = [1, 1]} : vector<16x64xf32> to vector<16x16xf32>
    %190 = arith.mulf %189, %184 : vector<16x16xf32>
    %191 = arith.addf %188, %190 : vector<16x16xf32>
    %192 = vector.extract_strided_slice %182 {offsets = [0, 16], sizes = [16, 16], strides = [1, 1]} : vector<16x64xf32> to vector<16x16xf32>
    %193 = arith.mulf %192, %158 : vector<16x16xf32>
    %194 = vector.extract_strided_slice %182 {offsets = [0, 0], sizes = [16, 16], strides = [1, 1]} : vector<16x64xf32> to vector<16x16xf32>
    %195 = arith.mulf %194, %186 : vector<16x16xf32>
    %196 = arith.addf %193, %195 : vector<16x16xf32>
    %197 = vector.extract_strided_slice %177 {offsets = [0, 48], sizes = [16, 16], strides = [1, 1]} : vector<16x64xf32> to vector<16x16xf32>
    %198 = math.tanh %191 : vector<16x16xf32>
    %199 = arith.mulf %197, %198 : vector<16x16xf32>
    %200 = vector.extract_strided_slice %182 {offsets = [0, 48], sizes = [16, 16], strides = [1, 1]} : vector<16x64xf32> to vector<16x16xf32>
    %201 = math.tanh %196 : vector<16x16xf32>
    %202 = arith.mulf %200, %201 : vector<16x16xf32>
    %203 = tpu.concatenate %199, %202 in 1 : vector<16x16xf32>, vector<16x16xf32> -> vector<16x32xf32>
    %cst_43 = arith.constant dense<0.000000e+00> : vector<16x128xf32>
    %204 = tpu.matmul %203, %8, %cst_43 {dimension_numbers = #tpu.dot_dimension_numbers<[1], [0], [0], [1], [0, 0, 1, 1], [], []>} : vector<16x32xf32>, vector<32x128xf32>, vector<16x128xf32> -> vector<16x128xf32>
    %c80_44 = arith.constant 80 : index
    %c0_45 = arith.constant 0 : index
    %205 = vector.load %arg7[%c80_44, %c0_45] : memref<96x128xf32, #tpu.memory_space<vmem>>, vector<16x64xf32>
    %206 = vector.extract_strided_slice %204 {offsets = [0, 0], sizes = [16, 64], strides = [1, 1]} : vector<16x128xf32> to vector<16x64xf32>
    %207 = arith.addf %205, %206 : vector<16x64xf32>
    %c0_46 = arith.constant 0 : index
    %c64_47 = arith.constant 64 : index
    %208 = vector.load %arg7[%c0_46, %c64_47] : memref<96x128xf32, #tpu.memory_space<vmem>>, vector<16x64xf32>
    %209 = vector.extract_strided_slice %204 {offsets = [0, 64], sizes = [16, 64], strides = [1, 1]} : vector<16x128xf32> to vector<16x64xf32>
    %210 = arith.addf %208, %209 : vector<16x64xf32>
    %211 = arith.negf %207 : vector<16x64xf32>
    %212 = math.exp %211 : vector<16x64xf32>
    %cst_48 = arith.constant 1.000000e+00 : f32
    %213 = vector.broadcast %cst_48 : f32 to vector<16x64xf32>
    %214 = arith.addf %213, %212 : vector<16x64xf32>
    %215 = arith.divf %213, %214 : vector<16x64xf32>
    %216 = arith.negf %210 : vector<16x64xf32>
    %217 = math.exp %216 : vector<16x64xf32>
    %cst_49 = arith.constant 1.000000e+00 : f32
    %218 = vector.broadcast %cst_49 : f32 to vector<16x64xf32>
    %219 = arith.addf %218, %217 : vector<16x64xf32>
    %220 = arith.divf %218, %219 : vector<16x64xf32>
    %221 = vector.extract_strided_slice %207 {offsets = [0, 32], sizes = [16, 16], strides = [1, 1]} : vector<16x64xf32> to vector<16x16xf32>
    %222 = math.tanh %221 : vector<16x16xf32>
    %223 = vector.extract_strided_slice %210 {offsets = [0, 32], sizes = [16, 16], strides = [1, 1]} : vector<16x64xf32> to vector<16x16xf32>
    %224 = math.tanh %223 : vector<16x16xf32>
    %225 = vector.extract_strided_slice %215 {offsets = [0, 16], sizes = [16, 16], strides = [1, 1]} : vector<16x64xf32> to vector<16x16xf32>
    %226 = arith.mulf %225, %191 : vector<16x16xf32>
    %227 = vector.extract_strided_slice %215 {offsets = [0, 0], sizes = [16, 16], strides = [1, 1]} : vector<16x64xf32> to vector<16x16xf32>
    %228 = arith.mulf %227, %222 : vector<16x16xf32>
    %229 = arith.addf %226, %228 : vector<16x16xf32>
    %230 = vector.extract_strided_slice %220 {offsets = [0, 16], sizes = [16, 16], strides = [1, 1]} : vector<16x64xf32> to vector<16x16xf32>
    %231 = arith.mulf %230, %196 : vector<16x16xf32>
    %232 = vector.extract_strided_slice %220 {offsets = [0, 0], sizes = [16, 16], strides = [1, 1]} : vector<16x64xf32> to vector<16x16xf32>
    %233 = arith.mulf %232, %224 : vector<16x16xf32>
    %234 = arith.addf %231, %233 : vector<16x16xf32>
    %235 = vector.extract_strided_slice %215 {offsets = [0, 48], sizes = [16, 16], strides = [1, 1]} : vector<16x64xf32> to vector<16x16xf32>
    %236 = math.tanh %229 : vector<16x16xf32>
    %237 = arith.mulf %235, %236 : vector<16x16xf32>
    %238 = vector.extract_strided_slice %220 {offsets = [0, 48], sizes = [16, 16], strides = [1, 1]} : vector<16x64xf32> to vector<16x16xf32>
    %239 = math.tanh %234 : vector<16x16xf32>
    %240 = arith.mulf %238, %239 : vector<16x16xf32>
    %241 = tpu.concatenate %47, %85, %123, %161, %199, %237 in 0 : vector<16x16xf32>, vector<16x16xf32>, vector<16x16xf32>, vector<16x16xf32>, vector<16x16xf32>, vector<16x16xf32> -> vector<96x16xf32>
    %242 = tpu.concatenate %240, %202, %164, %126, %88, %50 in 0 : vector<16x16xf32>, vector<16x16xf32>, vector<16x16xf32>, vector<16x16xf32>, vector<16x16xf32>, vector<16x16xf32> -> vector<96x16xf32>
    %243 = tpu.concatenate %241, %242 in 1 : vector<96x16xf32>, vector<96x16xf32> -> vector<96x32xf32>
    %c0_50 = arith.constant 0 : index
    %c0_51 = arith.constant 0 : index
    %244 = vector.load %arg5[%c0_50, %c0_51] : memref<96x32xf32, #tpu.memory_space<vmem>>, vector<96x32xf32>
    tpu.vector_store %arg5[%c0_50, %c0_51], %243 {strides = array<i32>} : memref<96x32xf32, #tpu.memory_space<vmem>>, vector<96x32xf32>,
    %245 = tpu.concatenate %237, %240 in 1 : vector<16x16xf32>, vector<16x16xf32> -> vector<16x32xf32>
    %c0_52 = arith.constant 0 : index
    %c0_53 = arith.constant 0 : index
    %246 = vector.load %arg6[%c0_52, %c0_53] : memref<16x32xf32, #tpu.memory_space<vmem>>, vector<16x32xf32>
    tpu.vector_store %arg6[%c0_52, %c0_53], %245 {strides = array<i32>} : memref<16x32xf32, #tpu.memory_space<vmem>>, vector<16x32xf32>,
    return
  }
  func.func @transform_0(%arg0: i32) -> (i32, i32) {
    %c0_i32 = arith.constant 0 : i32
    %c0_i32_0 = arith.constant 0 : i32
    %c0_i32_1 = arith.constant 0 : i32
    return %c0_i32, %c0_i32_0 : i32, i32
  }
  func.func @transform_1(%arg0: i32) -> (i32, i32) {
    %c0_i32 = arith.constant 0 : i32
    %c0_i32_0 = arith.constant 0 : i32
    %c0_i32_1 = arith.constant 0 : i32
    return %c0_i32, %c0_i32_0 : i32, i32
  }
  func.func @transform_2(%arg0: i32) -> (i32, i32) {
    %c0_i32 = arith.constant 0 : i32
    %c0_i32_0 = arith.constant 0 : i32
    %c0_i32_1 = arith.constant 0 : i32
    return %c0_i32, %c0_i32_0 : i32, i32
  }
  func.func @transform_3(%arg0: i32) -> (i32, i32) {
    %c0_i32 = arith.constant 0 : i32
    %c0_i32_0 = arith.constant 0 : i32
    %c0_i32_1 = arith.constant 0 : i32
    return %c0_i32, %c0_i32_0 : i32, i32
  }
  func.func @transform_4(%arg0: i32) -> (i32, i32) {
    %c0_i32 = arith.constant 0 : i32
    %c0_i32_0 = arith.constant 0 : i32
    %c0_i32_1 = arith.constant 0 : i32
    return %c0_i32, %c0_i32_0 : i32, i32
  }
  func.func @transform_5(%arg0: i32) -> (i32, i32) {
    %c0_i32 = arith.constant 0 : i32
    %c0_i32_0 = arith.constant 0 : i32
    %c0_i32_1 = arith.constant 0 : i32
    return %c0_i32, %c0_i32_0 : i32, i32
  }
}

module attributes {stable_mosaic.version = 11 : i64} {
  func.func @_classify_kernel(%arg0: i32, %arg1: memref<16x64xf32, #tpu.memory_space<vmem>>, %arg2: memref<64x256xbf16, #tpu.memory_space<vmem>>, %arg3: memref<1x256xf32, #tpu.memory_space<vmem>>, %arg4: memref<2x16x128xf32, #tpu.memory_space<vmem>>) attributes {dimension_semantics = [#tpu.dimension_semantics<arbitrary>], iteration_bounds = array<i64: 1>, scalar_prefetch = 0 : i64, scratch_operands = 0 : i64, tpu.core_type = #tpu.core_type<tc>, window_params = [{pipeline_mode = #tpu.pipeline_mode<synchronous>, transform_indices = @transform_0, window_bounds = array<i64: 16, 64>}, {pipeline_mode = #tpu.pipeline_mode<synchronous>, transform_indices = @transform_1, window_bounds = array<i64: 64, 256>}, {pipeline_mode = #tpu.pipeline_mode<synchronous>, transform_indices = @transform_2, window_bounds = array<i64: 1, 256>}, {pipeline_mode = #tpu.pipeline_mode<synchronous>, transform_indices = @transform_3, window_bounds = array<i64: 2, 16, 128>}]} {
    %c0 = arith.constant 0 : index
    %c0_0 = arith.constant 0 : index
    %0 = vector.load %arg1[%c0, %c0_0] : memref<16x64xf32, #tpu.memory_space<vmem>>, vector<16x64xf32>
    %1 = arith.truncf %0 : vector<16x64xf32> to vector<16x64xbf16>
    %c0_1 = arith.constant 0 : index
    %c0_2 = arith.constant 0 : index
    %2 = vector.load %arg2[%c0_1, %c0_2] : memref<64x256xbf16, #tpu.memory_space<vmem>>, vector<64x256xbf16>
    %cst = arith.constant dense<0.000000e+00> : vector<16x256xf32>
    %3 = tpu.matmul %1, %2, %cst {dimension_numbers = #tpu.dot_dimension_numbers<[1], [0], [0], [1], [0, 0, 1, 1], [], []>} : vector<16x64xbf16>, vector<64x256xbf16>, vector<16x256xf32> -> vector<16x256xf32>
    %c0_3 = arith.constant 0 : index
    %c0_4 = arith.constant 0 : index
    %4 = vector.load %arg3[%c0_3, %c0_4] : memref<1x256xf32, #tpu.memory_space<vmem>>, vector<1x256xf32>
    %5 = vector.broadcast %4 : vector<1x256xf32> to vector<16x256xf32>
    %6 = arith.addf %3, %5 : vector<16x256xf32>
    %7 = vector.extract_strided_slice %6 {offsets = [0, 0], sizes = [16, 128], strides = [1, 1]} : vector<16x256xf32> to vector<16x128xf32>
    %cst_5 = arith.constant dense<0xFF800000> : vector<16xf32>
    %8 = vector.multi_reduction <maximumf>, %7, %cst_5 [1] : vector<16x128xf32> to vector<16xf32>
    %9 = vector.shape_cast %8 : vector<16xf32> to vector<16x1xf32>
    %10 = vector.broadcast %9 : vector<16x1xf32> to vector<16x128xf32>
    %11 = arith.subf %7, %10 : vector<16x128xf32>
    %12 = math.exp %11 : vector<16x128xf32>
    %cst_6 = arith.constant dense<0.000000e+00> : vector<16xf32>
    %13 = vector.multi_reduction <add>, %12, %cst_6 [1] : vector<16x128xf32> to vector<16xf32>
    %14 = vector.shape_cast %13 : vector<16xf32> to vector<16x1xf32>
    %15 = math.log %14 : vector<16x1xf32>
    %16 = vector.broadcast %15 : vector<16x1xf32> to vector<16x128xf32>
    %17 = arith.subf %11, %16 : vector<16x128xf32>
    %c0_7 = arith.constant 0 : index
    %c0_8 = arith.constant 0 : index
    %c0_9 = arith.constant 0 : index
    %18 = vector.load %arg4[%c0_7, %c0_8, %c0_9] : memref<2x16x128xf32, #tpu.memory_space<vmem>>, vector<1x16x128xf32>
    %19 = vector.shape_cast %18 : vector<1x16x128xf32> to vector<16x128xf32>
    %20 = vector.shape_cast %17 : vector<16x128xf32> to vector<1x16x128xf32>
    tpu.vector_store %arg4[%c0_7, %c0_8, %c0_9], %20 {strides = array<i32>} : memref<2x16x128xf32, #tpu.memory_space<vmem>>, vector<1x16x128xf32>,
    %21 = vector.extract_strided_slice %6 {offsets = [0, 128], sizes = [16, 128], strides = [1, 1]} : vector<16x256xf32> to vector<16x128xf32>
    %cst_10 = arith.constant dense<0xFF800000> : vector<16xf32>
    %22 = vector.multi_reduction <maximumf>, %21, %cst_10 [1] : vector<16x128xf32> to vector<16xf32>
    %23 = vector.shape_cast %22 : vector<16xf32> to vector<16x1xf32>
    %24 = vector.broadcast %23 : vector<16x1xf32> to vector<16x128xf32>
    %25 = arith.subf %21, %24 : vector<16x128xf32>
    %26 = math.exp %25 : vector<16x128xf32>
    %cst_11 = arith.constant dense<0.000000e+00> : vector<16xf32>
    %27 = vector.multi_reduction <add>, %26, %cst_11 [1] : vector<16x128xf32> to vector<16xf32>
    %28 = vector.shape_cast %27 : vector<16xf32> to vector<16x1xf32>
    %29 = math.log %28 : vector<16x1xf32>
    %30 = vector.broadcast %29 : vector<16x1xf32> to vector<16x128xf32>
    %31 = arith.subf %25, %30 : vector<16x128xf32>
    %c1 = arith.constant 1 : index
    %c0_12 = arith.constant 0 : index
    %c0_13 = arith.constant 0 : index
    %32 = vector.load %arg4[%c1, %c0_12, %c0_13] : memref<2x16x128xf32, #tpu.memory_space<vmem>>, vector<1x16x128xf32>
    %33 = vector.shape_cast %32 : vector<1x16x128xf32> to vector<16x128xf32>
    %34 = vector.shape_cast %31 : vector<16x128xf32> to vector<1x16x128xf32>
    tpu.vector_store %arg4[%c1, %c0_12, %c0_13], %34 {strides = array<i32>} : memref<2x16x128xf32, #tpu.memory_space<vmem>>, vector<1x16x128xf32>,
    return
  }
  func.func @transform_0(%arg0: i32) -> (i32, i32) {
    %c0_i32 = arith.constant 0 : i32
    %c0_i32_0 = arith.constant 0 : i32
    %c0_i32_1 = arith.constant 0 : i32
    return %c0_i32, %c0_i32_0 : i32, i32
  }
  func.func @transform_1(%arg0: i32) -> (i32, i32) {
    %c0_i32 = arith.constant 0 : i32
    %c0_i32_0 = arith.constant 0 : i32
    %c0_i32_1 = arith.constant 0 : i32
    return %c0_i32, %c0_i32_0 : i32, i32
  }
  func.func @transform_2(%arg0: i32) -> (i32, i32) {
    %c0_i32 = arith.constant 0 : i32
    %c0_i32_0 = arith.constant 0 : i32
    %c0_i32_1 = arith.constant 0 : i32
    return %c0_i32, %c0_i32_0 : i32, i32
  }
  func.func @transform_3(%arg0: i32) -> (i32, i32, i32) {
    %c0_i32 = arith.constant 0 : i32
    %c0_i32_0 = arith.constant 0 : i32
    %c0_i32_1 = arith.constant 0 : i32
    %c0_i32_2 = arith.constant 0 : i32
    return %c0_i32, %c0_i32_0, %c0_i32_1 : i32, i32, i32
  }
}

module attributes {stable_mosaic.version = 11 : i64} {
  func.func @_bilstm_kernel(%arg0: i32, %arg1: memref<16x48xf32, #tpu.memory_space<vmem>>, %arg2: memref<48x256xbf16, #tpu.memory_space<vmem>>, %arg3: memref<64x256xf32, #tpu.memory_space<vmem>>, %arg4: memref<1x256xf32, #tpu.memory_space<vmem>>, %arg5: memref<16x64xf32, #tpu.memory_space<vmem>>, %arg6: memref<2x64xf32, #tpu.memory_space<vmem>>, %arg7: memref<16x256xf32, #tpu.memory_space<vmem>>) attributes {dimension_semantics = [#tpu.dimension_semantics<arbitrary>], iteration_bounds = array<i64: 1>, scalar_prefetch = 0 : i64, scratch_operands = 1 : i64, tpu.core_type = #tpu.core_type<tc>, window_params = [{pipeline_mode = #tpu.pipeline_mode<synchronous>, transform_indices = @transform_0, window_bounds = array<i64: 16, 48>}, {pipeline_mode = #tpu.pipeline_mode<synchronous>, transform_indices = @transform_1, window_bounds = array<i64: 48, 256>}, {pipeline_mode = #tpu.pipeline_mode<synchronous>, transform_indices = @transform_2, window_bounds = array<i64: 64, 256>}, {pipeline_mode = #tpu.pipeline_mode<synchronous>, transform_indices = @transform_3, window_bounds = array<i64: 1, 256>}, {pipeline_mode = #tpu.pipeline_mode<synchronous>, transform_indices = @transform_4, window_bounds = array<i64: 16, 64>}, {pipeline_mode = #tpu.pipeline_mode<synchronous>, transform_indices = @transform_5, window_bounds = array<i64: 2, 64>}]} {
    %c0 = arith.constant 0 : index
    %c0_0 = arith.constant 0 : index
    %0 = vector.load %arg1[%c0, %c0_0] : memref<16x48xf32, #tpu.memory_space<vmem>>, vector<16x48xf32>
    %1 = arith.truncf %0 : vector<16x48xf32> to vector<16x48xbf16>
    %c0_1 = arith.constant 0 : index
    %c0_2 = arith.constant 0 : index
    %2 = vector.load %arg2[%c0_1, %c0_2] : memref<48x256xbf16, #tpu.memory_space<vmem>>, vector<48x256xbf16>
    %cst = arith.constant dense<0.000000e+00> : vector<16x256xf32>
    %3 = tpu.matmul %1, %2, %cst {dimension_numbers = #tpu.dot_dimension_numbers<[1], [0], [0], [1], [0, 0, 1, 1], [], []>} : vector<16x48xbf16>, vector<48x256xbf16>, vector<16x256xf32> -> vector<16x256xf32>
    %c0_3 = arith.constant 0 : index
    %c0_4 = arith.constant 0 : index
    %4 = vector.load %arg4[%c0_3, %c0_4] : memref<1x256xf32, #tpu.memory_space<vmem>>, vector<1x256xf32>
    %5 = vector.broadcast %4 : vector<1x256xf32> to vector<16x256xf32>
    %6 = arith.addf %3, %5 : vector<16x256xf32>
    %c0_5 = arith.constant 0 : index
    %c0_6 = arith.constant 0 : index
    %7 = vector.load %arg7[%c0_5, %c0_6] : memref<16x256xf32, #tpu.memory_space<vmem>>, vector<16x256xf32>
    tpu.vector_store %arg7[%c0_5, %c0_6], %6 {strides = array<i32>} : memref<16x256xf32, #tpu.memory_space<vmem>>, vector<16x256xf32>,
    %c0_7 = arith.constant 0 : index
    %c0_8 = arith.constant 0 : index
    %8 = vector.load %arg3[%c0_7, %c0_8] : memref<64x256xf32, #tpu.memory_space<vmem>>, vector<64x256xf32>
    %cst_9 = arith.constant 0.000000e+00 : f32
    %9 = vector.broadcast %cst_9 : f32 to vector<2x32xf32>
    %cst_10 = arith.constant 0.000000e+00 : f32
    %10 = vector.broadcast %cst_10 : f32 to vector<2x32xf32>
    %cst_11 = arith.constant 0.000000e+00 : f32
    %11 = vector.broadcast %cst_11 : f32 to vector<2x32xf32>
    %cst_12 = arith.constant 0.000000e+00 : f32
    %12 = vector.broadcast %cst_12 : f32 to vector<2x32xf32>
    %13 = tpu.concatenate %9, %11 in 1 : vector<2x32xf32>, vector<2x32xf32> -> vector<2x64xf32>
    %cst_13 = arith.constant dense<0.000000e+00> : vector<2x256xf32>
    %14 = tpu.matmul %13, %8, %cst_13 {dimension_numbers = #tpu.dot_dimension_numbers<[1], [0], [0], [1], [0, 0, 1, 1], [], []>} : vector<2x64xf32>, vector<64x256xf32>, vector<2x256xf32> -> vector<2x256xf32>
    %c0_14 = arith.constant 0 : index
    %c0_15 = arith.constant 0 : index
    %15 = vector.load %arg7[%c0_14, %c0_15] : memref<16x256xf32, #tpu.memory_space<vmem>>, vector<2x128xf32>
    %16 = vector.extract_strided_slice %14 {offsets = [0, 0], sizes = [2, 128], strides = [1, 1]} : vector<2x256xf32> to vector<2x128xf32>
    %17 = arith.addf %15, %16 : vector<2x128xf32>
    %c14 = arith.constant 14 : index
    %c128 = arith.constant 128 : index
    %18 = vector.load %arg7[%c14, %c128] : memref<16x256xf32, #tpu.memory_space<vmem>>, vector<2x128xf32>
    %19 = vector.extract_strided_slice %14 {offsets = [0, 128], sizes = [2, 128], strides = [1, 1]} : vector<2x256xf32> to vector<2x128xf32>
    %20 = arith.addf %18, %19 : vector<2x128xf32>
    %21 = arith.negf %17 : vector<2x128xf32>
    %22 = math.exp %21 : vector<2x128xf32>
    %cst_16 = arith.constant 1.000000e+00 : f32
    %23 = vector.broadcast %cst_16 : f32 to vector<2x128xf32>
    %24 = arith.addf %23, %22 : vector<2x128xf32>
    %25 = arith.divf %23, %24 : vector<2x128xf32>
    %26 = arith.negf %20 : vector<2x128xf32>
    %27 = math.exp %26 : vector<2x128xf32>
    %cst_17 = arith.constant 1.000000e+00 : f32
    %28 = vector.broadcast %cst_17 : f32 to vector<2x128xf32>
    %29 = arith.addf %28, %27 : vector<2x128xf32>
    %30 = arith.divf %28, %29 : vector<2x128xf32>
    %31 = vector.extract_strided_slice %17 {offsets = [0, 64], sizes = [2, 32], strides = [1, 1]} : vector<2x128xf32> to vector<2x32xf32>
    %32 = math.tanh %31 : vector<2x32xf32>
    %33 = vector.extract_strided_slice %20 {offsets = [0, 64], sizes = [2, 32], strides = [1, 1]} : vector<2x128xf32> to vector<2x32xf32>
    %34 = math.tanh %33 : vector<2x32xf32>
    %35 = vector.extract_strided_slice %25 {offsets = [0, 32], sizes = [2, 32], strides = [1, 1]} : vector<2x128xf32> to vector<2x32xf32>
    %36 = arith.mulf %35, %10 : vector<2x32xf32>
    %37 = vector.extract_strided_slice %25 {offsets = [0, 0], sizes = [2, 32], strides = [1, 1]} : vector<2x128xf32> to vector<2x32xf32>
    %38 = arith.mulf %37, %32 : vector<2x32xf32>
    %39 = arith.addf %36, %38 : vector<2x32xf32>
    %40 = vector.extract_strided_slice %30 {offsets = [0, 32], sizes = [2, 32], strides = [1, 1]} : vector<2x128xf32> to vector<2x32xf32>
    %41 = arith.mulf %40, %12 : vector<2x32xf32>
    %42 = vector.extract_strided_slice %30 {offsets = [0, 0], sizes = [2, 32], strides = [1, 1]} : vector<2x128xf32> to vector<2x32xf32>
    %43 = arith.mulf %42, %34 : vector<2x32xf32>
    %44 = arith.addf %41, %43 : vector<2x32xf32>
    %45 = vector.extract_strided_slice %25 {offsets = [0, 96], sizes = [2, 32], strides = [1, 1]} : vector<2x128xf32> to vector<2x32xf32>
    %46 = math.tanh %39 : vector<2x32xf32>
    %47 = arith.mulf %45, %46 : vector<2x32xf32>
    %48 = vector.extract_strided_slice %30 {offsets = [0, 96], sizes = [2, 32], strides = [1, 1]} : vector<2x128xf32> to vector<2x32xf32>
    %49 = math.tanh %44 : vector<2x32xf32>
    %50 = arith.mulf %48, %49 : vector<2x32xf32>
    %51 = tpu.concatenate %47, %50 in 1 : vector<2x32xf32>, vector<2x32xf32> -> vector<2x64xf32>
    %cst_18 = arith.constant dense<0.000000e+00> : vector<2x256xf32>
    %52 = tpu.matmul %51, %8, %cst_18 {dimension_numbers = #tpu.dot_dimension_numbers<[1], [0], [0], [1], [0, 0, 1, 1], [], []>} : vector<2x64xf32>, vector<64x256xf32>, vector<2x256xf32> -> vector<2x256xf32>
    %c2 = arith.constant 2 : index
    %c0_19 = arith.constant 0 : index
    %53 = vector.load %arg7[%c2, %c0_19] : memref<16x256xf32, #tpu.memory_space<vmem>>, vector<2x128xf32>
    %54 = vector.extract_strided_slice %52 {offsets = [0, 0], sizes = [2, 128], strides = [1, 1]} : vector<2x256xf32> to vector<2x128xf32>
    %55 = arith.addf %53, %54 : vector<2x128xf32>
    %c12 = arith.constant 12 : index
    %c128_20 = arith.constant 128 : index
    %56 = vector.load %arg7[%c12, %c128_20] : memref<16x256xf32, #tpu.memory_space<vmem>>, vector<2x128xf32>
    %57 = vector.extract_strided_slice %52 {offsets = [0, 128], sizes = [2, 128], strides = [1, 1]} : vector<2x256xf32> to vector<2x128xf32>
    %58 = arith.addf %56, %57 : vector<2x128xf32>
    %59 = arith.negf %55 : vector<2x128xf32>
    %60 = math.exp %59 : vector<2x128xf32>
    %cst_21 = arith.constant 1.000000e+00 : f32
    %61 = vector.broadcast %cst_21 : f32 to vector<2x128xf32>
    %62 = arith.addf %61, %60 : vector<2x128xf32>
    %63 = arith.divf %61, %62 : vector<2x128xf32>
    %64 = arith.negf %58 : vector<2x128xf32>
    %65 = math.exp %64 : vector<2x128xf32>
    %cst_22 = arith.constant 1.000000e+00 : f32
    %66 = vector.broadcast %cst_22 : f32 to vector<2x128xf32>
    %67 = arith.addf %66, %65 : vector<2x128xf32>
    %68 = arith.divf %66, %67 : vector<2x128xf32>
    %69 = vector.extract_strided_slice %55 {offsets = [0, 64], sizes = [2, 32], strides = [1, 1]} : vector<2x128xf32> to vector<2x32xf32>
    %70 = math.tanh %69 : vector<2x32xf32>
    %71 = vector.extract_strided_slice %58 {offsets = [0, 64], sizes = [2, 32], strides = [1, 1]} : vector<2x128xf32> to vector<2x32xf32>
    %72 = math.tanh %71 : vector<2x32xf32>
    %73 = vector.extract_strided_slice %63 {offsets = [0, 32], sizes = [2, 32], strides = [1, 1]} : vector<2x128xf32> to vector<2x32xf32>
    %74 = arith.mulf %73, %39 : vector<2x32xf32>
    %75 = vector.extract_strided_slice %63 {offsets = [0, 0], sizes = [2, 32], strides = [1, 1]} : vector<2x128xf32> to vector<2x32xf32>
    %76 = arith.mulf %75, %70 : vector<2x32xf32>
    %77 = arith.addf %74, %76 : vector<2x32xf32>
    %78 = vector.extract_strided_slice %68 {offsets = [0, 32], sizes = [2, 32], strides = [1, 1]} : vector<2x128xf32> to vector<2x32xf32>
    %79 = arith.mulf %78, %44 : vector<2x32xf32>
    %80 = vector.extract_strided_slice %68 {offsets = [0, 0], sizes = [2, 32], strides = [1, 1]} : vector<2x128xf32> to vector<2x32xf32>
    %81 = arith.mulf %80, %72 : vector<2x32xf32>
    %82 = arith.addf %79, %81 : vector<2x32xf32>
    %83 = vector.extract_strided_slice %63 {offsets = [0, 96], sizes = [2, 32], strides = [1, 1]} : vector<2x128xf32> to vector<2x32xf32>
    %84 = math.tanh %77 : vector<2x32xf32>
    %85 = arith.mulf %83, %84 : vector<2x32xf32>
    %86 = vector.extract_strided_slice %68 {offsets = [0, 96], sizes = [2, 32], strides = [1, 1]} : vector<2x128xf32> to vector<2x32xf32>
    %87 = math.tanh %82 : vector<2x32xf32>
    %88 = arith.mulf %86, %87 : vector<2x32xf32>
    %89 = tpu.concatenate %85, %88 in 1 : vector<2x32xf32>, vector<2x32xf32> -> vector<2x64xf32>
    %cst_23 = arith.constant dense<0.000000e+00> : vector<2x256xf32>
    %90 = tpu.matmul %89, %8, %cst_23 {dimension_numbers = #tpu.dot_dimension_numbers<[1], [0], [0], [1], [0, 0, 1, 1], [], []>} : vector<2x64xf32>, vector<64x256xf32>, vector<2x256xf32> -> vector<2x256xf32>
    %c4 = arith.constant 4 : index
    %c0_24 = arith.constant 0 : index
    %91 = vector.load %arg7[%c4, %c0_24] : memref<16x256xf32, #tpu.memory_space<vmem>>, vector<2x128xf32>
    %92 = vector.extract_strided_slice %90 {offsets = [0, 0], sizes = [2, 128], strides = [1, 1]} : vector<2x256xf32> to vector<2x128xf32>
    %93 = arith.addf %91, %92 : vector<2x128xf32>
    %c10 = arith.constant 10 : index
    %c128_25 = arith.constant 128 : index
    %94 = vector.load %arg7[%c10, %c128_25] : memref<16x256xf32, #tpu.memory_space<vmem>>, vector<2x128xf32>
    %95 = vector.extract_strided_slice %90 {offsets = [0, 128], sizes = [2, 128], strides = [1, 1]} : vector<2x256xf32> to vector<2x128xf32>
    %96 = arith.addf %94, %95 : vector<2x128xf32>
    %97 = arith.negf %93 : vector<2x128xf32>
    %98 = math.exp %97 : vector<2x128xf32>
    %cst_26 = arith.constant 1.000000e+00 : f32
    %99 = vector.broadcast %cst_26 : f32 to vector<2x128xf32>
    %100 = arith.addf %99, %98 : vector<2x128xf32>
    %101 = arith.divf %99, %100 : vector<2x128xf32>
    %102 = arith.negf %96 : vector<2x128xf32>
    %103 = math.exp %102 : vector<2x128xf32>
    %cst_27 = arith.constant 1.000000e+00 : f32
    %104 = vector.broadcast %cst_27 : f32 to vector<2x128xf32>
    %105 = arith.addf %104, %103 : vector<2x128xf32>
    %106 = arith.divf %104, %105 : vector<2x128xf32>
    %107 = vector.extract_strided_slice %93 {offsets = [0, 64], sizes = [2, 32], strides = [1, 1]} : vector<2x128xf32> to vector<2x32xf32>
    %108 = math.tanh %107 : vector<2x32xf32>
    %109 = vector.extract_strided_slice %96 {offsets = [0, 64], sizes = [2, 32], strides = [1, 1]} : vector<2x128xf32> to vector<2x32xf32>
    %110 = math.tanh %109 : vector<2x32xf32>
    %111 = vector.extract_strided_slice %101 {offsets = [0, 32], sizes = [2, 32], strides = [1, 1]} : vector<2x128xf32> to vector<2x32xf32>
    %112 = arith.mulf %111, %77 : vector<2x32xf32>
    %113 = vector.extract_strided_slice %101 {offsets = [0, 0], sizes = [2, 32], strides = [1, 1]} : vector<2x128xf32> to vector<2x32xf32>
    %114 = arith.mulf %113, %108 : vector<2x32xf32>
    %115 = arith.addf %112, %114 : vector<2x32xf32>
    %116 = vector.extract_strided_slice %106 {offsets = [0, 32], sizes = [2, 32], strides = [1, 1]} : vector<2x128xf32> to vector<2x32xf32>
    %117 = arith.mulf %116, %82 : vector<2x32xf32>
    %118 = vector.extract_strided_slice %106 {offsets = [0, 0], sizes = [2, 32], strides = [1, 1]} : vector<2x128xf32> to vector<2x32xf32>
    %119 = arith.mulf %118, %110 : vector<2x32xf32>
    %120 = arith.addf %117, %119 : vector<2x32xf32>
    %121 = vector.extract_strided_slice %101 {offsets = [0, 96], sizes = [2, 32], strides = [1, 1]} : vector<2x128xf32> to vector<2x32xf32>
    %122 = math.tanh %115 : vector<2x32xf32>
    %123 = arith.mulf %121, %122 : vector<2x32xf32>
    %124 = vector.extract_strided_slice %106 {offsets = [0, 96], sizes = [2, 32], strides = [1, 1]} : vector<2x128xf32> to vector<2x32xf32>
    %125 = math.tanh %120 : vector<2x32xf32>
    %126 = arith.mulf %124, %125 : vector<2x32xf32>
    %127 = tpu.concatenate %123, %126 in 1 : vector<2x32xf32>, vector<2x32xf32> -> vector<2x64xf32>
    %cst_28 = arith.constant dense<0.000000e+00> : vector<2x256xf32>
    %128 = tpu.matmul %127, %8, %cst_28 {dimension_numbers = #tpu.dot_dimension_numbers<[1], [0], [0], [1], [0, 0, 1, 1], [], []>} : vector<2x64xf32>, vector<64x256xf32>, vector<2x256xf32> -> vector<2x256xf32>
    %c6 = arith.constant 6 : index
    %c0_29 = arith.constant 0 : index
    %129 = vector.load %arg7[%c6, %c0_29] : memref<16x256xf32, #tpu.memory_space<vmem>>, vector<2x128xf32>
    %130 = vector.extract_strided_slice %128 {offsets = [0, 0], sizes = [2, 128], strides = [1, 1]} : vector<2x256xf32> to vector<2x128xf32>
    %131 = arith.addf %129, %130 : vector<2x128xf32>
    %c8 = arith.constant 8 : index
    %c128_30 = arith.constant 128 : index
    %132 = vector.load %arg7[%c8, %c128_30] : memref<16x256xf32, #tpu.memory_space<vmem>>, vector<2x128xf32>
    %133 = vector.extract_strided_slice %128 {offsets = [0, 128], sizes = [2, 128], strides = [1, 1]} : vector<2x256xf32> to vector<2x128xf32>
    %134 = arith.addf %132, %133 : vector<2x128xf32>
    %135 = arith.negf %131 : vector<2x128xf32>
    %136 = math.exp %135 : vector<2x128xf32>
    %cst_31 = arith.constant 1.000000e+00 : f32
    %137 = vector.broadcast %cst_31 : f32 to vector<2x128xf32>
    %138 = arith.addf %137, %136 : vector<2x128xf32>
    %139 = arith.divf %137, %138 : vector<2x128xf32>
    %140 = arith.negf %134 : vector<2x128xf32>
    %141 = math.exp %140 : vector<2x128xf32>
    %cst_32 = arith.constant 1.000000e+00 : f32
    %142 = vector.broadcast %cst_32 : f32 to vector<2x128xf32>
    %143 = arith.addf %142, %141 : vector<2x128xf32>
    %144 = arith.divf %142, %143 : vector<2x128xf32>
    %145 = vector.extract_strided_slice %131 {offsets = [0, 64], sizes = [2, 32], strides = [1, 1]} : vector<2x128xf32> to vector<2x32xf32>
    %146 = math.tanh %145 : vector<2x32xf32>
    %147 = vector.extract_strided_slice %134 {offsets = [0, 64], sizes = [2, 32], strides = [1, 1]} : vector<2x128xf32> to vector<2x32xf32>
    %148 = math.tanh %147 : vector<2x32xf32>
    %149 = vector.extract_strided_slice %139 {offsets = [0, 32], sizes = [2, 32], strides = [1, 1]} : vector<2x128xf32> to vector<2x32xf32>
    %150 = arith.mulf %149, %115 : vector<2x32xf32>
    %151 = vector.extract_strided_slice %139 {offsets = [0, 0], sizes = [2, 32], strides = [1, 1]} : vector<2x128xf32> to vector<2x32xf32>
    %152 = arith.mulf %151, %146 : vector<2x32xf32>
    %153 = arith.addf %150, %152 : vector<2x32xf32>
    %154 = vector.extract_strided_slice %144 {offsets = [0, 32], sizes = [2, 32], strides = [1, 1]} : vector<2x128xf32> to vector<2x32xf32>
    %155 = arith.mulf %154, %120 : vector<2x32xf32>
    %156 = vector.extract_strided_slice %144 {offsets = [0, 0], sizes = [2, 32], strides = [1, 1]} : vector<2x128xf32> to vector<2x32xf32>
    %157 = arith.mulf %156, %148 : vector<2x32xf32>
    %158 = arith.addf %155, %157 : vector<2x32xf32>
    %159 = vector.extract_strided_slice %139 {offsets = [0, 96], sizes = [2, 32], strides = [1, 1]} : vector<2x128xf32> to vector<2x32xf32>
    %160 = math.tanh %153 : vector<2x32xf32>
    %161 = arith.mulf %159, %160 : vector<2x32xf32>
    %162 = vector.extract_strided_slice %144 {offsets = [0, 96], sizes = [2, 32], strides = [1, 1]} : vector<2x128xf32> to vector<2x32xf32>
    %163 = math.tanh %158 : vector<2x32xf32>
    %164 = arith.mulf %162, %163 : vector<2x32xf32>
    %165 = tpu.concatenate %161, %164 in 1 : vector<2x32xf32>, vector<2x32xf32> -> vector<2x64xf32>
    %cst_33 = arith.constant dense<0.000000e+00> : vector<2x256xf32>
    %166 = tpu.matmul %165, %8, %cst_33 {dimension_numbers = #tpu.dot_dimension_numbers<[1], [0], [0], [1], [0, 0, 1, 1], [], []>} : vector<2x64xf32>, vector<64x256xf32>, vector<2x256xf32> -> vector<2x256xf32>
    %c8_34 = arith.constant 8 : index
    %c0_35 = arith.constant 0 : index
    %167 = vector.load %arg7[%c8_34, %c0_35] : memref<16x256xf32, #tpu.memory_space<vmem>>, vector<2x128xf32>
    %168 = vector.extract_strided_slice %166 {offsets = [0, 0], sizes = [2, 128], strides = [1, 1]} : vector<2x256xf32> to vector<2x128xf32>
    %169 = arith.addf %167, %168 : vector<2x128xf32>
    %c6_36 = arith.constant 6 : index
    %c128_37 = arith.constant 128 : index
    %170 = vector.load %arg7[%c6_36, %c128_37] : memref<16x256xf32, #tpu.memory_space<vmem>>, vector<2x128xf32>
    %171 = vector.extract_strided_slice %166 {offsets = [0, 128], sizes = [2, 128], strides = [1, 1]} : vector<2x256xf32> to vector<2x128xf32>
    %172 = arith.addf %170, %171 : vector<2x128xf32>
    %173 = arith.negf %169 : vector<2x128xf32>
    %174 = math.exp %173 : vector<2x128xf32>
    %cst_38 = arith.constant 1.000000e+00 : f32
    %175 = vector.broadcast %cst_38 : f32 to vector<2x128xf32>
    %176 = arith.addf %175, %174 : vector<2x128xf32>
    %177 = arith.divf %175, %176 : vector<2x128xf32>
    %178 = arith.negf %172 : vector<2x128xf32>
    %179 = math.exp %178 : vector<2x128xf32>
    %cst_39 = arith.constant 1.000000e+00 : f32
    %180 = vector.broadcast %cst_39 : f32 to vector<2x128xf32>
    %181 = arith.addf %180, %179 : vector<2x128xf32>
    %182 = arith.divf %180, %181 : vector<2x128xf32>
    %183 = vector.extract_strided_slice %169 {offsets = [0, 64], sizes = [2, 32], strides = [1, 1]} : vector<2x128xf32> to vector<2x32xf32>
    %184 = math.tanh %183 : vector<2x32xf32>
    %185 = vector.extract_strided_slice %172 {offsets = [0, 64], sizes = [2, 32], strides = [1, 1]} : vector<2x128xf32> to vector<2x32xf32>
    %186 = math.tanh %185 : vector<2x32xf32>
    %187 = vector.extract_strided_slice %177 {offsets = [0, 32], sizes = [2, 32], strides = [1, 1]} : vector<2x128xf32> to vector<2x32xf32>
    %188 = arith.mulf %187, %153 : vector<2x32xf32>
    %189 = vector.extract_strided_slice %177 {offsets = [0, 0], sizes = [2, 32], strides = [1, 1]} : vector<2x128xf32> to vector<2x32xf32>
    %190 = arith.mulf %189, %184 : vector<2x32xf32>
    %191 = arith.addf %188, %190 : vector<2x32xf32>
    %192 = vector.extract_strided_slice %182 {offsets = [0, 32], sizes = [2, 32], strides = [1, 1]} : vector<2x128xf32> to vector<2x32xf32>
    %193 = arith.mulf %192, %158 : vector<2x32xf32>
    %194 = vector.extract_strided_slice %182 {offsets = [0, 0], sizes = [2, 32], strides = [1, 1]} : vector<2x128xf32> to vector<2x32xf32>
    %195 = arith.mulf %194, %186 : vector<2x32xf32>
    %196 = arith.addf %193, %195 : vector<2x32xf32>
    %197 = vector.extract_strided_slice %177 {offsets = [0, 96], sizes = [2, 32], strides = [1, 1]} : vector<2x128xf32> to vector<2x32xf32>
    %198 = math.tanh %191 : vector<2x32xf32>
    %199 = arith.mulf %197, %198 : vector<2x32xf32>
    %200 = vector.extract_strided_slice %182 {offsets = [0, 96], sizes = [2, 32], strides = [1, 1]} : vector<2x128xf32> to vector<2x32xf32>
    %201 = math.tanh %196 : vector<2x32xf32>
    %202 = arith.mulf %200, %201 : vector<2x32xf32>
    %203 = tpu.concatenate %199, %202 in 1 : vector<2x32xf32>, vector<2x32xf32> -> vector<2x64xf32>
    %cst_40 = arith.constant dense<0.000000e+00> : vector<2x256xf32>
    %204 = tpu.matmul %203, %8, %cst_40 {dimension_numbers = #tpu.dot_dimension_numbers<[1], [0], [0], [1], [0, 0, 1, 1], [], []>} : vector<2x64xf32>, vector<64x256xf32>, vector<2x256xf32> -> vector<2x256xf32>
    %c10_41 = arith.constant 10 : index
    %c0_42 = arith.constant 0 : index
    %205 = vector.load %arg7[%c10_41, %c0_42] : memref<16x256xf32, #tpu.memory_space<vmem>>, vector<2x128xf32>
    %206 = vector.extract_strided_slice %204 {offsets = [0, 0], sizes = [2, 128], strides = [1, 1]} : vector<2x256xf32> to vector<2x128xf32>
    %207 = arith.addf %205, %206 : vector<2x128xf32>
    %c4_43 = arith.constant 4 : index
    %c128_44 = arith.constant 128 : index
    %208 = vector.load %arg7[%c4_43, %c128_44] : memref<16x256xf32, #tpu.memory_space<vmem>>, vector<2x128xf32>
    %209 = vector.extract_strided_slice %204 {offsets = [0, 128], sizes = [2, 128], strides = [1, 1]} : vector<2x256xf32> to vector<2x128xf32>
    %210 = arith.addf %208, %209 : vector<2x128xf32>
    %211 = arith.negf %207 : vector<2x128xf32>
    %212 = math.exp %211 : vector<2x128xf32>
    %cst_45 = arith.constant 1.000000e+00 : f32
    %213 = vector.broadcast %cst_45 : f32 to vector<2x128xf32>
    %214 = arith.addf %213, %212 : vector<2x128xf32>
    %215 = arith.divf %213, %214 : vector<2x128xf32>
    %216 = arith.negf %210 : vector<2x128xf32>
    %217 = math.exp %216 : vector<2x128xf32>
    %cst_46 = arith.constant 1.000000e+00 : f32
    %218 = vector.broadcast %cst_46 : f32 to vector<2x128xf32>
    %219 = arith.addf %218, %217 : vector<2x128xf32>
    %220 = arith.divf %218, %219 : vector<2x128xf32>
    %221 = vector.extract_strided_slice %207 {offsets = [0, 64], sizes = [2, 32], strides = [1, 1]} : vector<2x128xf32> to vector<2x32xf32>
    %222 = math.tanh %221 : vector<2x32xf32>
    %223 = vector.extract_strided_slice %210 {offsets = [0, 64], sizes = [2, 32], strides = [1, 1]} : vector<2x128xf32> to vector<2x32xf32>
    %224 = math.tanh %223 : vector<2x32xf32>
    %225 = vector.extract_strided_slice %215 {offsets = [0, 32], sizes = [2, 32], strides = [1, 1]} : vector<2x128xf32> to vector<2x32xf32>
    %226 = arith.mulf %225, %191 : vector<2x32xf32>
    %227 = vector.extract_strided_slice %215 {offsets = [0, 0], sizes = [2, 32], strides = [1, 1]} : vector<2x128xf32> to vector<2x32xf32>
    %228 = arith.mulf %227, %222 : vector<2x32xf32>
    %229 = arith.addf %226, %228 : vector<2x32xf32>
    %230 = vector.extract_strided_slice %220 {offsets = [0, 32], sizes = [2, 32], strides = [1, 1]} : vector<2x128xf32> to vector<2x32xf32>
    %231 = arith.mulf %230, %196 : vector<2x32xf32>
    %232 = vector.extract_strided_slice %220 {offsets = [0, 0], sizes = [2, 32], strides = [1, 1]} : vector<2x128xf32> to vector<2x32xf32>
    %233 = arith.mulf %232, %224 : vector<2x32xf32>
    %234 = arith.addf %231, %233 : vector<2x32xf32>
    %235 = vector.extract_strided_slice %215 {offsets = [0, 96], sizes = [2, 32], strides = [1, 1]} : vector<2x128xf32> to vector<2x32xf32>
    %236 = math.tanh %229 : vector<2x32xf32>
    %237 = arith.mulf %235, %236 : vector<2x32xf32>
    %238 = vector.extract_strided_slice %220 {offsets = [0, 96], sizes = [2, 32], strides = [1, 1]} : vector<2x128xf32> to vector<2x32xf32>
    %239 = math.tanh %234 : vector<2x32xf32>
    %240 = arith.mulf %238, %239 : vector<2x32xf32>
    %241 = tpu.concatenate %237, %240 in 1 : vector<2x32xf32>, vector<2x32xf32> -> vector<2x64xf32>
    %cst_47 = arith.constant dense<0.000000e+00> : vector<2x256xf32>
    %242 = tpu.matmul %241, %8, %cst_47 {dimension_numbers = #tpu.dot_dimension_numbers<[1], [0], [0], [1], [0, 0, 1, 1], [], []>} : vector<2x64xf32>, vector<64x256xf32>, vector<2x256xf32> -> vector<2x256xf32>
    %c12_48 = arith.constant 12 : index
    %c0_49 = arith.constant 0 : index
    %243 = vector.load %arg7[%c12_48, %c0_49] : memref<16x256xf32, #tpu.memory_space<vmem>>, vector<2x128xf32>
    %244 = vector.extract_strided_slice %242 {offsets = [0, 0], sizes = [2, 128], strides = [1, 1]} : vector<2x256xf32> to vector<2x128xf32>
    %245 = arith.addf %243, %244 : vector<2x128xf32>
    %c2_50 = arith.constant 2 : index
    %c128_51 = arith.constant 128 : index
    %246 = vector.load %arg7[%c2_50, %c128_51] : memref<16x256xf32, #tpu.memory_space<vmem>>, vector<2x128xf32>
    %247 = vector.extract_strided_slice %242 {offsets = [0, 128], sizes = [2, 128], strides = [1, 1]} : vector<2x256xf32> to vector<2x128xf32>
    %248 = arith.addf %246, %247 : vector<2x128xf32>
    %249 = arith.negf %245 : vector<2x128xf32>
    %250 = math.exp %249 : vector<2x128xf32>
    %cst_52 = arith.constant 1.000000e+00 : f32
    %251 = vector.broadcast %cst_52 : f32 to vector<2x128xf32>
    %252 = arith.addf %251, %250 : vector<2x128xf32>
    %253 = arith.divf %251, %252 : vector<2x128xf32>
    %254 = arith.negf %248 : vector<2x128xf32>
    %255 = math.exp %254 : vector<2x128xf32>
    %cst_53 = arith.constant 1.000000e+00 : f32
    %256 = vector.broadcast %cst_53 : f32 to vector<2x128xf32>
    %257 = arith.addf %256, %255 : vector<2x128xf32>
    %258 = arith.divf %256, %257 : vector<2x128xf32>
    %259 = vector.extract_strided_slice %245 {offsets = [0, 64], sizes = [2, 32], strides = [1, 1]} : vector<2x128xf32> to vector<2x32xf32>
    %260 = math.tanh %259 : vector<2x32xf32>
    %261 = vector.extract_strided_slice %248 {offsets = [0, 64], sizes = [2, 32], strides = [1, 1]} : vector<2x128xf32> to vector<2x32xf32>
    %262 = math.tanh %261 : vector<2x32xf32>
    %263 = vector.extract_strided_slice %253 {offsets = [0, 32], sizes = [2, 32], strides = [1, 1]} : vector<2x128xf32> to vector<2x32xf32>
    %264 = arith.mulf %263, %229 : vector<2x32xf32>
    %265 = vector.extract_strided_slice %253 {offsets = [0, 0], sizes = [2, 32], strides = [1, 1]} : vector<2x128xf32> to vector<2x32xf32>
    %266 = arith.mulf %265, %260 : vector<2x32xf32>
    %267 = arith.addf %264, %266 : vector<2x32xf32>
    %268 = vector.extract_strided_slice %258 {offsets = [0, 32], sizes = [2, 32], strides = [1, 1]} : vector<2x128xf32> to vector<2x32xf32>
    %269 = arith.mulf %268, %234 : vector<2x32xf32>
    %270 = vector.extract_strided_slice %258 {offsets = [0, 0], sizes = [2, 32], strides = [1, 1]} : vector<2x128xf32> to vector<2x32xf32>
    %271 = arith.mulf %270, %262 : vector<2x32xf32>
    %272 = arith.addf %269, %271 : vector<2x32xf32>
    %273 = vector.extract_strided_slice %253 {offsets = [0, 96], sizes = [2, 32], strides = [1, 1]} : vector<2x128xf32> to vector<2x32xf32>
    %274 = math.tanh %267 : vector<2x32xf32>
    %275 = arith.mulf %273, %274 : vector<2x32xf32>
    %276 = vector.extract_strided_slice %258 {offsets = [0, 96], sizes = [2, 32], strides = [1, 1]} : vector<2x128xf32> to vector<2x32xf32>
    %277 = math.tanh %272 : vector<2x32xf32>
    %278 = arith.mulf %276, %277 : vector<2x32xf32>
    %279 = tpu.concatenate %275, %278 in 1 : vector<2x32xf32>, vector<2x32xf32> -> vector<2x64xf32>
    %cst_54 = arith.constant dense<0.000000e+00> : vector<2x256xf32>
    %280 = tpu.matmul %279, %8, %cst_54 {dimension_numbers = #tpu.dot_dimension_numbers<[1], [0], [0], [1], [0, 0, 1, 1], [], []>} : vector<2x64xf32>, vector<64x256xf32>, vector<2x256xf32> -> vector<2x256xf32>
    %c14_55 = arith.constant 14 : index
    %c0_56 = arith.constant 0 : index
    %281 = vector.load %arg7[%c14_55, %c0_56] : memref<16x256xf32, #tpu.memory_space<vmem>>, vector<2x128xf32>
    %282 = vector.extract_strided_slice %280 {offsets = [0, 0], sizes = [2, 128], strides = [1, 1]} : vector<2x256xf32> to vector<2x128xf32>
    %283 = arith.addf %281, %282 : vector<2x128xf32>
    %c0_57 = arith.constant 0 : index
    %c128_58 = arith.constant 128 : index
    %284 = vector.load %arg7[%c0_57, %c128_58] : memref<16x256xf32, #tpu.memory_space<vmem>>, vector<2x128xf32>
    %285 = vector.extract_strided_slice %280 {offsets = [0, 128], sizes = [2, 128], strides = [1, 1]} : vector<2x256xf32> to vector<2x128xf32>
    %286 = arith.addf %284, %285 : vector<2x128xf32>
    %287 = arith.negf %283 : vector<2x128xf32>
    %288 = math.exp %287 : vector<2x128xf32>
    %cst_59 = arith.constant 1.000000e+00 : f32
    %289 = vector.broadcast %cst_59 : f32 to vector<2x128xf32>
    %290 = arith.addf %289, %288 : vector<2x128xf32>
    %291 = arith.divf %289, %290 : vector<2x128xf32>
    %292 = arith.negf %286 : vector<2x128xf32>
    %293 = math.exp %292 : vector<2x128xf32>
    %cst_60 = arith.constant 1.000000e+00 : f32
    %294 = vector.broadcast %cst_60 : f32 to vector<2x128xf32>
    %295 = arith.addf %294, %293 : vector<2x128xf32>
    %296 = arith.divf %294, %295 : vector<2x128xf32>
    %297 = vector.extract_strided_slice %283 {offsets = [0, 64], sizes = [2, 32], strides = [1, 1]} : vector<2x128xf32> to vector<2x32xf32>
    %298 = math.tanh %297 : vector<2x32xf32>
    %299 = vector.extract_strided_slice %286 {offsets = [0, 64], sizes = [2, 32], strides = [1, 1]} : vector<2x128xf32> to vector<2x32xf32>
    %300 = math.tanh %299 : vector<2x32xf32>
    %301 = vector.extract_strided_slice %291 {offsets = [0, 32], sizes = [2, 32], strides = [1, 1]} : vector<2x128xf32> to vector<2x32xf32>
    %302 = arith.mulf %301, %267 : vector<2x32xf32>
    %303 = vector.extract_strided_slice %291 {offsets = [0, 0], sizes = [2, 32], strides = [1, 1]} : vector<2x128xf32> to vector<2x32xf32>
    %304 = arith.mulf %303, %298 : vector<2x32xf32>
    %305 = arith.addf %302, %304 : vector<2x32xf32>
    %306 = vector.extract_strided_slice %296 {offsets = [0, 32], sizes = [2, 32], strides = [1, 1]} : vector<2x128xf32> to vector<2x32xf32>
    %307 = arith.mulf %306, %272 : vector<2x32xf32>
    %308 = vector.extract_strided_slice %296 {offsets = [0, 0], sizes = [2, 32], strides = [1, 1]} : vector<2x128xf32> to vector<2x32xf32>
    %309 = arith.mulf %308, %300 : vector<2x32xf32>
    %310 = arith.addf %307, %309 : vector<2x32xf32>
    %311 = vector.extract_strided_slice %291 {offsets = [0, 96], sizes = [2, 32], strides = [1, 1]} : vector<2x128xf32> to vector<2x32xf32>
    %312 = math.tanh %305 : vector<2x32xf32>
    %313 = arith.mulf %311, %312 : vector<2x32xf32>
    %314 = vector.extract_strided_slice %296 {offsets = [0, 96], sizes = [2, 32], strides = [1, 1]} : vector<2x128xf32> to vector<2x32xf32>
    %315 = math.tanh %310 : vector<2x32xf32>
    %316 = arith.mulf %314, %315 : vector<2x32xf32>
    %317 = tpu.concatenate %47, %85, %123, %161, %199, %237, %275, %313 in 0 : vector<2x32xf32>, vector<2x32xf32>, vector<2x32xf32>, vector<2x32xf32>, vector<2x32xf32>, vector<2x32xf32>, vector<2x32xf32>, vector<2x32xf32> -> vector<16x32xf32>
    %318 = tpu.concatenate %316, %278, %240, %202, %164, %126, %88, %50 in 0 : vector<2x32xf32>, vector<2x32xf32>, vector<2x32xf32>, vector<2x32xf32>, vector<2x32xf32>, vector<2x32xf32>, vector<2x32xf32>, vector<2x32xf32> -> vector<16x32xf32>
    %319 = tpu.concatenate %317, %318 in 1 : vector<16x32xf32>, vector<16x32xf32> -> vector<16x64xf32>
    %c0_61 = arith.constant 0 : index
    %c0_62 = arith.constant 0 : index
    %320 = vector.load %arg5[%c0_61, %c0_62] : memref<16x64xf32, #tpu.memory_space<vmem>>, vector<16x64xf32>
    tpu.vector_store %arg5[%c0_61, %c0_62], %319 {strides = array<i32>} : memref<16x64xf32, #tpu.memory_space<vmem>>, vector<16x64xf32>,
    %321 = tpu.concatenate %313, %316 in 1 : vector<2x32xf32>, vector<2x32xf32> -> vector<2x64xf32>
    %c0_63 = arith.constant 0 : index
    %c0_64 = arith.constant 0 : index
    %322 = vector.load %arg6[%c0_63, %c0_64] : memref<2x64xf32, #tpu.memory_space<vmem>>, vector<2x64xf32>
    tpu.vector_store %arg6[%c0_63, %c0_64], %321 {strides = array<i32>} : memref<2x64xf32, #tpu.memory_space<vmem>>, vector<2x64xf32>,
    return
  }
  func.func @transform_0(%arg0: i32) -> (i32, i32) {
    %c0_i32 = arith.constant 0 : i32
    %c0_i32_0 = arith.constant 0 : i32
    %c0_i32_1 = arith.constant 0 : i32
    return %c0_i32, %c0_i32_0 : i32, i32
  }
  func.func @transform_1(%arg0: i32) -> (i32, i32) {
    %c0_i32 = arith.constant 0 : i32
    %c0_i32_0 = arith.constant 0 : i32
    %c0_i32_1 = arith.constant 0 : i32
    return %c0_i32, %c0_i32_0 : i32, i32
  }
  func.func @transform_2(%arg0: i32) -> (i32, i32) {
    %c0_i32 = arith.constant 0 : i32
    %c0_i32_0 = arith.constant 0 : i32
    %c0_i32_1 = arith.constant 0 : i32
    return %c0_i32, %c0_i32_0 : i32, i32
  }
  func.func @transform_3(%arg0: i32) -> (i32, i32) {
    %c0_i32 = arith.constant 0 : i32
    %c0_i32_0 = arith.constant 0 : i32
    %c0_i32_1 = arith.constant 0 : i32
    return %c0_i32, %c0_i32_0 : i32, i32
  }
  func.func @transform_4(%arg0: i32) -> (i32, i32) {
    %c0_i32 = arith.constant 0 : i32
    %c0_i32_0 = arith.constant 0 : i32
    %c0_i32_1 = arith.constant 0 : i32
    return %c0_i32, %c0_i32_0 : i32, i32
  }
  func.func @transform_5(%arg0: i32) -> (i32, i32) {
    %c0_i32 = arith.constant 0 : i32
    %c0_i32_0 = arith.constant 0 : i32
    %c0_i32_1 = arith.constant 0 : i32
    return %c0_i32, %c0_i32_0 : i32, i32
  }
}

</mosaic_0001>

<llo_original>
// kernel: model_forward.5
$region0: #{model_forward.5}
  #allocation0 [shape = 'u32[]', space=smem, size = 0x4, offset = 0x4, fixed_abs, tag = 'smem constant byte address 0x4 - core index']
  #allocation1 [shape = 'u32[144,128]{1,0:T(1,128)}', space=vmem, size = 0x12000, scoped, tag = 'internal scratch']
  %s0 = inlined_call_operand.vmem [shape: f32[16,64], index: 0, kind: input, shape index: {}]
  %s1 = inlined_call_operand.vmem [shape: bf16[64,256], index: 1, kind: input, shape index: {}]
  %s2 = inlined_call_operand.vmem [shape: f32[1,256], index: 2, kind: input, shape index: {}]
  %s3 = inlined_call_operand.vmem [shape: f32[2,16,128], index: 3, kind: output, shape index: {}]
  %s4 = sld [smem:[#allocation0]]
  $region22: #{model_forward.5} parent=0
    _
  %s6 = ssub.s32 1, %s4
  %s7 = scalar_select 0, %s6, %s4
  // Predicated region
  $region2: #{model_forward.5} parent=0 // pred_check
    _
  $region3: #{model_forward.5} parent=0 // pred_check_branch
    %9 = sbr.rel (0) target = $region5
  $region4: #{model_forward.5} parent=0 // pred_region
    _
  $region5: #{model_forward.5} parent=0 // pred_fallthru
    _
  // Predicated region
  $region6: #{model_forward.5} parent=0 // pred_check
    _
  $region7: #{model_forward.5} parent=0 // pred_check_branch
    %11 = sbr.rel (0) target = $region9
  $region8: #{model_forward.5} parent=0 // pred_region
    _
  $region9: #{model_forward.5} parent=0 // pred_fallthru
    _
  // Predicated region
  $region10: #{model_forward.5} parent=0 // pred_check
    _
  $region11: #{model_forward.5} parent=0 // pred_check_branch
    %13 = sbr.rel (0) target = $region13
  $region12: #{model_forward.5} parent=0 // pred_region
    _
  $region13: #{model_forward.5} parent=0 // pred_fallthru
    _
  %v15 = vld [vmem:[%s0] sm:$0xff]
  %v16 = vld [vmem:[%s0 + $0x8] sm:$0xff]
  %v17 = vpack.c.bf16 %v16, %v15
  %v18 = vld [vmem:[%s1] sm:$0xff]
  %v19 = vld [vmem:[%s1 + $0x8] sm:$0xff]
  %v20 = vld [vmem:[%s1 + $0x10] sm:$0xff]
  %v21 = vld [vmem:[%s1 + $0x18] sm:$0xff]
  %v22 = vld [vmem:[%s1 + $0x20] sm:$0xff]
  %v23 = vld [vmem:[%s1 + $0x28] sm:$0xff]
  %v24 = vld [vmem:[%s1 + $0x30] sm:$0xff]
  %v25 = vld [vmem:[%s1 + $0x38] sm:$0xff]
  %v26 = vld [vmem:[%s2] sm:$0x3]
  %v28 = vlaneseq
  %v29 = vshrl.u32 %v28, 7
  %v30 = vsub.s32 0, %v29
  %v31 = vrot.slane %v26, %v30
  %v32 = vlaneseq
  %v33 = vshrl.u32 %v32, 7
  %v34 = vsub.s32 1, %v33
  %v35 = vrot.slane %v26, %v34
  %v46 = vunpack.c.l.b16 %v18
  %v47 = vunpack.c.h.b16 %v18
  %v48 = vunpack.c.l.b16 %v19
  %v49 = vunpack.c.h.b16 %v19
  %v50 = vunpack.c.l.b16 %v20
  %v51 = vunpack.c.h.b16 %v20
  %v52 = vunpack.c.l.b16 %v21
  %v53 = vunpack.c.h.b16 %v21
  %v54 = vunpack.c.l.b16 %v22
  %v55 = vunpack.c.h.b16 %v22
  %v56 = vunpack.c.l.b16 %v23
  %v57 = vunpack.c.h.b16 %v23
  %v58 = vunpack.c.l.b16 %v24
  %v59 = vunpack.c.h.b16 %v24
  %v60 = vunpack.c.l.b16 %v25
  %v61 = vunpack.c.h.b16 %v25
  %v62 = vpack.c.b16 %v48, %v46
  %v63 = vpack.c.b16 %v49, %v47
  %v64 = vpack.c.b16 %v52, %v50
  %v65 = vpack.c.b16 %v53, %v51
  %v66 = vpack.c.b16 %v56, %v54
  %v67 = vpack.c.b16 %v57, %v55
  %v68 = vpack.c.b16 %v60, %v58
  %v69 = vpack.c.b16 %v61, %v59
  %vm78 = vcmask 523264
  %v80 = vsel %vm78, %v17, 0
  %82 = vmatprep.subr.bf16.mxu0 0
  %83 = vmatpush1.bf16.msra.mxu0 0
  %84 = vmatprep.subr.bf16.mxu0 0
  %85 = vmatpush1.bf16.msra.mxu0 0
  %86 = vmatprep.subr.bf16.mxu0 0
  %87 = vmatpush1.bf16.msra.mxu0 0
  %88 = vmatprep.subr.bf16.mxu0 0
  %89 = vmatpush1.bf16.msra.mxu0 0
  %90 = vmatprep.subr.bf16.mxu0 %v69
  %91 = vmatpush1.bf16.msra.mxu0 %v68
  %92 = vmatprep.subr.bf16.mxu0 %v67
  %93 = vmatpush1.bf16.msra.mxu0 %v66
  %94 = vmatprep.subr.bf16.mxu0 %v65
  %95 = vmatpush1.bf16.msra.mxu0 %v64
  %96 = vmatprep.subr.bf16.mxu0 %v63
  %97 = vmatpush1.bf16.msra.mxu0 %v62
  %98 = vmatprep.subr.bf16.mxu0 0
  %99 = vmatpush2.bf16.msra.mxu0 0
  %100 = vmatprep.subr.bf16.mxu0 0
  %101 = vmatpush2.bf16.msra.mxu0 0
  %102 = vmatprep.subr.bf16.mxu0 0
  %103 = vmatpush2.bf16.msra.mxu0 0
  %104 = vmatprep.subr.bf16.mxu0 0
  %105 = vmatpush2.bf16.msra.mxu0 0
  %106 = vmatprep.subr.bf16.mxu0 0
  %107 = vmatpush2.bf16.msra.mxu0 0
  %108 = vmatprep.subr.bf16.mxu0 0
  %109 = vmatpush2.bf16.msra.mxu0 0
  %110 = vmatprep.subr.bf16.mxu0 0
  %111 = vmatpush2.bf16.msra.mxu0 0
  %112 = vmatprep.subr.bf16.mxu0 0
  %113 = vmatpush2.bf16.msra.mxu0 0
  %114 = vmatprep.mubr.bf16.mxu0 0
  %115 = vmatmul.mubr.bf16.gmra.mxu0 %v80
  %v116 = vpop.f32.mrf.mxu0
  %v117 = vadd.f32 %v31, %v116
  %v118 = vpop.f32.mrf.mxu0
  %v119 = vadd.f32 %v35, %v118
  %v120 = vpop.f32.mrf.mxu0
  %v121 = vadd.f32 %v31, %v120
  %v122 = vpop.f32.mrf.mxu0
  %v123 = vadd.f32 %v35, %v122
  %124 = vdwg.mxu0
  %125 = vmax.xlane.f32.xlu0 %v117
  %v126 = vpop.xlane.xlu0 %125
  %127 = vmax.xlane.f32.xlu0 %v121
  %v128 = vpop.xlane.xlu0 %127
  %v129 = vsub.f32 %v117, %v126
  %v130 = vsub.f32 %v121, %v128
  %v131 = vmul.f32 %v129, 1.442695
  %v132 = vpow.pop %v131
  %v133 = vmul.f32 %v130, 1.442695
  %v134 = vpow.pop %v133
  %135 = vadd.xlane.f32.xlu0 %v132
  %v136 = vpop.xlane.xlu0 %135
  %137 = vadd.xlane.f32.xlu0 %v134
  %v138 = vpop.xlane.xlu0 %137
  %v139 = vlog2.pop %v136
  %v140 = vmul.f32 %v139, 0.6931472
  %v141 = vlog2.pop %v138
  %v142 = vmul.f32 %v141, 0.6931472
  %v143 = vsub.f32 %v129, %v140
  %v144 = vsub.f32 %v130, %v142
  %145 = vst [vmem:[%s3] sm:$0xff] %v143
  %146 = vst [vmem:[%s3 + $0x8] sm:$0xff] %v144
  %147 = vmax.xlane.f32.xlu0 %v119
  %v148 = vpop.xlane.xlu0 %147
  %149 = vmax.xlane.f32.xlu0 %v123
  %v150 = vpop.xlane.xlu0 %149
  %v151 = vsub.f32 %v119, %v148
  %v152 = vsub.f32 %v123, %v150
  %v153 = vmul.f32 %v151, 1.442695
  %v154 = vpow.pop %v153
  %v155 = vmul.f32 %v152, 1.442695
  %v156 = vpow.pop %v155
  %157 = vadd.xlane.f32.xlu0 %v154
  %v158 = vpop.xlane.xlu0 %157
  %159 = vadd.xlane.f32.xlu0 %v156
  %v160 = vpop.xlane.xlu0 %159
  %v161 = vlog2.pop %v158
  %v162 = vmul.f32 %v161, 0.6931472
  %v163 = vlog2.pop %v160
  %v164 = vmul.f32 %v163, 0.6931472
  %v165 = vsub.f32 %v151, %v162
  %v166 = vsub.f32 %v152, %v164
  %s167 = scalar_lea.vmem %s3, 16
  %168 = vst [vmem:[%s167] sm:$0xff] %v165
  %169 = vst [vmem:[%s167 + $0x8] sm:$0xff] %v166
  // Predicated region
  $region14: #{model_forward.5} parent=0 // pred_check
    _
  $region15: #{model_forward.5} parent=0 // pred_check_branch
    %171 = sbr.rel (0) target = $region17
  $region16: #{model_forward.5} parent=0 // pred_region
    _
  $region17: #{model_forward.5} parent=0 // pred_fallthru
    _
  // Predicated region
  $region18: #{model_forward.5} parent=0 // pred_check
    _
  $region19: #{model_forward.5} parent=0 // pred_check_branch
    %173 = sbr.rel (0) target = $region21
  $region20: #{model_forward.5} parent=0 // pred_region
    _
  $region21: #{model_forward.5} parent=0 // pred_fallthru
    _

// kernel: model_forward.4
$region0: #{model_forward.4}
  #allocation0 [shape = 'u32[]', space=smem, size = 0x4, offset = 0x4, fixed_abs, tag = 'smem constant byte address 0x4 - core index']
  #allocation1 [shape = 'u32[144,128]{1,0:T(1,128)}', space=vmem, size = 0x12000, scoped, tag = 'internal scratch']
  #allocation2 [shape = 'f32[16,256]{1,0:T(8,128)}', space=vmem, size = 0x4000, scoped, tag = 'scratch operand']
  %s0 = inlined_call_operand.vmem [shape: f32[16,48], index: 0, kind: input, shape index: {}]
  %s1 = inlined_call_operand.vmem [shape: bf16[48,256], index: 1, kind: input, shape index: {}]
  %s2 = inlined_call_operand.vmem [shape: f32[64,256], index: 2, kind: input, shape index: {}]
  %s3 = inlined_call_operand.vmem [shape: f32[1,256], index: 3, kind: input, shape index: {}]
  %s4 = inlined_call_operand.vmem [shape: f32[16,64], index: 4, kind: output, shape index: {0}]
  %s5 = inlined_call_operand.hbm [shape: f32[2,64], index: 5, kind: output, shape index: {1}]
  %6 = xla_tuple %s4, %s5
  %s7 = sld [smem:[#allocation0]]
  $region34: #{model_forward.4} parent=0
    _
  %s9 = ssub.s32 1, %s7
  %s10 = scalar_select 0, %s9, %s7
  $region1: #{model_forward.4} parent=0
    #allocation3 [shape = 'u8[1024]{0}', space=vmem, size = 0x400, scoped, tag = 'output window, operand 1, single buffered']
    #allocation4 [shape = 's32[1]{0}', space=sflag, size = 0x4, scoped, tag = 'scoped memory for model_forward.4']
    %11 = vsyncpa [#allocation4], 0
    // Predicated region
    $region2: #{model_forward.4} parent=1 // pred_check
      _
    $region3: #{model_forward.4} parent=1 // pred_check_branch
      %13 = sbr.rel (0) target = $region5
    $region4: #{model_forward.4} parent=1 // pred_region
      _
    $region5: #{model_forward.4} parent=1 // pred_fallthru
      _
    // Predicated region
    $region6: #{model_forward.4} parent=1 // pred_check
      _
    $region7: #{model_forward.4} parent=1 // pred_check_branch
      %15 = sbr.rel (0) target = $region9
    $region8: #{model_forward.4} parent=1 // pred_region
      _
    $region9: #{model_forward.4} parent=1 // pred_fallthru
      _
    // Predicated region
    $region10: #{model_forward.4} parent=1 // pred_check
      _
    $region11: #{model_forward.4} parent=1 // pred_check_branch
      %17 = sbr.rel (0) target = $region13
    $region12: #{model_forward.4} parent=1 // pred_region
      _
    $region13: #{model_forward.4} parent=1 // pred_fallthru
      _
    // Predicated region
    $region14: #{model_forward.4} parent=1 // pred_check
      _
    $region15: #{model_forward.4} parent=1 // pred_check_branch
      %19 = sbr.rel (0) target = $region17
    $region16: #{model_forward.4} parent=1 // pred_region
      _
    $region17: #{model_forward.4} parent=1 // pred_fallthru
      _
    %v21 = vld [vmem:[%s0] sm:$0xff]
    %v22 = vld [vmem:[%s0 + $0x8] sm:$0xff]
    %v23 = vpack.c.bf16 %v22, %v21
    %v24 = vld [vmem:[%s1] sm:$0xff]
    %v25 = vld [vmem:[%s1 + $0x8] sm:$0xff]
    %v26 = vld [vmem:[%s1 + $0x10] sm:$0xff]
    %v27 = vld [vmem:[%s1 + $0x18] sm:$0xff]
    %v28 = vld [vmem:[%s1 + $0x20] sm:$0xff]
    %v29 = vld [vmem:[%s1 + $0x28] sm:$0xff]
    %v30 = vld [vmem:[%s3] sm:$0x3]
    %v32 = vlaneseq
    %v33 = vshrl.u32 %v32, 7
    %v34 = vsub.s32 0, %v33
    %v35 = vrot.slane %v30, %v34
    %v36 = vlaneseq
    %v37 = vshrl.u32 %v36, 7
    %v38 = vsub.s32 1, %v37
    %v39 = vrot.slane %v30, %v38
    %v48 = vunpack.c.l.b16 %v24
    %v49 = vunpack.c.h.b16 %v24
    %v50 = vunpack.c.l.b16 %v25
    %v51 = vunpack.c.h.b16 %v25
    %v52 = vunpack.c.l.b16 %v26
    %v53 = vunpack.c.h.b16 %v26
    %v54 = vunpack.c.l.b16 %v27
    %v55 = vunpack.c.h.b16 %v27
    %v56 = vunpack.c.l.b16 %v28
    %v57 = vunpack.c.h.b16 %v28
    %v58 = vunpack.c.l.b16 %v29
    %v59 = vunpack.c.h.b16 %v29
    %v60 = vpack.c.b16 %v50, %v48
    %v61 = vpack.c.b16 %v51, %v49
    %v62 = vpack.c.b16 %v54, %v52
    %v63 = vpack.c.b16 %v55, %v53
    %v64 = vpack.c.b16 %v58, %v56
    %v65 = vpack.c.b16 %v59, %v57
    %vm72 = vcmask 392192
    %v74 = vsel %vm72, %v23, 0
    %76 = vmatprep.subr.bf16.mxu0 0
    %77 = vmatpush1.bf16.msra.mxu0 0
    %78 = vmatprep.subr.bf16.mxu0 0
    %79 = vmatpush1.bf16.msra.mxu0 0
    %80 = vmatprep.subr.bf16.mxu0 0
    %81 = vmatpush1.bf16.msra.mxu0 0
    %82 = vmatprep.subr.bf16.mxu0 0
    %83 = vmatpush1.bf16.msra.mxu0 0
    %84 = vmatprep.subr.bf16.mxu0 0
    %85 = vmatpush1.bf16.msra.mxu0 0
    %86 = vmatprep.subr.bf16.mxu0 %v65
    %87 = vmatpush1.bf16.msra.mxu0 %v64
    %88 = vmatprep.subr.bf16.mxu0 %v63
    %89 = vmatpush1.bf16.msra.mxu0 %v62
    %90 = vmatprep.subr.bf16.mxu0 %v61
    %91 = vmatpush1.bf16.msra.mxu0 %v60
    %92 = vmatprep.subr.bf16.mxu0 0
    %93 = vmatpush2.bf16.msra.mxu0 0
    %94 = vmatprep.subr.bf16.mxu0 0
    %95 = vmatpush2.bf16.msra.mxu0 0
    %96 = vmatprep.subr.bf16.mxu0 0
    %97 = vmatpush2.bf16.msra.mxu0 0
    %98 = vmatprep.subr.bf16.mxu0 0
    %99 = vmatpush2.bf16.msra.mxu0 0
    %100 = vmatprep.subr.bf16.mxu0 0
    %101 = vmatpush2.bf16.msra.mxu0 0
    %102 = vmatprep.subr.bf16.mxu0 0
    %103 = vmatpush2.bf16.msra.mxu0 0
    %104 = vmatprep.subr.bf16.mxu0 0
    %105 = vmatpush2.bf16.msra.mxu0 0
    %106 = vmatprep.subr.bf16.mxu0 0
    %107 = vmatpush2.bf16.msra.mxu0 0
    %108 = vmatprep.mubr.bf16.mxu0 0
    %109 = vmatmul.mubr.bf16.gmra.mxu0 %v74
    %v110 = vpop.f32.mrf.mxu0
    %v111 = vadd.f32 %v35, %v110
    %v112 = vpop.f32.mrf.mxu0
    %v113 = vadd.f32 %v39, %v112
    %v114 = vpop.f32.mrf.mxu0
    %v115 = vadd.f32 %v35, %v114
    %v116 = vpop.f32.mrf.mxu0
    %v117 = vadd.f32 %v39, %v116
    %118 = vdwg.mxu0
    %119 = vst [vmem:[#allocation2] sm:$0xff] %v111
    %120 = vst [vmem:[#allocation2 + $0x8] sm:$0xff] %v113
    %121 = vst [vmem:[#allocation2 + $0x10] sm:$0xff] %v115
    %122 = vst [vmem:[#allocation2 + $0x18] sm:$0xff] %v117
    %v123 = vld [vmem:[%s2] sm:$0xff]
    %v124 = vld [vmem:[%s2 + $0x8] sm:$0xff]
    %v125 = vld [vmem:[%s2 + $0x10] sm:$0xff]
    %v126 = vld [vmem:[%s2 + $0x18] sm:$0xff]
    %v127 = vld [vmem:[%s2 + $0x20] sm:$0xff]
    %v128 = vld [vmem:[%s2 + $0x28] sm:$0xff]
    %v129 = vld [vmem:[%s2 + $0x30] sm:$0xff]
    %v130 = vld [vmem:[%s2 + $0x38] sm:$0xff]
    %v131 = vld [vmem:[%s2 + $0x40] sm:$0xff]
    %v132 = vld [vmem:[%s2 + $0x48] sm:$0xff]
    %v133 = vld [vmem:[%s2 + $0x50] sm:$0xff]
    %v134 = vld [vmem:[%s2 + $0x58] sm:$0xff]
    %v135 = vld [vmem:[%s2 + $0x60] sm:$0xff]
    %v136 = vld [vmem:[%s2 + $0x68] sm:$0xff]
    %v137 = vld [vmem:[%s2 + $0x70] sm:$0xff]
    %v138 = vld [vmem:[%s2 + $0x78] sm:$0xff]
    %vm139 = vcmask 523264
    %v141 = vsel %vm139, 0.0, 0
    %143 = vmatprep.subr.mxu0 0.0
    %144 = vmatpush1.msra.mxu0 0.0
    %145 = vmatprep.subr.mxu0 0.0
    %146 = vmatpush1.msra.mxu0 0.0
    %147 = vmatprep.subr.mxu0 0.0
    %148 = vmatpush1.msra.mxu0 0.0
    %149 = vmatprep.subr.mxu0 0.0
    %150 = vmatpush1.msra.mxu0 0.0
    %151 = vmatprep.subr.mxu0 0.0
    %152 = vmatpush1.msra.mxu0 0.0
    %153 = vmatprep.subr.mxu0 0.0
    %154 = vmatpush1.msra.mxu0 0.0
    %155 = vmatprep.subr.mxu0 0.0
    %156 = vmatpush1.msra.mxu0 0.0
    %157 = vmatprep.subr.mxu0 0.0
    %158 = vmatpush1.msra.mxu0 0.0
    %159 = vmatprep.subr.mxu0 %v138
    %160 = vmatpush1.msra.mxu0 %v137
    %161 = vmatprep.subr.mxu0 %v136
    %162 = vmatpush1.msra.mxu0 %v135
    %163 = vmatprep.subr.mxu0 %v134
    %164 = vmatpush1.msra.mxu0 %v133
    %165 = vmatprep.subr.mxu0 %v132
    %166 = vmatpush1.msra.mxu0 %v131
    %167 = vmatprep.subr.mxu0 %v130
    %168 = vmatpush1.msra.mxu0 %v129
    %169 = vmatprep.subr.mxu0 %v128
    %170 = vmatpush1.msra.mxu0 %v127
    %171 = vmatprep.subr.mxu0 %v126
    %172 = vmatpush1.msra.mxu0 %v125
    %173 = vmatprep.subr.mxu0 %v124
    %174 = vmatpush1.msra.mxu0 %v123
    %175 = vmatprep.subr.mxu0 0.0
    %176 = vmatpush2.msra.mxu0 0.0
    %177 = vmatprep.subr.mxu0 0.0
    %178 = vmatpush2.msra.mxu0 0.0
    %179 = vmatprep.subr.mxu0 0.0
    %180 = vmatpush2.msra.mxu0 0.0
    %181 = vmatprep.subr.mxu0 0.0
    %182 = vmatpush2.msra.mxu0 0.0
    %183 = vmatprep.subr.mxu0 0.0
    %184 = vmatpush2.msra.mxu0 0.0
    %185 = vmatprep.subr.mxu0 0.0
    %186 = vmatpush2.msra.mxu0 0.0
    %187 = vmatprep.subr.mxu0 0.0
    %188 = vmatpush2.msra.mxu0 0.0
    %189 = vmatprep.subr.mxu0 0.0
    %190 = vmatpush2.msra.mxu0 0.0
    %191 = vmatprep.subr.mxu0 0.0
    %192 = vmatpush2.msra.mxu0 0.0
    %193 = vmatprep.subr.mxu0 0.0
    %194 = vmatpush2.msra.mxu0 0.0
    %195 = vmatprep.subr.mxu0 0.0
    %196 = vmatpush2.msra.mxu0 0.0
    %197 = vmatprep.subr.mxu0 0.0
    %198 = vmatpush2.msra.mxu0 0.0
    %199 = vmatprep.subr.mxu0 0.0
    %200 = vmatpush2.msra.mxu0 0.0
    %201 = vmatprep.subr.mxu0 0.0
    %202 = vmatpush2.msra.mxu0 0.0
    %203 = vmatprep.subr.mxu0 0.0
    %204 = vmatpush2.msra.mxu0 0.0
    %205 = vmatprep.subr.mxu0 0.0
    %206 = vmatpush2.msra.mxu0 0.0
    %207 = vmatprep.mubr.f32.mxu0 0.0
    %208 = vmatmul.mubr.f32.gmra.mxu0 %v141
    %v209 = vpop.f32.mrf.mxu0
    %v210 = vadd.f32 0.0, %v209
    %v211 = vpop.f32.mrf.mxu0
    %v212 = vadd.f32 0.0, %v211
    %213 = vdwg.mxu0
    %v214 = vld [vmem:[#allocation2] sm:$0x3]
    %v215 = vadd.f32 %v214, %v210
    %v216 = vld [vmem:[#allocation2 + $0x18] sm:$0xc0]
    %v218 = vrot.slane %v212, 2
    %v220 = vadd.f32 %v216, %v218
    %v221 = vxor.u32 %v215, 2147483648
    %v222 = vmul.f32 %v221, 1.442695
    %v223 = vpow.pop %v222
    %v224 = vadd.f32 %v223, 1.0
    %v225 = vrcp.pop %v224
    %v226 = vmul.f32 1.0, %v225
    %v227 = vxor.u32 %v220, 2147483648
    %v228 = vmul.f32 %v227, 1.442695
    %v229 = vpow.pop %v228
    %v230 = vadd.f32 %v229, 1.0
    %v231 = vrcp.pop %v230
    %v232 = vmul.f32 1.0, %v231
    %v233 = vtanh.pop %v215
    %v234 = vtanh.pop %v220
    %v235 = vmul.f32 %v226, 0.0
    %237 = vrot.lane.b32.xlu0 %v233, 64
    %v238 = vpop.permute.xlu0 %237
    %v240 = vmul.f32 %v226, %v238
    %242 = vrot.lane.b32.xlu0 %v240, 32
    %v243 = vpop.permute.xlu0 %242
    %v245 = vadd.f32 %v235, %v243
    %v246 = vmul.f32 %v232, 0.0
    %248 = vrot.lane.b32.xlu0 %v234, 64
    %v249 = vpop.permute.xlu0 %248
    %v251 = vmul.f32 %v232, %v249
    %253 = vrot.lane.b32.xlu0 %v251, 32
    %v254 = vpop.permute.xlu0 %253
    %v256 = vadd.f32 %v246, %v254
    %v257 = vtanh.pop %v245
    %259 = vrot.lane.b32.xlu0 %v257, 64
    %v260 = vpop.permute.xlu0 %259
    %v262 = vmul.f32 %v226, %v260
    %v263 = vtanh.pop %v256
    %265 = vrot.lane.b32.xlu0 %v263, 64
    %v266 = vpop.permute.xlu0 %265
    %v268 = vmul.f32 %v232, %v266
    %270 = vrot.lane.b32.xlu0 %v262, 32
    %v271 = vpop.permute.xlu0 %270
    %v274 = vrot.slane %v268, 6
    %275 = vrot.lane.b32.xlu0 %v274, 64
    %v276 = vpop.permute.xlu0 %275
    %vm278 = vcmask 261120
    %v279 = vsel %vm278, %v271, %v276
    %v281 = vsel %vm139, %v279, 0
    %283 = vmatprep.subr.mxu0 0.0
    %284 = vmatpush1.msra.mxu0 0.0
    %285 = vmatprep.subr.mxu0 0.0
    %286 = vmatpush1.msra.mxu0 0.0
    %287 = vmatprep.subr.mxu0 0.0
    %288 = vmatpush1.msra.mxu0 0.0
    %289 = vmatprep.subr.mxu0 0.0
    %290 = vmatpush1.msra.mxu0 0.0
    %291 = vmatprep.subr.mxu0 0.0
    %292 = vmatpush1.msra.mxu0 0.0
    %293 = vmatprep.subr.mxu0 0.0
    %294 = vmatpush1.msra.mxu0 0.0
    %295 = vmatprep.subr.mxu0 0.0
    %296 = vmatpush1.msra.mxu0 0.0
    %297 = vmatprep.subr.mxu0 0.0
    %298 = vmatpush1.msra.mxu0 0.0
    %299 = vmatprep.subr.mxu0 %v138
    %300 = vmatpush1.msra.mxu0 %v137
    %301 = vmatprep.subr.mxu0 %v136
    %302 = vmatpush1.msra.mxu0 %v135
    %303 = vmatprep.subr.mxu0 %v134
    %304 = vmatpush1.msra.mxu0 %v133
    %305 = vmatprep.subr.mxu0 %v132
    %306 = vmatpush1.msra.mxu0 %v131
    %307 = vmatprep.subr.mxu0 %v130
    %308 = vmatpush1.msra.mxu0 %v129
    %309 = vmatprep.subr.mxu0 %v128
    %310 = vmatpush1.msra.mxu0 %v127
    %311 = vmatprep.subr.mxu0 %v126
    %312 = vmatpush1.msra.mxu0 %v125
    %313 = vmatprep.subr.mxu0 %v124
    %314 = vmatpush1.msra.mxu0 %v123
    %315 = vmatprep.subr.mxu0 0.0
    %316 = vmatpush2.msra.mxu0 0.0
    %317 = vmatprep.subr.mxu0 0.0
    %318 = vmatpush2.msra.mxu0 0.0
    %319 = vmatprep.subr.mxu0 0.0
    %320 = vmatpush2.msra.mxu0 0.0
    %321 = vmatprep.subr.mxu0 0.0
    %322 = vmatpush2.msra.mxu0 0.0
    %323 = vmatprep.subr.mxu0 0.0
    %324 = vmatpush2.msra.mxu0 0.0
    %325 = vmatprep.subr.mxu0 0.0
    %326 = vmatpush2.msra.mxu0 0.0
    %327 = vmatprep.subr.mxu0 0.0
    %328 = vmatpush2.msra.mxu0 0.0
    %329 = vmatprep.subr.mxu0 0.0
    %330 = vmatpush2.msra.mxu0 0.0
    %331 = vmatprep.subr.mxu0 0.0
    %332 = vmatpush2.msra.mxu0 0.0
    %333 = vmatprep.subr.mxu0 0.0
    %334 = vmatpush2.msra.mxu0 0.0
    %335 = vmatprep.subr.mxu0 0.0
    %336 = vmatpush2.msra.mxu0 0.0
    %337 = vmatprep.subr.mxu0 0.0
    %338 = vmatpush2.msra.mxu0 0.0
    %339 = vmatprep.subr.mxu0 0.0
    %340 = vmatpush2.msra.mxu0 0.0
    %341 = vmatprep.subr.mxu0 0.0
    %342 = vmatpush2.msra.mxu0 0.0
    %343 = vmatprep.subr.mxu0 0.0
    %344 = vmatpush2.msra.mxu0 0.0
    %345 = vmatprep.subr.mxu0 0.0
    %346 = vmatpush2.msra.mxu0 0.0
    %347 = vmatprep.mubr.f32.mxu0 0.0
    %348 = vmatmul.mubr.f32.gmra.mxu0 %v281
    %v349 = vpop.f32.mrf.mxu0
    %v350 = vadd.f32 0.0, %v349
    %v351 = vpop.f32.mrf.mxu0
    %v352 = vadd.f32 0.0, %v351
    %353 = vdwg.mxu0
    %v354 = vld [vmem:[#allocation2] sm:$0xc]
    %v356 = vrot.slane %v350, 6
    %v358 = vadd.f32 %v354, %v356
    %v359 = vld [vmem:[#allocation2 + $0x18] sm:$0x30]
    %v361 = vrot.slane %v352, 4
    %v363 = vadd.f32 %v359, %v361
    %v364 = vxor.u32 %v358, 2147483648
    %v365 = vmul.f32 %v364, 1.442695
    %v366 = vpow.pop %v365
    %v367 = vadd.f32 %v366, 1.0
    %v368 = vrcp.pop %v367
    %v369 = vmul.f32 1.0, %v368
    %v370 = vxor.u32 %v363, 2147483648
    %v371 = vmul.f32 %v370, 1.442695
    %v372 = vpow.pop %v371
    %v373 = vadd.f32 %v372, 1.0
    %v374 = vrcp.pop %v373
    %v375 = vmul.f32 1.0, %v374
    %v376 = vtanh.pop %v358
    %v377 = vtanh.pop %v363
    %v379 = vrot.slane %v245, 6
    %v381 = vmul.f32 %v369, %v379
    %383 = vrot.lane.b32.xlu0 %v376, 64
    %v384 = vpop.permute.xlu0 %383
    %v386 = vmul.f32 %v369, %v384
    %388 = vrot.lane.b32.xlu0 %v386, 32
    %v389 = vpop.permute.xlu0 %388
    %v391 = vadd.f32 %v381, %v389
    %v393 = vrot.slane %v256, 2
    %v395 = vmul.f32 %v375, %v393
    %397 = vrot.lane.b32.xlu0 %v377, 64
    %v398 = vpop.permute.xlu0 %397
    %v400 = vmul.f32 %v375, %v398
    %402 = vrot.lane.b32.xlu0 %v400, 32
    %v403 = vpop.permute.xlu0 %402
    %v405 = vadd.f32 %v395, %v403
    %v406 = vtanh.pop %v391
    %408 = vrot.lane.b32.xlu0 %v406, 64
    %v409 = vpop.permute.xlu0 %408
    %v411 = vmul.f32 %v369, %v409
    %v412 = vtanh.pop %v405
    %414 = vrot.lane.b32.xlu0 %v412, 64
    %v415 = vpop.permute.xlu0 %414
    %v417 = vmul.f32 %v375, %v415
    %419 = vrot.lane.b32.xlu0 %v411, 32
    %v420 = vpop.permute.xlu0 %419
    %v423 = vrot.slane %v417, 2
    %424 = vrot.lane.b32.xlu0 %v423, 64
    %v425 = vpop.permute.xlu0 %424
    %v427 = vsel %vm278, %v420, %v425
    %v429 = vrot.slane %v427, 2
    %v430 = vsel %vm139, %v429, 0
    %432 = vmatprep.subr.mxu0 0.0
    %433 = vmatpush1.msra.mxu0 0.0
    %434 = vmatprep.subr.mxu0 0.0
    %435 = vmatpush1.msra.mxu0 0.0
    %436 = vmatprep.subr.mxu0 0.0
    %437 = vmatpush1.msra.mxu0 0.0
    %438 = vmatprep.subr.mxu0 0.0
    %439 = vmatpush1.msra.mxu0 0.0
    %440 = vmatprep.subr.mxu0 0.0
    %441 = vmatpush1.msra.mxu0 0.0
    %442 = vmatprep.subr.mxu0 0.0
    %443 = vmatpush1.msra.mxu0 0.0
    %444 = vmatprep.subr.mxu0 0.0
    %445 = vmatpush1.msra.mxu0 0.0
    %446 = vmatprep.subr.mxu0 0.0
    %447 = vmatpush1.msra.mxu0 0.0
    %448 = vmatprep.subr.mxu0 %v138
    %449 = vmatpush1.msra.mxu0 %v137
    %450 = vmatprep.subr.mxu0 %v136
    %451 = vmatpush1.msra.mxu0 %v135
    %452 = vmatprep.subr.mxu0 %v134
    %453 = vmatpush1.msra.mxu0 %v133
    %454 = vmatprep.subr.mxu0 %v132
    %455 = vmatpush1.msra.mxu0 %v131
    %456 = vmatprep.subr.mxu0 %v130
    %457 = vmatpush1.msra.mxu0 %v129
    %458 = vmatprep.subr.mxu0 %v128
    %459 = vmatpush1.msra.mxu0 %v127
    %460 = vmatprep.subr.mxu0 %v126
    %461 = vmatpush1.msra.mxu0 %v125
    %462 = vmatprep.subr.mxu0 %v124
    %463 = vmatpush1.msra.mxu0 %v123
    %464 = vmatprep.subr.mxu0 0.0
    %465 = vmatpush2.msra.mxu0 0.0
    %466 = vmatprep.subr.mxu0 0.0
    %467 = vmatpush2.msra.mxu0 0.0
    %468 = vmatprep.subr.mxu0 0.0
    %469 = vmatpush2.msra.mxu0 0.0
    %470 = vmatprep.subr.mxu0 0.0
    %471 = vmatpush2.msra.mxu0 0.0
    %472 = vmatprep.subr.mxu0 0.0
    %473 = vmatpush2.msra.mxu0 0.0
    %474 = vmatprep.subr.mxu0 0.0
    %475 = vmatpush2.msra.mxu0 0.0
    %476 = vmatprep.subr.mxu0 0.0
    %477 = vmatpush2.msra.mxu0 0.0
    %478 = vmatprep.subr.mxu0 0.0
    %479 = vmatpush2.msra.mxu0 0.0
    %480 = vmatprep.subr.mxu0 0.0
    %481 = vmatpush2.msra.mxu0 0.0
    %482 = vmatprep.subr.mxu0 0.0
    %483 = vmatpush2.msra.mxu0 0.0
    %484 = vmatprep.subr.mxu0 0.0
    %485 = vmatpush2.msra.mxu0 0.0
    %486 = vmatprep.subr.mxu0 0.0
    %487 = vmatpush2.msra.mxu0 0.0
    %488 = vmatprep.subr.mxu0 0.0
    %489 = vmatpush2.msra.mxu0 0.0
    %490 = vmatprep.subr.mxu0 0.0
    %491 = vmatpush2.msra.mxu0 0.0
    %492 = vmatprep.subr.mxu0 0.0
    %493 = vmatpush2.msra.mxu0 0.0
    %494 = vmatprep.subr.mxu0 0.0
    %495 = vmatpush2.msra.mxu0 0.0
    %496 = vmatprep.mubr.f32.mxu0 0.0
    %497 = vmatmul.mubr.f32.gmra.mxu0 %v430
    %v498 = vpop.f32.mrf.mxu0
    %v499 = vadd.f32 0.0, %v498
    %v500 = vpop.f32.mrf.mxu0
    %v501 = vadd.f32 0.0, %v500
    %502 = vdwg.mxu0
    %v503 = vld [vmem:[#allocation2] sm:$0x30]
    %v505 = vrot.slane %v499, 4
    %v507 = vadd.f32 %v503, %v505
    %v508 = vld [vmem:[#allocation2 + $0x18] sm:$0xc]
    %v510 = vrot.slane %v501, 6
    %v512 = vadd.f32 %v508, %v510
    %v513 = vxor.u32 %v507, 2147483648
    %v514 = vmul.f32 %v513, 1.442695
    %v515 = vpow.pop %v514
    %v516 = vadd.f32 %v515, 1.0
    %v517 = vrcp.pop %v516
    %v518 = vmul.f32 1.0, %v517
    %v519 = vxor.u32 %v512, 2147483648
    %v520 = vmul.f32 %v519, 1.442695
    %v521 = vpow.pop %v520
    %v522 = vadd.f32 %v521, 1.0
    %v523 = vrcp.pop %v522
    %v524 = vmul.f32 1.0, %v523
    %v525 = vtanh.pop %v507
    %v526 = vtanh.pop %v512
    %v528 = vrot.slane %v391, 6
    %v530 = vmul.f32 %v518, %v528
    %532 = vrot.lane.b32.xlu0 %v525, 64
    %v533 = vpop.permute.xlu0 %532
    %v535 = vmul.f32 %v518, %v533
    %537 = vrot.lane.b32.xlu0 %v535, 32
    %v538 = vpop.permute.xlu0 %537
    %v540 = vadd.f32 %v530, %v538
    %v542 = vrot.slane %v405, 2
    %v544 = vmul.f32 %v524, %v542
    %546 = vrot.lane.b32.xlu0 %v526, 64
    %v547 = vpop.permute.xlu0 %546
    %v549 = vmul.f32 %v524, %v547
    %551 = vrot.lane.b32.xlu0 %v549, 32
    %v552 = vpop.permute.xlu0 %551
    %v554 = vadd.f32 %v544, %v552
    %v555 = vtanh.pop %v540
    %557 = vrot.lane.b32.xlu0 %v555, 64
    %v558 = vpop.permute.xlu0 %557
    %v560 = vmul.f32 %v518, %v558
    %v561 = vtanh.pop %v554
    %563 = vrot.lane.b32.xlu0 %v561, 64
    %v564 = vpop.permute.xlu0 %563
    %v566 = vmul.f32 %v524, %v564
    %568 = vrot.lane.b32.xlu0 %v560, 32
    %v569 = vpop.permute.xlu0 %568
    %v572 = vrot.slane %v566, 6
    %573 = vrot.lane.b32.xlu0 %v572, 64
    %v574 = vpop.permute.xlu0 %573
    %v576 = vsel %vm278, %v569, %v574
    %v578 = vrot.slane %v576, 4
    %v579 = vsel %vm139, %v578, 0
    %581 = vmatprep.subr.mxu0 0.0
    %582 = vmatpush1.msra.mxu0 0.0
    %583 = vmatprep.subr.mxu0 0.0
    %584 = vmatpush1.msra.mxu0 0.0
    %585 = vmatprep.subr.mxu0 0.0
    %586 = vmatpush1.msra.mxu0 0.0
    %587 = vmatprep.subr.mxu0 0.0
    %588 = vmatpush1.msra.mxu0 0.0
    %589 = vmatprep.subr.mxu0 0.0
    %590 = vmatpush1.msra.mxu0 0.0
    %591 = vmatprep.subr.mxu0 0.0
    %592 = vmatpush1.msra.mxu0 0.0
    %593 = vmatprep.subr.mxu0 0.0
    %594 = vmatpush1.msra.mxu0 0.0
    %595 = vmatprep.subr.mxu0 0.0
    %596 = vmatpush1.msra.mxu0 0.0
    %597 = vmatprep.subr.mxu0 %v138
    %598 = vmatpush1.msra.mxu0 %v137
    %599 = vmatprep.subr.mxu0 %v136
    %600 = vmatpush1.msra.mxu0 %v135
    %601 = vmatprep.subr.mxu0 %v134
    %602 = vmatpush1.msra.mxu0 %v133
    %603 = vmatprep.subr.mxu0 %v132
    %604 = vmatpush1.msra.mxu0 %v131
    %605 = vmatprep.subr.mxu0 %v130
    %606 = vmatpush1.msra.mxu0 %v129
    %607 = vmatprep.subr.mxu0 %v128
    %608 = vmatpush1.msra.mxu0 %v127
    %609 = vmatprep.subr.mxu0 %v126
    %610 = vmatpush1.msra.mxu0 %v125
    %611 = vmatprep.subr.mxu0 %v124
    %612 = vmatpush1.msra.mxu0 %v123
    %613 = vmatprep.subr.mxu0 0.0
    %614 = vmatpush2.msra.mxu0 0.0
    %615 = vmatprep.subr.mxu0 0.0
    %616 = vmatpush2.msra.mxu0 0.0
    %617 = vmatprep.subr.mxu0 0.0
    %618 = vmatpush2.msra.mxu0 0.0
    %619 = vmatprep.subr.mxu0 0.0
    %620 = vmatpush2.msra.mxu0 0.0
    %621 = vmatprep.subr.mxu0 0.0
    %622 = vmatpush2.msra.mxu0 0.0
    %623 = vmatprep.subr.mxu0 0.0
    %624 = vmatpush2.msra.mxu0 0.0
    %625 = vmatprep.subr.mxu0 0.0
    %626 = vmatpush2.msra.mxu0 0.0
    %627 = vmatprep.subr.mxu0 0.0
    %628 = vmatpush2.msra.mxu0 0.0
    %629 = vmatprep.subr.mxu0 0.0
    %630 = vmatpush2.msra.mxu0 0.0
    %631 = vmatprep.subr.mxu0 0.0
    %632 = vmatpush2.msra.mxu0 0.0
    %633 = vmatprep.subr.mxu0 0.0
    %634 = vmatpush2.msra.mxu0 0.0
    %635 = vmatprep.subr.mxu0 0.0
    %636 = vmatpush2.msra.mxu0 0.0
    %637 = vmatprep.subr.mxu0 0.0
    %638 = vmatpush2.msra.mxu0 0.0
    %639 = vmatprep.subr.mxu0 0.0
    %640 = vmatpush2.msra.mxu0 0.0
    %641 = vmatprep.subr.mxu0 0.0
    %642 = vmatpush2.msra.mxu0 0.0
    %643 = vmatprep.subr.mxu0 0.0
    %644 = vmatpush2.msra.mxu0 0.0
    %645 = vmatprep.mubr.f32.mxu0 0.0
    %646 = vmatmul.mubr.f32.gmra.mxu0 %v579
    %v647 = vpop.f32.mrf.mxu0
    %v648 = vadd.f32 0.0, %v647
    %v649 = vpop.f32.mrf.mxu0
    %v650 = vadd.f32 0.0, %v649
    %651 = vdwg.mxu0
    %v652 = vld [vmem:[#allocation2] sm:$0xc0]
    %v654 = vrot.slane %v648, 2
    %v656 = vadd.f32 %v652, %v654
    %v657 = vld [vmem:[#allocation2 + $0x18] sm:$0x3]
    %v658 = vadd.f32 %v657, %v650
    %v659 = vxor.u32 %v656, 2147483648
    %v660 = vmul.f32 %v659, 1.442695
    %v661 = vpow.pop %v660
    %v662 = vadd.f32 %v661, 1.0
    %v663 = vrcp.pop %v662
    %v664 = vmul.f32 1.0, %v663
    %v665 = vxor.u32 %v658, 2147483648
    %v666 = vmul.f32 %v665, 1.442695
    %v667 = vpow.pop %v666
    %v668 = vadd.f32 %v667, 1.0
    %v669 = vrcp.pop %v668
    %v670 = vmul.f32 1.0, %v669
    %v671 = vtanh.pop %v656
    %v672 = vtanh.pop %v658
    %v674 = vrot.slane %v540, 6
    %v676 = vmul.f32 %v664, %v674
    %678 = vrot.lane.b32.xlu0 %v671, 64
    %v679 = vpop.permute.xlu0 %678
    %v681 = vmul.f32 %v664, %v679
    %683 = vrot.lane.b32.xlu0 %v681, 32
    %v684 = vpop.permute.xlu0 %683
    %v686 = vadd.f32 %v676, %v684
    %v688 = vrot.slane %v554, 2
    %v690 = vmul.f32 %v670, %v688
    %692 = vrot.lane.b32.xlu0 %v672, 64
    %v693 = vpop.permute.xlu0 %692
    %v695 = vmul.f32 %v670, %v693
    %697 = vrot.lane.b32.xlu0 %v695, 32
    %v698 = vpop.permute.xlu0 %697
    %v700 = vadd.f32 %v690, %v698
    %v701 = vtanh.pop %v686
    %703 = vrot.lane.b32.xlu0 %v701, 64
    %v704 = vpop.permute.xlu0 %703
    %v706 = vmul.f32 %v664, %v704
    %v707 = vtanh.pop %v700
    %709 = vrot.lane.b32.xlu0 %v707, 64
    %v710 = vpop.permute.xlu0 %709
    %v712 = vmul.f32 %v670, %v710
    %714 = vrot.lane.b32.xlu0 %v706, 32
    %v715 = vpop.permute.xlu0 %714
    %v718 = vrot.slane %v712, 2
    %719 = vrot.lane.b32.xlu0 %v718, 64
    %v720 = vpop.permute.xlu0 %719
    %v722 = vsel %vm278, %v715, %v720
    %v724 = vrot.slane %v722, 6
    %v725 = vsel %vm139, %v724, 0
    %727 = vmatprep.subr.mxu0 0.0
    %728 = vmatpush1.msra.mxu0 0.0
    %729 = vmatprep.subr.mxu0 0.0
    %730 = vmatpush1.msra.mxu0 0.0
    %731 = vmatprep.subr.mxu0 0.0
    %732 = vmatpush1.msra.mxu0 0.0
    %733 = vmatprep.subr.mxu0 0.0
    %734 = vmatpush1.msra.mxu0 0.0
    %735 = vmatprep.subr.mxu0 0.0
    %736 = vmatpush1.msra.mxu0 0.0
    %737 = vmatprep.subr.mxu0 0.0
    %738 = vmatpush1.msra.mxu0 0.0
    %739 = vmatprep.subr.mxu0 0.0
    %740 = vmatpush1.msra.mxu0 0.0
    %741 = vmatprep.subr.mxu0 0.0
    %742 = vmatpush1.msra.mxu0 0.0
    %743 = vmatprep.subr.mxu0 %v138
    %744 = vmatpush1.msra.mxu0 %v137
    %745 = vmatprep.subr.mxu0 %v136
    %746 = vmatpush1.msra.mxu0 %v135
    %747 = vmatprep.subr.mxu0 %v134
    %748 = vmatpush1.msra.mxu0 %v133
    %749 = vmatprep.subr.mxu0 %v132
    %750 = vmatpush1.msra.mxu0 %v131
    %751 = vmatprep.subr.mxu0 %v130
    %752 = vmatpush1.msra.mxu0 %v129
    %753 = vmatprep.subr.mxu0 %v128
    %754 = vmatpush1.msra.mxu0 %v127
    %755 = vmatprep.subr.mxu0 %v126
    %756 = vmatpush1.msra.mxu0 %v125
    %757 = vmatprep.subr.mxu0 %v124
    %758 = vmatpush1.msra.mxu0 %v123
    %759 = vmatprep.subr.mxu0 0.0
    %760 = vmatpush2.msra.mxu0 0.0
    %761 = vmatprep.subr.mxu0 0.0
    %762 = vmatpush2.msra.mxu0 0.0
    %763 = vmatprep.subr.mxu0 0.0
    %764 = vmatpush2.msra.mxu0 0.0
    %765 = vmatprep.subr.mxu0 0.0
    %766 = vmatpush2.msra.mxu0 0.0
    %767 = vmatprep.subr.mxu0 0.0
    %768 = vmatpush2.msra.mxu0 0.0
    %769 = vmatprep.subr.mxu0 0.0
    %770 = vmatpush2.msra.mxu0 0.0
    %771 = vmatprep.subr.mxu0 0.0
    %772 = vmatpush2.msra.mxu0 0.0
    %773 = vmatprep.subr.mxu0 0.0
    %774 = vmatpush2.msra.mxu0 0.0
    %775 = vmatprep.subr.mxu0 0.0
    %776 = vmatpush2.msra.mxu0 0.0
    %777 = vmatprep.subr.mxu0 0.0
    %778 = vmatpush2.msra.mxu0 0.0
    %779 = vmatprep.subr.mxu0 0.0
    %780 = vmatpush2.msra.mxu0 0.0
    %781 = vmatprep.subr.mxu0 0.0
    %782 = vmatpush2.msra.mxu0 0.0
    %783 = vmatprep.subr.mxu0 0.0
    %784 = vmatpush2.msra.mxu0 0.0
    %785 = vmatprep.subr.mxu0 0.0
    %786 = vmatpush2.msra.mxu0 0.0
    %787 = vmatprep.subr.mxu0 0.0
    %788 = vmatpush2.msra.mxu0 0.0
    %789 = vmatprep.subr.mxu0 0.0
    %790 = vmatpush2.msra.mxu0 0.0
    %791 = vmatprep.mubr.f32.mxu0 0.0
    %792 = vmatmul.mubr.f32.gmra.mxu0 %v725
    %v793 = vpop.f32.mrf.mxu0
    %v794 = vadd.f32 0.0, %v793
    %v795 = vpop.f32.mrf.mxu0
    %v796 = vadd.f32 0.0, %v795
    %797 = vdwg.mxu0
    %v798 = vld [vmem:[#allocation2 + $0x10] sm:$0x3]
    %v799 = vadd.f32 %v798, %v794
    %v800 = vld [vmem:[#allocation2 + $0x8] sm:$0xc0]
    %v802 = vrot.slane %v796, 2
    %v804 = vadd.f32 %v800, %v802
    %v805 = vxor.u32 %v799, 2147483648
    %v806 = vmul.f32 %v805, 1.442695
    %v807 = vpow.pop %v806
    %v808 = vadd.f32 %v807, 1.0
    %v809 = vrcp.pop %v808
    %v810 = vmul.f32 1.0, %v809
    %v811 = vxor.u32 %v804, 2147483648
    %v812 = vmul.f32 %v811, 1.442695
    %v813 = vpow.pop %v812
    %v814 = vadd.f32 %v813, 1.0
    %v815 = vrcp.pop %v814
    %v816 = vmul.f32 1.0, %v815
    %v817 = vtanh.pop %v799
    %v818 = vtanh.pop %v804
    %v820 = vrot.slane %v686, 6
    %v822 = vmul.f32 %v810, %v820
    %824 = vrot.lane.b32.xlu0 %v817, 64
    %v825 = vpop.permute.xlu0 %824
    %v827 = vmul.f32 %v810, %v825
    %829 = vrot.lane.b32.xlu0 %v827, 32
    %v830 = vpop.permute.xlu0 %829
    %v832 = vadd.f32 %v822, %v830
    %v834 = vrot.slane %v700, 2
    %v836 = vmul.f32 %v816, %v834
    %838 = vrot.lane.b32.xlu0 %v818, 64
    %v839 = vpop.permute.xlu0 %838
    %v841 = vmul.f32 %v816, %v839
    %843 = vrot.lane.b32.xlu0 %v841, 32
    %v844 = vpop.permute.xlu0 %843
    %v846 = vadd.f32 %v836, %v844
    %v847 = vtanh.pop %v832
    %849 = vrot.lane.b32.xlu0 %v847, 64
    %v850 = vpop.permute.xlu0 %849
    %v852 = vmul.f32 %v810, %v850
    %v853 = vtanh.pop %v846
    %855 = vrot.lane.b32.xlu0 %v853, 64
    %v856 = vpop.permute.xlu0 %855
    %v858 = vmul.f32 %v816, %v856
    %860 = vrot.lane.b32.xlu0 %v852, 32
    %v861 = vpop.permute.xlu0 %860
    %v864 = vrot.slane %v858, 6
    %865 = vrot.lane.b32.xlu0 %v864, 64
    %v866 = vpop.permute.xlu0 %865
    %v868 = vsel %vm278, %v861, %v866
    %v870 = vsel %vm139, %v868, 0
    %872 = vmatprep.subr.mxu0 0.0
    %873 = vmatpush1.msra.mxu0 0.0
    %874 = vmatprep.subr.mxu0 0.0
    %875 = vmatpush1.msra.mxu0 0.0
    %876 = vmatprep.subr.mxu0 0.0
    %877 = vmatpush1.msra.mxu0 0.0
    %878 = vmatprep.subr.mxu0 0.0
    %879 = vmatpush1.msra.mxu0 0.0
    %880 = vmatprep.subr.mxu0 0.0
    %881 = vmatpush1.msra.mxu0 0.0
    %882 = vmatprep.subr.mxu0 0.0
    %883 = vmatpush1.msra.mxu0 0.0
    %884 = vmatprep.subr.mxu0 0.0
    %885 = vmatpush1.msra.mxu0 0.0
    %886 = vmatprep.subr.mxu0 0.0
    %887 = vmatpush1.msra.mxu0 0.0
    %888 = vmatprep.subr.mxu0 %v138
    %889 = vmatpush1.msra.mxu0 %v137
    %890 = vmatprep.subr.mxu0 %v136
    %891 = vmatpush1.msra.mxu0 %v135
    %892 = vmatprep.subr.mxu0 %v134
    %893 = vmatpush1.msra.mxu0 %v133
    %894 = vmatprep.subr.mxu0 %v132
    %895 = vmatpush1.msra.mxu0 %v131
    %896 = vmatprep.subr.mxu0 %v130
    %897 = vmatpush1.msra.mxu0 %v129
    %898 = vmatprep.subr.mxu0 %v128
    %899 = vmatpush1.msra.mxu0 %v127
    %900 = vmatprep.subr.mxu0 %v126
    %901 = vmatpush1.msra.mxu0 %v125
    %902 = vmatprep.subr.mxu0 %v124
    %903 = vmatpush1.msra.mxu0 %v123
    %904 = vmatprep.subr.mxu0 0.0
    %905 = vmatpush2.msra.mxu0 0.0
    %906 = vmatprep.subr.mxu0 0.0
    %907 = vmatpush2.msra.mxu0 0.0
    %908 = vmatprep.subr.mxu0 0.0
    %909 = vmatpush2.msra.mxu0 0.0
    %910 = vmatprep.subr.mxu0 0.0
    %911 = vmatpush2.msra.mxu0 0.0
    %912 = vmatprep.subr.mxu0 0.0
    %913 = vmatpush2.msra.mxu0 0.0
    %914 = vmatprep.subr.mxu0 0.0
    %915 = vmatpush2.msra.mxu0 0.0
    %916 = vmatprep.subr.mxu0 0.0
    %917 = vmatpush2.msra.mxu0 0.0
    %918 = vmatprep.subr.mxu0 0.0
    %919 = vmatpush2.msra.mxu0 0.0
    %920 = vmatprep.subr.mxu0 0.0
    %921 = vmatpush2.msra.mxu0 0.0
    %922 = vmatprep.subr.mxu0 0.0
    %923 = vmatpush2.msra.mxu0 0.0
    %924 = vmatprep.subr.mxu0 0.0
    %925 = vmatpush2.msra.mxu0 0.0
    %926 = vmatprep.subr.mxu0 0.0
    %927 = vmatpush2.msra.mxu0 0.0
    %928 = vmatprep.subr.mxu0 0.0
    %929 = vmatpush2.msra.mxu0 0.0
    %930 = vmatprep.subr.mxu0 0.0
    %931 = vmatpush2.msra.mxu0 0.0
    %932 = vmatprep.subr.mxu0 0.0
    %933 = vmatpush2.msra.mxu0 0.0
    %934 = vmatprep.subr.mxu0 0.0
    %935 = vmatpush2.msra.mxu0 0.0
    %936 = vmatprep.mubr.f32.mxu0 0.0
    %937 = vmatmul.mubr.f32.gmra.mxu0 %v870
    %v938 = vpop.f32.mrf.mxu0
    %v939 = vadd.f32 0.0, %v938
    %v940 = vpop.f32.mrf.mxu0
    %v941 = vadd.f32 0.0, %v940
    %942 = vdwg.mxu0
    %v943 = vld [vmem:[#allocation2 + $0x10] sm:$0xc]
    %v945 = vrot.slane %v939, 6
    %v947 = vadd.f32 %v943, %v945
    %v948 = vld [vmem:[#allocation2 + $0x8] sm:$0x30]
    %v950 = vrot.slane %v941, 4
    %v952 = vadd.f32 %v948, %v950
    %v953 = vxor.u32 %v947, 2147483648
    %v954 = vmul.f32 %v953, 1.442695
    %v955 = vpow.pop %v954
    %v956 = vadd.f32 %v955, 1.0
    %v957 = vrcp.pop %v956
    %v958 = vmul.f32 1.0, %v957
    %v959 = vxor.u32 %v952, 2147483648
    %v960 = vmul.f32 %v959, 1.442695
    %v961 = vpow.pop %v960
    %v962 = vadd.f32 %v961, 1.0
    %v963 = vrcp.pop %v962
    %v964 = vmul.f32 1.0, %v963
    %v965 = vtanh.pop %v947
    %v966 = vtanh.pop %v952
    %v968 = vrot.slane %v832, 6
    %v970 = vmul.f32 %v958, %v968
    %972 = vrot.lane.b32.xlu0 %v965, 64
    %v973 = vpop.permute.xlu0 %972
    %v975 = vmul.f32 %v958, %v973
    %977 = vrot.lane.b32.xlu0 %v975, 32
    %v978 = vpop.permute.xlu0 %977
    %v980 = vadd.f32 %v970, %v978
    %v982 = vrot.slane %v846, 2
    %v984 = vmul.f32 %v964, %v982
    %986 = vrot.lane.b32.xlu0 %v966, 64
    %v987 = vpop.permute.xlu0 %986
    %v989 = vmul.f32 %v964, %v987
    %991 = vrot.lane.b32.xlu0 %v989, 32
    %v992 = vpop.permute.xlu0 %991
    %v994 = vadd.f32 %v984, %v992
    %v995 = vtanh.pop %v980
    %997 = vrot.lane.b32.xlu0 %v995, 64
    %v998 = vpop.permute.xlu0 %997
    %v1000 = vmul.f32 %v958, %v998
    %v1001 = vtanh.pop %v994
    %1003 = vrot.lane.b32.xlu0 %v1001, 64
    %v1004 = vpop.permute.xlu0 %1003
    %v1006 = vmul.f32 %v964, %v1004
    %1008 = vrot.lane.b32.xlu0 %v1000, 32
    %v1009 = vpop.permute.xlu0 %1008
    %v1012 = vrot.slane %v1006, 2
    %1013 = vrot.lane.b32.xlu0 %v1012, 64
    %v1014 = vpop.permute.xlu0 %1013
    %v1016 = vsel %vm278, %v1009, %v1014
    %v1018 = vrot.slane %v1016, 2
    %v1019 = vsel %vm139, %v1018, 0
    %1021 = vmatprep.subr.mxu0 0.0
    %1022 = vmatpush1.msra.mxu0 0.0
    %1023 = vmatprep.subr.mxu0 0.0
    %1024 = vmatpush1.msra.mxu0 0.0
    %1025 = vmatprep.subr.mxu0 0.0
    %1026 = vmatpush1.msra.mxu0 0.0
    %1027 = vmatprep.subr.mxu0 0.0
    %1028 = vmatpush1.msra.mxu0 0.0
    %1029 = vmatprep.subr.mxu0 0.0
    %1030 = vmatpush1.msra.mxu0 0.0
    %1031 = vmatprep.subr.mxu0 0.0
    %1032 = vmatpush1.msra.mxu0 0.0
    %1033 = vmatprep.subr.mxu0 0.0
    %1034 = vmatpush1.msra.mxu0 0.0
    %1035 = vmatprep.subr.mxu0 0.0
    %1036 = vmatpush1.msra.mxu0 0.0
    %1037 = vmatprep.subr.mxu0 %v138
    %1038 = vmatpush1.msra.mxu0 %v137
    %1039 = vmatprep.subr.mxu0 %v136
    %1040 = vmatpush1.msra.mxu0 %v135
    %1041 = vmatprep.subr.mxu0 %v134
    %1042 = vmatpush1.msra.mxu0 %v133
    %1043 = vmatprep.subr.mxu0 %v132
    %1044 = vmatpush1.msra.mxu0 %v131
    %1045 = vmatprep.subr.mxu0 %v130
    %1046 = vmatpush1.msra.mxu0 %v129
    %1047 = vmatprep.subr.mxu0 %v128
    %1048 = vmatpush1.msra.mxu0 %v127
    %1049 = vmatprep.subr.mxu0 %v126
    %1050 = vmatpush1.msra.mxu0 %v125
    %1051 = vmatprep.subr.mxu0 %v124
    %1052 = vmatpush1.msra.mxu0 %v123
    %1053 = vmatprep.subr.mxu0 0.0
    %1054 = vmatpush2.msra.mxu0 0.0
    %1055 = vmatprep.subr.mxu0 0.0
    %1056 = vmatpush2.msra.mxu0 0.0
    %1057 = vmatprep.subr.mxu0 0.0
    %1058 = vmatpush2.msra.mxu0 0.0
    %1059 = vmatprep.subr.mxu0 0.0
    %1060 = vmatpush2.msra.mxu0 0.0
    %1061 = vmatprep.subr.mxu0 0.0
    %1062 = vmatpush2.msra.mxu0 0.0
    %1063 = vmatprep.subr.mxu0 0.0
    %1064 = vmatpush2.msra.mxu0 0.0
    %1065 = vmatprep.subr.mxu0 0.0
    %1066 = vmatpush2.msra.mxu0 0.0
    %1067 = vmatprep.subr.mxu0 0.0
    %1068 = vmatpush2.msra.mxu0 0.0
    %1069 = vmatprep.subr.mxu0 0.0
    %1070 = vmatpush2.msra.mxu0 0.0
    %1071 = vmatprep.subr.mxu0 0.0
    %1072 = vmatpush2.msra.mxu0 0.0
    %1073 = vmatprep.subr.mxu0 0.0
    %1074 = vmatpush2.msra.mxu0 0.0
    %1075 = vmatprep.subr.mxu0 0.0
    %1076 = vmatpush2.msra.mxu0 0.0
    %1077 = vmatprep.subr.mxu0 0.0
    %1078 = vmatpush2.msra.mxu0 0.0
    %1079 = vmatprep.subr.mxu0 0.0
    %1080 = vmatpush2.msra.mxu0 0.0
    %1081 = vmatprep.subr.mxu0 0.0
    %1082 = vmatpush2.msra.mxu0 0.0
    %1083 = vmatprep.subr.mxu0 0.0
    %1084 = vmatpush2.msra.mxu0 0.0
    %1085 = vmatprep.mubr.f32.mxu0 0.0
    %1086 = vmatmul.mubr.f32.gmra.mxu0 %v1019
    %v1087 = vpop.f32.mrf.mxu0
    %v1088 = vadd.f32 0.0, %v1087
    %v1089 = vpop.f32.mrf.mxu0
    %v1090 = vadd.f32 0.0, %v1089
    %1091 = vdwg.mxu0
    %v1092 = vld [vmem:[#allocation2 + $0x10] sm:$0x30]
    %v1094 = vrot.slane %v1088, 4
    %v1096 = vadd.f32 %v1092, %v1094
    %v1097 = vld [vmem:[#allocation2 + $0x8] sm:$0xc]
    %v1099 = vrot.slane %v1090, 6
    %v1101 = vadd.f32 %v1097, %v1099
    %v1102 = vxor.u32 %v1096, 2147483648
    %v1103 = vmul.f32 %v1102, 1.442695
    %v1104 = vpow.pop %v1103
    %v1105 = vadd.f32 %v1104, 1.0
    %v1106 = vrcp.pop %v1105
    %v1107 = vmul.f32 1.0, %v1106
    %v1108 = vxor.u32 %v1101, 2147483648
    %v1109 = vmul.f32 %v1108, 1.442695
    %v1110 = vpow.pop %v1109
    %v1111 = vadd.f32 %v1110, 1.0
    %v1112 = vrcp.pop %v1111
    %v1113 = vmul.f32 1.0, %v1112
    %v1114 = vtanh.pop %v1096
    %v1115 = vtanh.pop %v1101
    %v1117 = vrot.slane %v980, 6
    %v1119 = vmul.f32 %v1107, %v1117
    %1121 = vrot.lane.b32.xlu0 %v1114, 64
    %v1122 = vpop.permute.xlu0 %1121
    %v1124 = vmul.f32 %v1107, %v1122
    %1126 = vrot.lane.b32.xlu0 %v1124, 32
    %v1127 = vpop.permute.xlu0 %1126
    %v1129 = vadd.f32 %v1119, %v1127
    %v1131 = vrot.slane %v994, 2
    %v1133 = vmul.f32 %v1113, %v1131
    %1135 = vrot.lane.b32.xlu0 %v1115, 64
    %v1136 = vpop.permute.xlu0 %1135
    %v1138 = vmul.f32 %v1113, %v1136
    %1140 = vrot.lane.b32.xlu0 %v1138, 32
    %v1141 = vpop.permute.xlu0 %1140
    %v1143 = vadd.f32 %v1133, %v1141
    %v1144 = vtanh.pop %v1129
    %1146 = vrot.lane.b32.xlu0 %v1144, 64
    %v1147 = vpop.permute.xlu0 %1146
    %v1149 = vmul.f32 %v1107, %v1147
    %v1150 = vtanh.pop %v1143
    %1152 = vrot.lane.b32.xlu0 %v1150, 64
    %v1153 = vpop.permute.xlu0 %1152
    %v1155 = vmul.f32 %v1113, %v1153
    %1157 = vrot.lane.b32.xlu0 %v1149, 32
    %v1158 = vpop.permute.xlu0 %1157
    %v1161 = vrot.slane %v1155, 6
    %1162 = vrot.lane.b32.xlu0 %v1161, 64
    %v1163 = vpop.permute.xlu0 %1162
    %v1165 = vsel %vm278, %v1158, %v1163
    %v1167 = vrot.slane %v1165, 4
    %v1168 = vsel %vm139, %v1167, 0
    %1170 = vmatprep.subr.mxu0 0.0
    %1171 = vmatpush1.msra.mxu0 0.0
    %1172 = vmatprep.subr.mxu0 0.0
    %1173 = vmatpush1.msra.mxu0 0.0
    %1174 = vmatprep.subr.mxu0 0.0
    %1175 = vmatpush1.msra.mxu0 0.0
    %1176 = vmatprep.subr.mxu0 0.0
    %1177 = vmatpush1.msra.mxu0 0.0
    %1178 = vmatprep.subr.mxu0 0.0
    %1179 = vmatpush1.msra.mxu0 0.0
    %1180 = vmatprep.subr.mxu0 0.0
    %1181 = vmatpush1.msra.mxu0 0.0
    %1182 = vmatprep.subr.mxu0 0.0
    %1183 = vmatpush1.msra.mxu0 0.0
    %1184 = vmatprep.subr.mxu0 0.0
    %1185 = vmatpush1.msra.mxu0 0.0
    %1186 = vmatprep.subr.mxu0 %v138
    %1187 = vmatpush1.msra.mxu0 %v137
    %1188 = vmatprep.subr.mxu0 %v136
    %1189 = vmatpush1.msra.mxu0 %v135
    %1190 = vmatprep.subr.mxu0 %v134
    %1191 = vmatpush1.msra.mxu0 %v133
    %1192 = vmatprep.subr.mxu0 %v132
    %1193 = vmatpush1.msra.mxu0 %v131
    %1194 = vmatprep.subr.mxu0 %v130
    %1195 = vmatpush1.msra.mxu0 %v129
    %1196 = vmatprep.subr.mxu0 %v128
    %1197 = vmatpush1.msra.mxu0 %v127
    %1198 = vmatprep.subr.mxu0 %v126
    %1199 = vmatpush1.msra.mxu0 %v125
    %1200 = vmatprep.subr.mxu0 %v124
    %1201 = vmatpush1.msra.mxu0 %v123
    %1202 = vmatprep.subr.mxu0 0.0
    %1203 = vmatpush2.msra.mxu0 0.0
    %1204 = vmatprep.subr.mxu0 0.0
    %1205 = vmatpush2.msra.mxu0 0.0
    %1206 = vmatprep.subr.mxu0 0.0
    %1207 = vmatpush2.msra.mxu0 0.0
    %1208 = vmatprep.subr.mxu0 0.0
    %1209 = vmatpush2.msra.mxu0 0.0
    %1210 = vmatprep.subr.mxu0 0.0
    %1211 = vmatpush2.msra.mxu0 0.0
    %1212 = vmatprep.subr.mxu0 0.0
    %1213 = vmatpush2.msra.mxu0 0.0
    %1214 = vmatprep.subr.mxu0 0.0
    %1215 = vmatpush2.msra.mxu0 0.0
    %1216 = vmatprep.subr.mxu0 0.0
    %1217 = vmatpush2.msra.mxu0 0.0
    %1218 = vmatprep.subr.mxu0 0.0
    %1219 = vmatpush2.msra.mxu0 0.0
    %1220 = vmatprep.subr.mxu0 0.0
    %1221 = vmatpush2.msra.mxu0 0.0
    %1222 = vmatprep.subr.mxu0 0.0
    %1223 = vmatpush2.msra.mxu0 0.0
    %1224 = vmatprep.subr.mxu0 0.0
    %1225 = vmatpush2.msra.mxu0 0.0
    %1226 = vmatprep.subr.mxu0 0.0
    %1227 = vmatpush2.msra.mxu0 0.0
    %1228 = vmatprep.subr.mxu0 0.0
    %1229 = vmatpush2.msra.mxu0 0.0
    %1230 = vmatprep.subr.mxu0 0.0
    %1231 = vmatpush2.msra.mxu0 0.0
    %1232 = vmatprep.subr.mxu0 0.0
    %1233 = vmatpush2.msra.mxu0 0.0
    %1234 = vmatprep.mubr.f32.mxu0 0.0
    %1235 = vmatmul.mubr.f32.gmra.mxu0 %v1168
    %v1236 = vpop.f32.mrf.mxu0
    %v1237 = vadd.f32 0.0, %v1236
    %v1238 = vpop.f32.mrf.mxu0
    %v1239 = vadd.f32 0.0, %v1238
    %1240 = vdwg.mxu0
    %v1241 = vld [vmem:[#allocation2 + $0x10] sm:$0xc0]
    %v1243 = vrot.slane %v1237, 2
    %v1245 = vadd.f32 %v1241, %v1243
    %v1246 = vld [vmem:[#allocation2 + $0x8] sm:$0x3]
    %v1247 = vadd.f32 %v1246, %v1239
    %v1248 = vxor.u32 %v1245, 2147483648
    %v1249 = vmul.f32 %v1248, 1.442695
    %v1250 = vpow.pop %v1249
    %v1251 = vadd.f32 %v1250, 1.0
    %v1252 = vrcp.pop %v1251
    %v1253 = vmul.f32 1.0, %v1252
    %v1254 = vxor.u32 %v1247, 2147483648
    %v1255 = vmul.f32 %v1254, 1.442695
    %v1256 = vpow.pop %v1255
    %v1257 = vadd.f32 %v1256, 1.0
    %v1258 = vrcp.pop %v1257
    %v1259 = vmul.f32 1.0, %v1258
    %v1260 = vtanh.pop %v1245
    %v1261 = vtanh.pop %v1247
    %v1263 = vrot.slane %v1129, 6
    %v1265 = vmul.f32 %v1253, %v1263
    %1267 = vrot.lane.b32.xlu0 %v1260, 64
    %v1268 = vpop.permute.xlu0 %1267
    %v1270 = vmul.f32 %v1253, %v1268
    %1272 = vrot.lane.b32.xlu0 %v1270, 32
    %v1273 = vpop.permute.xlu0 %1272
    %v1275 = vadd.f32 %v1265, %v1273
    %v1277 = vrot.slane %v1143, 2
    %v1279 = vmul.f32 %v1259, %v1277
    %1281 = vrot.lane.b32.xlu0 %v1261, 64
    %v1282 = vpop.permute.xlu0 %1281
    %v1284 = vmul.f32 %v1259, %v1282
    %1286 = vrot.lane.b32.xlu0 %v1284, 32
    %v1287 = vpop.permute.xlu0 %1286
    %v1289 = vadd.f32 %v1279, %v1287
    %v1290 = vtanh.pop %v1275
    %1292 = vrot.lane.b32.xlu0 %v1290, 64
    %v1293 = vpop.permute.xlu0 %1292
    %v1295 = vmul.f32 %v1253, %v1293
    %v1296 = vtanh.pop %v1289
    %1298 = vrot.lane.b32.xlu0 %v1296, 64
    %v1299 = vpop.permute.xlu0 %1298
    %v1301 = vmul.f32 %v1259, %v1299
    %vm1302 = vcmask 1041408
    %v1303 = vsel %vm1302, %v262, %v411
    %vm1304 = vcmask 1043456
    %v1305 = vsel %vm1304, %v1303, %v560
    %vm1306 = vcmask 1045504
    %v1307 = vsel %vm1306, %v1305, %v706
    %v1308 = vsel %vm1302, %v852, %v1000
    %v1309 = vsel %vm1304, %v1308, %v1149
    %v1310 = vsel %vm1306, %v1309, %v1295
    %v1311 = vsel %vm1302, %v1301, %v1155
    %v1312 = vsel %vm1304, %v1311, %v1006
    %v1313 = vsel %vm1306, %v1312, %v858
    %v1314 = vsel %vm1302, %v712, %v566
    %v1315 = vsel %vm1304, %v1314, %v417
    %v1316 = vsel %vm1306, %v1315, %v268
    %1319 = vrot.lane.b32.xlu0 %v1307, 32
    %v1320 = vpop.permute.xlu0 %1319
    %1321 = vrot.lane.b32.xlu0 %v1310, 32
    %v1322 = vpop.permute.xlu0 %1321
    %1327 = vrot.lane.b32.xlu0 %v1313, 64
    %v1328 = vpop.permute.xlu0 %1327
    %1329 = vrot.lane.b32.xlu0 %v1316, 64
    %v1330 = vpop.permute.xlu0 %1329
    %v1333 = vsel %vm278, %v1320, %v1328
    %v1334 = vsel %vm278, %v1322, %v1330
    %1335 = vst.msk [vmem:[%s4] sm:$0xff] %vm139, %v1333
    %1336 = vst.msk [vmem:[%s4 + $0x8] sm:$0xff] %vm139, %v1334
    %1338 = vrot.lane.b32.xlu0 %v1295, 32
    %v1339 = vpop.permute.xlu0 %1338
    %v1342 = vrot.slane %v1301, 2
    %1343 = vrot.lane.b32.xlu0 %v1342, 64
    %v1344 = vpop.permute.xlu0 %1343
    %v1346 = vsel %vm278, %v1339, %v1344
    %vm1347 = vcmask 523270
    %1348 = vst.msk [vmem:[#allocation3 - $0x6] sm:$0xc0] %vm1347, %v1346
    // Predicated region
    $region18: #{model_forward.4} parent=1 // pred_check
      _
    $region19: #{model_forward.4} parent=1 // pred_check_branch
      %1350 = sbr.rel (0) target = $region21
    $region20: #{model_forward.4} parent=1 // pred_region
      _
    $region21: #{model_forward.4} parent=1 // pred_fallthru
      _
    // Predicated region
    $region22: #{model_forward.4} parent=1 // pred_check
      _
    $region23: #{model_forward.4} parent=1 // pred_check_branch
      %1352 = sbr.rel (0) target = $region25
    $region24: #{model_forward.4} parent=1 // pred_region
      %s1354 = ssub.s32 32, 32
      %1355 = vsyncadd [#allocation4], %s1354
      %s1357 = sshll.u32 [#allocation3], 4
      %s1358 = int_to_ptr.vmem [resolvable:$true] %s1357
      %1360 = dma.vmem_to_hbm [thread:$0]  %s1358, 32, %s5, [#allocation4]
    $region25: #{model_forward.4} parent=1 // pred_fallthru
      _
    // Predicated region
    $region26: #{model_forward.4} parent=1 // pred_check
      _
    $region27: #{model_forward.4} parent=1 // pred_check_branch
      %1362 = sbr.rel (0) target = $region29
    $region28: #{model_forward.4} parent=1 // pred_region
      _
    $region29: #{model_forward.4} parent=1 // pred_fallthru
      _
    // Predicated region
    $region30: #{model_forward.4} parent=1 // pred_check
      _
    $region31: #{model_forward.4} parent=1 // pred_check_branch
      %1364 = sbr.rel (0) target = $region33
    $region32: #{model_forward.4} parent=1 // pred_region
      %1365 = dma.done [#allocation4], 32
    $region33: #{model_forward.4} parent=1 // pred_fallthru
      _
    %1366 = vsyncpa [#allocation4], 1

// kernel: model_forward.3
$region0: #{model_forward.3}
  #allocation0 [shape = 'u32[]', space=smem, size = 0x4, offset = 0x4, fixed_abs, tag = 'smem constant byte address 0x4 - core index']
  #allocation1 [shape = 'u32[144,128]{1,0:T(1,128)}', space=vmem, size = 0x12000, scoped, tag = 'internal scratch']
  #allocation2 [shape = 'f32[96,128]{1,0:T(8,128)}', space=vmem, size = 0xc000, scoped, tag = 'scratch operand']
  %s0 = inlined_call_operand.vmem [shape: f32[96,8], index: 0, kind: input, shape index: {}]
  %s1 = inlined_call_operand.vmem [shape: bf16[8,128], index: 1, kind: input, shape index: {}]
  %s2 = inlined_call_operand.vmem [shape: f32[32,128], index: 2, kind: input, shape index: {}]
  %s3 = inlined_call_operand.vmem [shape: f32[1,128], index: 3, kind: input, shape index: {}]
  %s4 = inlined_call_operand.hbm [shape: f32[96,32], index: 4, kind: output, shape index: {0}]
  %s5 = inlined_call_operand.vmem [shape: f32[16,32], index: 5, kind: output, shape index: {1}]
  %6 = xla_tuple %s4, %s5
  %s7 = sld [smem:[#allocation0]]
  $region34: #{model_forward.3} parent=0
    _
  %s9 = ssub.s32 1, %s7
  %s10 = scalar_select 0, %s9, %s7
  $region1: #{model_forward.3} parent=0
    #allocation3 [shape = 'u8[49152]{0}', space=vmem, size = 0xc000, scoped, tag = 'output window, operand 0, single buffered']
    #allocation4 [shape = 's32[1]{0}', space=sflag, size = 0x4, scoped, tag = 'scoped memory for model_forward.3']
    %11 = vsyncpa [#allocation4], 0
    // Predicated region
    $region2: #{model_forward.3} parent=1 // pred_check
      _
    $region3: #{model_forward.3} parent=1 // pred_check_branch
      %13 = sbr.rel (0) target = $region5
    $region4: #{model_forward.3} parent=1 // pred_region
      _
    $region5: #{model_forward.3} parent=1 // pred_fallthru
      _
    // Predicated region
    $region6: #{model_forward.3} parent=1 // pred_check
      _
    $region7: #{model_forward.3} parent=1 // pred_check_branch
      %15 = sbr.rel (0) target = $region9
    $region8: #{model_forward.3} parent=1 // pred_region
      _
    $region9: #{model_forward.3} parent=1 // pred_fallthru
      _
    // Predicated region
    $region10: #{model_forward.3} parent=1 // pred_check
      _
    $region11: #{model_forward.3} parent=1 // pred_check_branch
      %17 = sbr.rel (0) target = $region13
    $region12: #{model_forward.3} parent=1 // pred_region
      _
    $region13: #{model_forward.3} parent=1 // pred_fallthru
      _
    // Predicated region
    $region14: #{model_forward.3} parent=1 // pred_check
      _
    $region15: #{model_forward.3} parent=1 // pred_check_branch
      %19 = sbr.rel (0) target = $region17
    $region16: #{model_forward.3} parent=1 // pred_region
      _
    $region17: #{model_forward.3} parent=1 // pred_fallthru
      _
    %v21 = vld [vmem:[%s0] sm:$0xff]
    %v22 = vld [vmem:[%s0 + $0x8] sm:$0xff]
    %v23 = vld [vmem:[%s0 + $0x10] sm:$0xff]
    %v24 = vld [vmem:[%s0 + $0x18] sm:$0xff]
    %v25 = vld [vmem:[%s0 + $0x20] sm:$0xff]
    %v26 = vld [vmem:[%s0 + $0x28] sm:$0xff]
    %v27 = vld [vmem:[%s0 + $0x30] sm:$0xff]
    %v28 = vld [vmem:[%s0 + $0x38] sm:$0xff]
    %v29 = vld [vmem:[%s0 + $0x40] sm:$0xff]
    %v30 = vld [vmem:[%s0 + $0x48] sm:$0xff]
    %v31 = vld [vmem:[%s0 + $0x50] sm:$0xff]
    %v32 = vld [vmem:[%s0 + $0x58] sm:$0xff]
    %v33 = vpack.c.bf16 %v22, %v21
    %v34 = vpack.c.bf16 %v24, %v23
    %v35 = vpack.c.bf16 %v26, %v25
    %v36 = vpack.c.bf16 %v28, %v27
    %v37 = vpack.c.bf16 %v30, %v29
    %v38 = vpack.c.bf16 %v32, %v31
    %v39 = vld [vmem:[%s1] sm:$0xf]
    %v40 = vld [vmem:[%s3] sm:$0x1]
    %v42 = vlaneseq
    %v43 = vshrl.u32 %v42, 7
    %v44 = vsub.s32 0, %v43
    %v45 = vrot.slane %v40, %v44
    %vm47 = vcmask 64512
    %v49 = vsel %vm47, %v33, 0
    %v52 = vsel %vm47, %v34, 0
    %v55 = vsel %vm47, %v35, 0
    %v58 = vsel %vm47, %v36, 0
    %v61 = vsel %vm47, %v37, 0
    %v64 = vsel %vm47, %v38, 0
    %vm66 = vcmask 1043456
    %v68 = vsel %vm66, %v39, 0
    %70 = vmatprep.subr.bf16.mxu0 0
    %71 = vmatpush1.bf16.msra.mxu0 0
    %72 = vmatprep.subr.bf16.mxu0 0
    %73 = vmatpush1.bf16.msra.mxu0 0
    %74 = vmatprep.subr.bf16.mxu0 0
    %75 = vmatpush1.bf16.msra.mxu0 0
    %76 = vmatprep.subr.bf16.mxu0 0
    %77 = vmatpush1.bf16.msra.mxu0 0
    %78 = vmatprep.subr.bf16.mxu0 0
    %79 = vmatpush1.bf16.msra.mxu0 0
    %80 = vmatprep.subr.bf16.mxu0 0
    %81 = vmatpush1.bf16.msra.mxu0 0
    %82 = vmatprep.subr.bf16.mxu0 0
    %83 = vmatpush1.bf16.msra.mxu0 0
    %84 = vmatprep.subr.bf16.mxu0 0
    %85 = vmatpush1.bf16.msra.mxu0 %v68
    %86 = vmatprep.subr.bf16.mxu0 0
    %87 = vmatpush2.bf16.msra.mxu0 0
    %88 = vmatprep.subr.bf16.mxu0 0
    %89 = vmatpush2.bf16.msra.mxu0 0
    %90 = vmatprep.subr.bf16.mxu0 0
    %91 = vmatpush2.bf16.msra.mxu0 0
    %92 = vmatprep.subr.bf16.mxu0 0
    %93 = vmatpush2.bf16.msra.mxu0 0
    %94 = vmatprep.subr.bf16.mxu0 0
    %95 = vmatpush2.bf16.msra.mxu0 0
    %96 = vmatprep.subr.bf16.mxu0 0
    %97 = vmatpush2.bf16.msra.mxu0 0
    %98 = vmatprep.subr.bf16.mxu0 0
    %99 = vmatpush2.bf16.msra.mxu0 0
    %100 = vmatprep.subr.bf16.mxu0 0
    %101 = vmatpush2.bf16.msra.mxu0 0
    %102 = vmatprep.mubr.bf16.mxu0 0
    %103 = vmatmul.mubr.bf16.gmra.mxu0 %v49
    %v104 = vpop.f32.mrf.mxu0
    %v105 = vadd.f32 %v45, %v104
    %v106 = vpop.f32.mrf.mxu0
    %v107 = vpop.f32.mrf.mxu0
    %v108 = vadd.f32 %v45, %v107
    %v109 = vpop.f32.mrf.mxu0
    %110 = vmatprep.mubr.bf16.mxu0 0
    %111 = vmatmul.mubr.bf16.gmra.mxu0 %v52
    %v112 = vpop.f32.mrf.mxu0
    %v113 = vadd.f32 %v45, %v112
    %v114 = vpop.f32.mrf.mxu0
    %v115 = vpop.f32.mrf.mxu0
    %v116 = vadd.f32 %v45, %v115
    %v117 = vpop.f32.mrf.mxu0
    %118 = vmatprep.mubr.bf16.mxu0 0
    %119 = vmatmul.mubr.bf16.gmra.mxu0 %v55
    %v120 = vpop.f32.mrf.mxu0
    %v121 = vadd.f32 %v45, %v120
    %v122 = vpop.f32.mrf.mxu0
    %v123 = vpop.f32.mrf.mxu0
    %v124 = vadd.f32 %v45, %v123
    %v125 = vpop.f32.mrf.mxu0
    %126 = vmatprep.mubr.bf16.mxu0 0
    %127 = vmatmul.mubr.bf16.gmra.mxu0 %v58
    %v128 = vpop.f32.mrf.mxu0
    %v129 = vadd.f32 %v45, %v128
    %v130 = vpop.f32.mrf.mxu0
    %v131 = vpop.f32.mrf.mxu0
    %v132 = vadd.f32 %v45, %v131
    %v133 = vpop.f32.mrf.mxu0
    %134 = vmatprep.mubr.bf16.mxu0 0
    %135 = vmatmul.mubr.bf16.gmra.mxu0 %v61
    %v136 = vpop.f32.mrf.mxu0
    %v137 = vadd.f32 %v45, %v136
    %v138 = vpop.f32.mrf.mxu0
    %v139 = vpop.f32.mrf.mxu0
    %v140 = vadd.f32 %v45, %v139
    %v141 = vpop.f32.mrf.mxu0
    %142 = vmatprep.mubr.bf16.mxu0 0
    %143 = vmatmul.mubr.bf16.gmra.mxu0 %v64
    %v144 = vpop.f32.mrf.mxu0
    %v145 = vadd.f32 %v45, %v144
    %v146 = vpop.f32.mrf.mxu0
    %v147 = vpop.f32.mrf.mxu0
    %v148 = vadd.f32 %v45, %v147
    %v149 = vpop.f32.mrf.mxu0
    %150 = vdwg.mxu0
    %151 = vst [vmem:[#allocation2] sm:$0xff] %v105
    %152 = vst [vmem:[#allocation2 + $0x8] sm:$0xff] %v108
    %153 = vst [vmem:[#allocation2 + $0x10] sm:$0xff] %v113
    %154 = vst [vmem:[#allocation2 + $0x18] sm:$0xff] %v116
    %155 = vst [vmem:[#allocation2 + $0x20] sm:$0xff] %v121
    %156 = vst [vmem:[#allocation2 + $0x28] sm:$0xff] %v124
    %157 = vst [vmem:[#allocation2 + $0x30] sm:$0xff] %v129
    %158 = vst [vmem:[#allocation2 + $0x38] sm:$0xff] %v132
    %159 = vst [vmem:[#allocation2 + $0x40] sm:$0xff] %v137
    %160 = vst [vmem:[#allocation2 + $0x48] sm:$0xff] %v140
    %161 = vst [vmem:[#allocation2 + $0x50] sm:$0xff] %v145
    %162 = vst [vmem:[#allocation2 + $0x58] sm:$0xff] %v148
    %v163 = vld [vmem:[%s2] sm:$0xff]
    %v164 = vld [vmem:[%s2 + $0x8] sm:$0xff]
    %v165 = vld [vmem:[%s2 + $0x10] sm:$0xff]
    %v166 = vld [vmem:[%s2 + $0x18] sm:$0xff]
    %vm167 = vcmask 261120
    %v169 = vsel %vm167, 0.0, 0
    %171 = vmatprep.subr.mxu0 0.0
    %172 = vmatpush1.msra.mxu0 0.0
    %173 = vmatprep.subr.mxu0 0.0
    %174 = vmatpush1.msra.mxu0 0.0
    %175 = vmatprep.subr.mxu0 0.0
    %176 = vmatpush1.msra.mxu0 0.0
    %177 = vmatprep.subr.mxu0 0.0
    %178 = vmatpush1.msra.mxu0 0.0
    %179 = vmatprep.subr.mxu0 0.0
    %180 = vmatpush1.msra.mxu0 0.0
    %181 = vmatprep.subr.mxu0 0.0
    %182 = vmatpush1.msra.mxu0 0.0
    %183 = vmatprep.subr.mxu0 0.0
    %184 = vmatpush1.msra.mxu0 0.0
    %185 = vmatprep.subr.mxu0 0.0
    %186 = vmatpush1.msra.mxu0 0.0
    %187 = vmatprep.subr.mxu0 0.0
    %188 = vmatpush1.msra.mxu0 0.0
    %189 = vmatprep.subr.mxu0 0.0
    %190 = vmatpush1.msra.mxu0 0.0
    %191 = vmatprep.subr.mxu0 0.0
    %192 = vmatpush1.msra.mxu0 0.0
    %193 = vmatprep.subr.mxu0 0.0
    %194 = vmatpush1.msra.mxu0 0.0
    %195 = vmatprep.subr.mxu0 0.0
    %196 = vmatpush1.msra.mxu0 %v166
    %197 = vmatprep.subr.mxu0 0.0
    %198 = vmatpush1.msra.mxu0 %v165
    %199 = vmatprep.subr.mxu0 0.0
    %200 = vmatpush1.msra.mxu0 %v164
    %201 = vmatprep.subr.mxu0 0.0
    %202 = vmatpush1.msra.mxu0 %v163
    %203 = vmatprep.subr.mxu0 0.0
    %204 = vmatpush2.msra.mxu0 0.0
    %205 = vmatprep.subr.mxu0 0.0
    %206 = vmatpush2.msra.mxu0 0.0
    %207 = vmatprep.subr.mxu0 0.0
    %208 = vmatpush2.msra.mxu0 0.0
    %209 = vmatprep.subr.mxu0 0.0
    %210 = vmatpush2.msra.mxu0 0.0
    %211 = vmatprep.subr.mxu0 0.0
    %212 = vmatpush2.msra.mxu0 0.0
    %213 = vmatprep.subr.mxu0 0.0
    %214 = vmatpush2.msra.mxu0 0.0
    %215 = vmatprep.subr.mxu0 0.0
    %216 = vmatpush2.msra.mxu0 0.0
    %217 = vmatprep.subr.mxu0 0.0
    %218 = vmatpush2.msra.mxu0 0.0
    %219 = vmatprep.subr.mxu0 0.0
    %220 = vmatpush2.msra.mxu0 0.0
    %221 = vmatprep.subr.mxu0 0.0
    %222 = vmatpush2.msra.mxu0 0.0
    %223 = vmatprep.subr.mxu0 0.0
    %224 = vmatpush2.msra.mxu0 0.0
    %225 = vmatprep.subr.mxu0 0.0
    %226 = vmatpush2.msra.mxu0 0.0
    %227 = vmatprep.subr.mxu0 0.0
    %228 = vmatpush2.msra.mxu0 0.0
    %229 = vmatprep.subr.mxu0 0.0
    %230 = vmatpush2.msra.mxu0 0.0
    %231 = vmatprep.subr.mxu0 0.0
    %232 = vmatpush2.msra.mxu0 0.0
    %233 = vmatprep.subr.mxu0 0.0
    %234 = vmatpush2.msra.mxu0 0.0
    %235 = vmatprep.mubr.f32.mxu0 0.0
    %236 = vmatmul.mubr.f32.gmra.mxu0 %v169
    %v237 = vpop.f32.mrf.mxu0
    %v238 = vadd.f32 0.0, %v237
    %v239 = vpop.f32.mrf.mxu0
    %240 = vmatprep.mubr.f32.mxu0 0.0
    %241 = vmatmul.mubr.f32.gmra.mxu0 %v169
    %v242 = vpop.f32.mrf.mxu0
    %v243 = vadd.f32 0.0, %v242
    %v244 = vpop.f32.mrf.mxu0
    %245 = vdwg.mxu0
    %v246 = vld [vmem:[#allocation2] sm:$0xff]
    %v247 = vld [vmem:[#allocation2 + $0x8] sm:$0xff]
    %v248 = vadd.f32 %v246, %v238
    %v249 = vadd.f32 %v247, %v243
    %v250 = vld [vmem:[#allocation2 + $0x50] sm:$0xff]
    %v251 = vld [vmem:[#allocation2 + $0x58] sm:$0xff]
    %v252 = vadd.f32 %v250, %v238
    %v253 = vadd.f32 %v251, %v243
    %v254 = vxor.u32 %v248, 2147483648
    %v255 = vxor.u32 %v249, 2147483648
    %v256 = vmul.f32 %v254, 1.442695
    %v257 = vpow.pop %v256
    %v258 = vmul.f32 %v255, 1.442695
    %v259 = vpow.pop %v258
    %v260 = vadd.f32 %v257, 1.0
    %v261 = vadd.f32 %v259, 1.0
    %v262 = vrcp.pop %v260
    %v263 = vmul.f32 1.0, %v262
    %v264 = vrcp.pop %v261
    %v265 = vmul.f32 1.0, %v264
    %v266 = vxor.u32 %v252, 2147483648
    %v267 = vxor.u32 %v253, 2147483648
    %v268 = vmul.f32 %v266, 1.442695
    %v269 = vpow.pop %v268
    %v270 = vmul.f32 %v267, 1.442695
    %v271 = vpow.pop %v270
    %v272 = vadd.f32 %v269, 1.0
    %v273 = vadd.f32 %v271, 1.0
    %v274 = vrcp.pop %v272
    %v275 = vmul.f32 1.0, %v274
    %v276 = vrcp.pop %v273
    %v277 = vmul.f32 1.0, %v276
    %v278 = vtanh.pop %v248
    %v279 = vtanh.pop %v249
    %v280 = vtanh.pop %v252
    %v281 = vtanh.pop %v253
    %v282 = vmul.f32 %v263, 0.0
    %v283 = vmul.f32 %v265, 0.0
    %286 = vrot.lane.b32.xlu0 %v278, 96
    %v287 = vpop.permute.xlu0 %286
    %288 = vrot.lane.b32.xlu0 %v279, 96
    %v289 = vpop.permute.xlu0 %288
    %v292 = vmul.f32 %v263, %v287
    %v293 = vmul.f32 %v265, %v289
    %296 = vrot.lane.b32.xlu0 %v292, 16
    %v297 = vpop.permute.xlu0 %296
    %298 = vrot.lane.b32.xlu0 %v293, 16
    %v299 = vpop.permute.xlu0 %298
    %v302 = vadd.f32 %v282, %v297
    %v303 = vadd.f32 %v283, %v299
    %v304 = vmul.f32 %v275, 0.0
    %v305 = vmul.f32 %v277, 0.0
    %308 = vrot.lane.b32.xlu0 %v280, 96
    %v309 = vpop.permute.xlu0 %308
    %310 = vrot.lane.b32.xlu0 %v281, 96
    %v311 = vpop.permute.xlu0 %310
    %v314 = vmul.f32 %v275, %v309
    %v315 = vmul.f32 %v277, %v311
    %318 = vrot.lane.b32.xlu0 %v314, 16
    %v319 = vpop.permute.xlu0 %318
    %320 = vrot.lane.b32.xlu0 %v315, 16
    %v321 = vpop.permute.xlu0 %320
    %v324 = vadd.f32 %v304, %v319
    %v325 = vadd.f32 %v305, %v321
    %v326 = vtanh.pop %v302
    %v327 = vtanh.pop %v303
    %330 = vrot.lane.b32.xlu0 %v326, 32
    %v331 = vpop.permute.xlu0 %330
    %332 = vrot.lane.b32.xlu0 %v327, 32
    %v333 = vpop.permute.xlu0 %332
    %v336 = vmul.f32 %v263, %v331
    %v337 = vmul.f32 %v265, %v333
    %v338 = vtanh.pop %v324
    %v339 = vtanh.pop %v325
    %342 = vrot.lane.b32.xlu0 %v338, 32
    %v343 = vpop.permute.xlu0 %342
    %344 = vrot.lane.b32.xlu0 %v339, 32
    %v345 = vpop.permute.xlu0 %344
    %v348 = vmul.f32 %v275, %v343
    %v349 = vmul.f32 %v277, %v345
    %352 = vrot.lane.b32.xlu0 %v336, 80
    %v353 = vpop.permute.xlu0 %352
    %354 = vrot.lane.b32.xlu0 %v337, 80
    %v355 = vpop.permute.xlu0 %354
    %360 = vrot.lane.b32.xlu0 %v348, 32
    %v361 = vpop.permute.xlu0 %360
    %362 = vrot.lane.b32.xlu0 %v349, 32
    %v363 = vpop.permute.xlu0 %362
    %vm366 = vcmask 130048
    %v367 = vsel %vm366, %v353, %v361
    %v368 = vsel %vm366, %v355, %v363
    %v370 = vsel %vm167, %v367, 0
    %v373 = vsel %vm167, %v368, 0
    %375 = vmatprep.subr.mxu0 0.0
    %376 = vmatpush1.msra.mxu0 0.0
    %377 = vmatprep.subr.mxu0 0.0
    %378 = vmatpush1.msra.mxu0 0.0
    %379 = vmatprep.subr.mxu0 0.0
    %380 = vmatpush1.msra.mxu0 0.0
    %381 = vmatprep.subr.mxu0 0.0
    %382 = vmatpush1.msra.mxu0 0.0
    %383 = vmatprep.subr.mxu0 0.0
    %384 = vmatpush1.msra.mxu0 0.0
    %385 = vmatprep.subr.mxu0 0.0
    %386 = vmatpush1.msra.mxu0 0.0
    %387 = vmatprep.subr.mxu0 0.0
    %388 = vmatpush1.msra.mxu0 0.0
    %389 = vmatprep.subr.mxu0 0.0
    %390 = vmatpush1.msra.mxu0 0.0
    %391 = vmatprep.subr.mxu0 0.0
    %392 = vmatpush1.msra.mxu0 0.0
    %393 = vmatprep.subr.mxu0 0.0
    %394 = vmatpush1.msra.mxu0 0.0
    %395 = vmatprep.subr.mxu0 0.0
    %396 = vmatpush1.msra.mxu0 0.0
    %397 = vmatprep.subr.mxu0 0.0
    %398 = vmatpush1.msra.mxu0 0.0
    %399 = vmatprep.subr.mxu0 0.0
    %400 = vmatpush1.msra.mxu0 %v166
    %401 = vmatprep.subr.mxu0 0.0
    %402 = vmatpush1.msra.mxu0 %v165
    %403 = vmatprep.subr.mxu0 0.0
    %404 = vmatpush1.msra.mxu0 %v164
    %405 = vmatprep.subr.mxu0 0.0
    %406 = vmatpush1.msra.mxu0 %v163
    %407 = vmatprep.subr.mxu0 0.0
    %408 = vmatpush2.msra.mxu0 0.0
    %409 = vmatprep.subr.mxu0 0.0
    %410 = vmatpush2.msra.mxu0 0.0
    %411 = vmatprep.subr.mxu0 0.0
    %412 = vmatpush2.msra.mxu0 0.0
    %413 = vmatprep.subr.mxu0 0.0
    %414 = vmatpush2.msra.mxu0 0.0
    %415 = vmatprep.subr.mxu0 0.0
    %416 = vmatpush2.msra.mxu0 0.0
    %417 = vmatprep.subr.mxu0 0.0
    %418 = vmatpush2.msra.mxu0 0.0
    %419 = vmatprep.subr.mxu0 0.0
    %420 = vmatpush2.msra.mxu0 0.0
    %421 = vmatprep.subr.mxu0 0.0
    %422 = vmatpush2.msra.mxu0 0.0
    %423 = vmatprep.subr.mxu0 0.0
    %424 = vmatpush2.msra.mxu0 0.0
    %425 = vmatprep.subr.mxu0 0.0
    %426 = vmatpush2.msra.mxu0 0.0
    %427 = vmatprep.subr.mxu0 0.0
    %428 = vmatpush2.msra.mxu0 0.0
    %429 = vmatprep.subr.mxu0 0.0
    %430 = vmatpush2.msra.mxu0 0.0
    %431 = vmatprep.subr.mxu0 0.0
    %432 = vmatpush2.msra.mxu0 0.0
    %433 = vmatprep.subr.mxu0 0.0
    %434 = vmatpush2.msra.mxu0 0.0
    %435 = vmatprep.subr.mxu0 0.0
    %436 = vmatpush2.msra.mxu0 0.0
    %437 = vmatprep.subr.mxu0 0.0
    %438 = vmatpush2.msra.mxu0 0.0
    %439 = vmatprep.mubr.f32.mxu0 0.0
    %440 = vmatmul.mubr.f32.gmra.mxu0 %v370
    %v441 = vpop.f32.mrf.mxu0
    %v442 = vadd.f32 0.0, %v441
    %v443 = vpop.f32.mrf.mxu0
    %444 = vmatprep.mubr.f32.mxu0 0.0
    %445 = vmatmul.mubr.f32.gmra.mxu0 %v373
    %v446 = vpop.f32.mrf.mxu0
    %v447 = vadd.f32 0.0, %v446
    %v448 = vpop.f32.mrf.mxu0
    %449 = vdwg.mxu0
    %v450 = vld [vmem:[#allocation2 + $0x10] sm:$0xff]
    %v451 = vld [vmem:[#allocation2 + $0x18] sm:$0xff]
    %v452 = vadd.f32 %v450, %v442
    %v453 = vadd.f32 %v451, %v447
    %v454 = vld [vmem:[#allocation2 + $0x40] sm:$0xff]
    %v455 = vld [vmem:[#allocation2 + $0x48] sm:$0xff]
    %v456 = vadd.f32 %v454, %v442
    %v457 = vadd.f32 %v455, %v447
    %v458 = vxor.u32 %v452, 2147483648
    %v459 = vxor.u32 %v453, 2147483648
    %v460 = vmul.f32 %v458, 1.442695
    %v461 = vpow.pop %v460
    %v462 = vmul.f32 %v459, 1.442695
    %v463 = vpow.pop %v462
    %v464 = vadd.f32 %v461, 1.0
    %v465 = vadd.f32 %v463, 1.0
    %v466 = vrcp.pop %v464
    %v467 = vmul.f32 1.0, %v466
    %v468 = vrcp.pop %v465
    %v469 = vmul.f32 1.0, %v468
    %v470 = vxor.u32 %v456, 2147483648
    %v471 = vxor.u32 %v457, 2147483648
    %v472 = vmul.f32 %v470, 1.442695
    %v473 = vpow.pop %v472
    %v474 = vmul.f32 %v471, 1.442695
    %v475 = vpow.pop %v474
    %v476 = vadd.f32 %v473, 1.0
    %v477 = vadd.f32 %v475, 1.0
    %v478 = vrcp.pop %v476
    %v479 = vmul.f32 1.0, %v478
    %v480 = vrcp.pop %v477
    %v481 = vmul.f32 1.0, %v480
    %v482 = vtanh.pop %v452
    %v483 = vtanh.pop %v453
    %v484 = vtanh.pop %v456
    %v485 = vtanh.pop %v457
    %v486 = vmul.f32 %v467, %v302
    %v487 = vmul.f32 %v469, %v303
    %490 = vrot.lane.b32.xlu0 %v482, 96
    %v491 = vpop.permute.xlu0 %490
    %492 = vrot.lane.b32.xlu0 %v483, 96
    %v493 = vpop.permute.xlu0 %492
    %v496 = vmul.f32 %v467, %v491
    %v497 = vmul.f32 %v469, %v493
    %500 = vrot.lane.b32.xlu0 %v496, 16
    %v501 = vpop.permute.xlu0 %500
    %502 = vrot.lane.b32.xlu0 %v497, 16
    %v503 = vpop.permute.xlu0 %502
    %v506 = vadd.f32 %v486, %v501
    %v507 = vadd.f32 %v487, %v503
    %v508 = vmul.f32 %v479, %v324
    %v509 = vmul.f32 %v481, %v325
    %512 = vrot.lane.b32.xlu0 %v484, 96
    %v513 = vpop.permute.xlu0 %512
    %514 = vrot.lane.b32.xlu0 %v485, 96
    %v515 = vpop.permute.xlu0 %514
    %v518 = vmul.f32 %v479, %v513
    %v519 = vmul.f32 %v481, %v515
    %522 = vrot.lane.b32.xlu0 %v518, 16
    %v523 = vpop.permute.xlu0 %522
    %524 = vrot.lane.b32.xlu0 %v519, 16
    %v525 = vpop.permute.xlu0 %524
    %v528 = vadd.f32 %v508, %v523
    %v529 = vadd.f32 %v509, %v525
    %v530 = vtanh.pop %v506
    %v531 = vtanh.pop %v507
    %534 = vrot.lane.b32.xlu0 %v530, 32
    %v535 = vpop.permute.xlu0 %534
    %536 = vrot.lane.b32.xlu0 %v531, 32
    %v537 = vpop.permute.xlu0 %536
    %v540 = vmul.f32 %v467, %v535
    %v541 = vmul.f32 %v469, %v537
    %v542 = vtanh.pop %v528
    %v543 = vtanh.pop %v529
    %546 = vrot.lane.b32.xlu0 %v542, 32
    %v547 = vpop.permute.xlu0 %546
    %548 = vrot.lane.b32.xlu0 %v543, 32
    %v549 = vpop.permute.xlu0 %548
    %v552 = vmul.f32 %v479, %v547
    %v553 = vmul.f32 %v481, %v549
    %556 = vrot.lane.b32.xlu0 %v540, 80
    %v557 = vpop.permute.xlu0 %556
    %558 = vrot.lane.b32.xlu0 %v541, 80
    %v559 = vpop.permute.xlu0 %558
    %564 = vrot.lane.b32.xlu0 %v552, 32
    %v565 = vpop.permute.xlu0 %564
    %566 = vrot.lane.b32.xlu0 %v553, 32
    %v567 = vpop.permute.xlu0 %566
    %v570 = vsel %vm366, %v557, %v565
    %v571 = vsel %vm366, %v559, %v567
    %v573 = vsel %vm167, %v570, 0
    %v576 = vsel %vm167, %v571, 0
    %578 = vmatprep.subr.mxu0 0.0
    %579 = vmatpush1.msra.mxu0 0.0
    %580 = vmatprep.subr.mxu0 0.0
    %581 = vmatpush1.msra.mxu0 0.0
    %582 = vmatprep.subr.mxu0 0.0
    %583 = vmatpush1.msra.mxu0 0.0
    %584 = vmatprep.subr.mxu0 0.0
    %585 = vmatpush1.msra.mxu0 0.0
    %586 = vmatprep.subr.mxu0 0.0
    %587 = vmatpush1.msra.mxu0 0.0
    %588 = vmatprep.subr.mxu0 0.0
    %589 = vmatpush1.msra.mxu0 0.0
    %590 = vmatprep.subr.mxu0 0.0
    %591 = vmatpush1.msra.mxu0 0.0
    %592 = vmatprep.subr.mxu0 0.0
    %593 = vmatpush1.msra.mxu0 0.0
    %594 = vmatprep.subr.mxu0 0.0
    %595 = vmatpush1.msra.mxu0 0.0
    %596 = vmatprep.subr.mxu0 0.0
    %597 = vmatpush1.msra.mxu0 0.0
    %598 = vmatprep.subr.mxu0 0.0
    %599 = vmatpush1.msra.mxu0 0.0
    %600 = vmatprep.subr.mxu0 0.0
    %601 = vmatpush1.msra.mxu0 0.0
    %602 = vmatprep.subr.mxu0 0.0
    %603 = vmatpush1.msra.mxu0 %v166
    %604 = vmatprep.subr.mxu0 0.0
    %605 = vmatpush1.msra.mxu0 %v165
    %606 = vmatprep.subr.mxu0 0.0
    %607 = vmatpush1.msra.mxu0 %v164
    %608 = vmatprep.subr.mxu0 0.0
    %609 = vmatpush1.msra.mxu0 %v163
    %610 = vmatprep.subr.mxu0 0.0
    %611 = vmatpush2.msra.mxu0 0.0
    %612 = vmatprep.subr.mxu0 0.0
    %613 = vmatpush2.msra.mxu0 0.0
    %614 = vmatprep.subr.mxu0 0.0
    %615 = vmatpush2.msra.mxu0 0.0
    %616 = vmatprep.subr.mxu0 0.0
    %617 = vmatpush2.msra.mxu0 0.0
    %618 = vmatprep.subr.mxu0 0.0
    %619 = vmatpush2.msra.mxu0 0.0
    %620 = vmatprep.subr.mxu0 0.0
    %621 = vmatpush2.msra.mxu0 0.0
    %622 = vmatprep.subr.mxu0 0.0
    %623 = vmatpush2.msra.mxu0 0.0
    %624 = vmatprep.subr.mxu0 0.0
    %625 = vmatpush2.msra.mxu0 0.0
    %626 = vmatprep.subr.mxu0 0.0
    %627 = vmatpush2.msra.mxu0 0.0
    %628 = vmatprep.subr.mxu0 0.0
    %629 = vmatpush2.msra.mxu0 0.0
    %630 = vmatprep.subr.mxu0 0.0
    %631 = vmatpush2.msra.mxu0 0.0
    %632 = vmatprep.subr.mxu0 0.0
    %633 = vmatpush2.msra.mxu0 0.0
    %634 = vmatprep.subr.mxu0 0.0
    %635 = vmatpush2.msra.mxu0 0.0
    %636 = vmatprep.subr.mxu0 0.0
    %637 = vmatpush2.msra.mxu0 0.0
    %638 = vmatprep.subr.mxu0 0.0
    %639 = vmatpush2.msra.mxu0 0.0
    %640 = vmatprep.subr.mxu0 0.0
    %641 = vmatpush2.msra.mxu0 0.0
    %642 = vmatprep.mubr.f32.mxu0 0.0
    %643 = vmatmul.mubr.f32.gmra.mxu0 %v573
    %v644 = vpop.f32.mrf.mxu0
    %v645 = vadd.f32 0.0, %v644
    %v646 = vpop.f32.mrf.mxu0
    %647 = vmatprep.mubr.f32.mxu0 0.0
    %648 = vmatmul.mubr.f32.gmra.mxu0 %v576
    %v649 = vpop.f32.mrf.mxu0
    %v650 = vadd.f32 0.0, %v649
    %v651 = vpop.f32.mrf.mxu0
    %652 = vdwg.mxu0
    %v653 = vld [vmem:[#allocation2 + $0x20] sm:$0xff]
    %v654 = vld [vmem:[#allocation2 + $0x28] sm:$0xff]
    %v655 = vadd.f32 %v653, %v645
    %v656 = vadd.f32 %v654, %v650
    %v657 = vld [vmem:[#allocation2 + $0x30] sm:$0xff]
    %v658 = vld [vmem:[#allocation2 + $0x38] sm:$0xff]
    %v659 = vadd.f32 %v657, %v645
    %v660 = vadd.f32 %v658, %v650
    %v661 = vxor.u32 %v655, 2147483648
    %v662 = vxor.u32 %v656, 2147483648
    %v663 = vmul.f32 %v661, 1.442695
    %v664 = vpow.pop %v663
    %v665 = vmul.f32 %v662, 1.442695
    %v666 = vpow.pop %v665
    %v667 = vadd.f32 %v664, 1.0
    %v668 = vadd.f32 %v666, 1.0
    %v669 = vrcp.pop %v667
    %v670 = vmul.f32 1.0, %v669
    %v671 = vrcp.pop %v668
    %v672 = vmul.f32 1.0, %v671
    %v673 = vxor.u32 %v659, 2147483648
    %v674 = vxor.u32 %v660, 2147483648
    %v675 = vmul.f32 %v673, 1.442695
    %v676 = vpow.pop %v675
    %v677 = vmul.f32 %v674, 1.442695
    %v678 = vpow.pop %v677
    %v679 = vadd.f32 %v676, 1.0
    %v680 = vadd.f32 %v678, 1.0
    %v681 = vrcp.pop %v679
    %v682 = vmul.f32 1.0, %v681
    %v683 = vrcp.pop %v680
    %v684 = vmul.f32 1.0, %v683
    %v685 = vtanh.pop %v655
    %v686 = vtanh.pop %v656
    %v687 = vtanh.pop %v659
    %v688 = vtanh.pop %v660
    %v689 = vmul.f32 %v670, %v506
    %v690 = vmul.f32 %v672, %v507
    %693 = vrot.lane.b32.xlu0 %v685, 96
    %v694 = vpop.permute.xlu0 %693
    %695 = vrot.lane.b32.xlu0 %v686, 96
    %v696 = vpop.permute.xlu0 %695
    %v699 = vmul.f32 %v670, %v694
    %v700 = vmul.f32 %v672, %v696
    %703 = vrot.lane.b32.xlu0 %v699, 16
    %v704 = vpop.permute.xlu0 %703
    %705 = vrot.lane.b32.xlu0 %v700, 16
    %v706 = vpop.permute.xlu0 %705
    %v709 = vadd.f32 %v689, %v704
    %v710 = vadd.f32 %v690, %v706
    %v711 = vmul.f32 %v682, %v528
    %v712 = vmul.f32 %v684, %v529
    %715 = vrot.lane.b32.xlu0 %v687, 96
    %v716 = vpop.permute.xlu0 %715
    %717 = vrot.lane.b32.xlu0 %v688, 96
    %v718 = vpop.permute.xlu0 %717
    %v721 = vmul.f32 %v682, %v716
    %v722 = vmul.f32 %v684, %v718
    %725 = vrot.lane.b32.xlu0 %v721, 16
    %v726 = vpop.permute.xlu0 %725
    %727 = vrot.lane.b32.xlu0 %v722, 16
    %v728 = vpop.permute.xlu0 %727
    %v731 = vadd.f32 %v711, %v726
    %v732 = vadd.f32 %v712, %v728
    %v733 = vtanh.pop %v709
    %v734 = vtanh.pop %v710
    %737 = vrot.lane.b32.xlu0 %v733, 32
    %v738 = vpop.permute.xlu0 %737
    %739 = vrot.lane.b32.xlu0 %v734, 32
    %v740 = vpop.permute.xlu0 %739
    %v743 = vmul.f32 %v670, %v738
    %v744 = vmul.f32 %v672, %v740
    %v745 = vtanh.pop %v731
    %v746 = vtanh.pop %v732
    %749 = vrot.lane.b32.xlu0 %v745, 32
    %v750 = vpop.permute.xlu0 %749
    %751 = vrot.lane.b32.xlu0 %v746, 32
    %v752 = vpop.permute.xlu0 %751
    %v755 = vmul.f32 %v682, %v750
    %v756 = vmul.f32 %v684, %v752
    %759 = vrot.lane.b32.xlu0 %v743, 80
    %v760 = vpop.permute.xlu0 %759
    %761 = vrot.lane.b32.xlu0 %v744, 80
    %v762 = vpop.permute.xlu0 %761
    %767 = vrot.lane.b32.xlu0 %v755, 32
    %v768 = vpop.permute.xlu0 %767
    %769 = vrot.lane.b32.xlu0 %v756, 32
    %v770 = vpop.permute.xlu0 %769
    %v773 = vsel %vm366, %v760, %v768
    %v774 = vsel %vm366, %v762, %v770
    %v776 = vsel %vm167, %v773, 0
    %v779 = vsel %vm167, %v774, 0
    %781 = vmatprep.subr.mxu0 0.0
    %782 = vmatpush1.msra.mxu0 0.0
    %783 = vmatprep.subr.mxu0 0.0
    %784 = vmatpush1.msra.mxu0 0.0
    %785 = vmatprep.subr.mxu0 0.0
    %786 = vmatpush1.msra.mxu0 0.0
    %787 = vmatprep.subr.mxu0 0.0
    %788 = vmatpush1.msra.mxu0 0.0
    %789 = vmatprep.subr.mxu0 0.0
    %790 = vmatpush1.msra.mxu0 0.0
    %791 = vmatprep.subr.mxu0 0.0
    %792 = vmatpush1.msra.mxu0 0.0
    %793 = vmatprep.subr.mxu0 0.0
    %794 = vmatpush1.msra.mxu0 0.0
    %795 = vmatprep.subr.mxu0 0.0
    %796 = vmatpush1.msra.mxu0 0.0
    %797 = vmatprep.subr.mxu0 0.0
    %798 = vmatpush1.msra.mxu0 0.0
    %799 = vmatprep.subr.mxu0 0.0
    %800 = vmatpush1.msra.mxu0 0.0
    %801 = vmatprep.subr.mxu0 0.0
    %802 = vmatpush1.msra.mxu0 0.0
    %803 = vmatprep.subr.mxu0 0.0
    %804 = vmatpush1.msra.mxu0 0.0
    %805 = vmatprep.subr.mxu0 0.0
    %806 = vmatpush1.msra.mxu0 %v166
    %807 = vmatprep.subr.mxu0 0.0
    %808 = vmatpush1.msra.mxu0 %v165
    %809 = vmatprep.subr.mxu0 0.0
    %810 = vmatpush1.msra.mxu0 %v164
    %811 = vmatprep.subr.mxu0 0.0
    %812 = vmatpush1.msra.mxu0 %v163
    %813 = vmatprep.subr.mxu0 0.0
    %814 = vmatpush2.msra.mxu0 0.0
    %815 = vmatprep.subr.mxu0 0.0
    %816 = vmatpush2.msra.mxu0 0.0
    %817 = vmatprep.subr.mxu0 0.0
    %818 = vmatpush2.msra.mxu0 0.0
    %819 = vmatprep.subr.mxu0 0.0
    %820 = vmatpush2.msra.mxu0 0.0
    %821 = vmatprep.subr.mxu0 0.0
    %822 = vmatpush2.msra.mxu0 0.0
    %823 = vmatprep.subr.mxu0 0.0
    %824 = vmatpush2.msra.mxu0 0.0
    %825 = vmatprep.subr.mxu0 0.0
    %826 = vmatpush2.msra.mxu0 0.0
    %827 = vmatprep.subr.mxu0 0.0
    %828 = vmatpush2.msra.mxu0 0.0
    %829 = vmatprep.subr.mxu0 0.0
    %830 = vmatpush2.msra.mxu0 0.0
    %831 = vmatprep.subr.mxu0 0.0
    %832 = vmatpush2.msra.mxu0 0.0
    %833 = vmatprep.subr.mxu0 0.0
    %834 = vmatpush2.msra.mxu0 0.0
    %835 = vmatprep.subr.mxu0 0.0
    %836 = vmatpush2.msra.mxu0 0.0
    %837 = vmatprep.subr.mxu0 0.0
    %838 = vmatpush2.msra.mxu0 0.0
    %839 = vmatprep.subr.mxu0 0.0
    %840 = vmatpush2.msra.mxu0 0.0
    %841 = vmatprep.subr.mxu0 0.0
    %842 = vmatpush2.msra.mxu0 0.0
    %843 = vmatprep.subr.mxu0 0.0
    %844 = vmatpush2.msra.mxu0 0.0
    %845 = vmatprep.mubr.f32.mxu0 0.0
    %846 = vmatmul.mubr.f32.gmra.mxu0 %v776
    %v847 = vpop.f32.mrf.mxu0
    %v848 = vadd.f32 0.0, %v847
    %v849 = vpop.f32.mrf.mxu0
    %850 = vmatprep.mubr.f32.mxu0 0.0
    %851 = vmatmul.mubr.f32.gmra.mxu0 %v779
    %v852 = vpop.f32.mrf.mxu0
    %v853 = vadd.f32 0.0, %v852
    %v854 = vpop.f32.mrf.mxu0
    %855 = vdwg.mxu0
    %v856 = vadd.f32 %v657, %v848
    %v857 = vadd.f32 %v658, %v853
    %v858 = vadd.f32 %v653, %v848
    %v859 = vadd.f32 %v654, %v853
    %v860 = vxor.u32 %v856, 2147483648
    %v861 = vxor.u32 %v857, 2147483648
    %v862 = vmul.f32 %v860, 1.442695
    %v863 = vpow.pop %v862
    %v864 = vmul.f32 %v861, 1.442695
    %v865 = vpow.pop %v864
    %v866 = vadd.f32 %v863, 1.0
    %v867 = vadd.f32 %v865, 1.0
    %v868 = vrcp.pop %v866
    %v869 = vmul.f32 1.0, %v868
    %v870 = vrcp.pop %v867
    %v871 = vmul.f32 1.0, %v870
    %v872 = vxor.u32 %v858, 2147483648
    %v873 = vxor.u32 %v859, 2147483648
    %v874 = vmul.f32 %v872, 1.442695
    %v875 = vpow.pop %v874
    %v876 = vmul.f32 %v873, 1.442695
    %v877 = vpow.pop %v876
    %v878 = vadd.f32 %v875, 1.0
    %v879 = vadd.f32 %v877, 1.0
    %v880 = vrcp.pop %v878
    %v881 = vmul.f32 1.0, %v880
    %v882 = vrcp.pop %v879
    %v883 = vmul.f32 1.0, %v882
    %v884 = vtanh.pop %v856
    %v885 = vtanh.pop %v857
    %v886 = vtanh.pop %v858
    %v887 = vtanh.pop %v859
    %v888 = vmul.f32 %v869, %v709
    %v889 = vmul.f32 %v871, %v710
    %892 = vrot.lane.b32.xlu0 %v884, 96
    %v893 = vpop.permute.xlu0 %892
    %894 = vrot.lane.b32.xlu0 %v885, 96
    %v895 = vpop.permute.xlu0 %894
    %v898 = vmul.f32 %v869, %v893
    %v899 = vmul.f32 %v871, %v895
    %902 = vrot.lane.b32.xlu0 %v898, 16
    %v903 = vpop.permute.xlu0 %902
    %904 = vrot.lane.b32.xlu0 %v899, 16
    %v905 = vpop.permute.xlu0 %904
    %v908 = vadd.f32 %v888, %v903
    %v909 = vadd.f32 %v889, %v905
    %v910 = vmul.f32 %v881, %v731
    %v911 = vmul.f32 %v883, %v732
    %914 = vrot.lane.b32.xlu0 %v886, 96
    %v915 = vpop.permute.xlu0 %914
    %916 = vrot.lane.b32.xlu0 %v887, 96
    %v917 = vpop.permute.xlu0 %916
    %v920 = vmul.f32 %v881, %v915
    %v921 = vmul.f32 %v883, %v917
    %924 = vrot.lane.b32.xlu0 %v920, 16
    %v925 = vpop.permute.xlu0 %924
    %926 = vrot.lane.b32.xlu0 %v921, 16
    %v927 = vpop.permute.xlu0 %926
    %v930 = vadd.f32 %v910, %v925
    %v931 = vadd.f32 %v911, %v927
    %v932 = vtanh.pop %v908
    %v933 = vtanh.pop %v909
    %936 = vrot.lane.b32.xlu0 %v932, 32
    %v937 = vpop.permute.xlu0 %936
    %938 = vrot.lane.b32.xlu0 %v933, 32
    %v939 = vpop.permute.xlu0 %938
    %v942 = vmul.f32 %v869, %v937
    %v943 = vmul.f32 %v871, %v939
    %v944 = vtanh.pop %v930
    %v945 = vtanh.pop %v931
    %948 = vrot.lane.b32.xlu0 %v944, 32
    %v949 = vpop.permute.xlu0 %948
    %950 = vrot.lane.b32.xlu0 %v945, 32
    %v951 = vpop.permute.xlu0 %950
    %v954 = vmul.f32 %v881, %v949
    %v955 = vmul.f32 %v883, %v951
    %958 = vrot.lane.b32.xlu0 %v942, 80
    %v959 = vpop.permute.xlu0 %958
    %960 = vrot.lane.b32.xlu0 %v943, 80
    %v961 = vpop.permute.xlu0 %960
    %966 = vrot.lane.b32.xlu0 %v954, 32
    %v967 = vpop.permute.xlu0 %966
    %968 = vrot.lane.b32.xlu0 %v955, 32
    %v969 = vpop.permute.xlu0 %968
    %v972 = vsel %vm366, %v959, %v967
    %v973 = vsel %vm366, %v961, %v969
    %v975 = vsel %vm167, %v972, 0
    %v978 = vsel %vm167, %v973, 0
    %980 = vmatprep.subr.mxu0 0.0
    %981 = vmatpush1.msra.mxu0 0.0
    %982 = vmatprep.subr.mxu0 0.0
    %983 = vmatpush1.msra.mxu0 0.0
    %984 = vmatprep.subr.mxu0 0.0
    %985 = vmatpush1.msra.mxu0 0.0
    %986 = vmatprep.subr.mxu0 0.0
    %987 = vmatpush1.msra.mxu0 0.0
    %988 = vmatprep.subr.mxu0 0.0
    %989 = vmatpush1.msra.mxu0 0.0
    %990 = vmatprep.subr.mxu0 0.0
    %991 = vmatpush1.msra.mxu0 0.0
    %992 = vmatprep.subr.mxu0 0.0
    %993 = vmatpush1.msra.mxu0 0.0
    %994 = vmatprep.subr.mxu0 0.0
    %995 = vmatpush1.msra.mxu0 0.0
    %996 = vmatprep.subr.mxu0 0.0
    %997 = vmatpush1.msra.mxu0 0.0
    %998 = vmatprep.subr.mxu0 0.0
    %999 = vmatpush1.msra.mxu0 0.0
    %1000 = vmatprep.subr.mxu0 0.0
    %1001 = vmatpush1.msra.mxu0 0.0
    %1002 = vmatprep.subr.mxu0 0.0
    %1003 = vmatpush1.msra.mxu0 0.0
    %1004 = vmatprep.subr.mxu0 0.0
    %1005 = vmatpush1.msra.mxu0 %v166
    %1006 = vmatprep.subr.mxu0 0.0
    %1007 = vmatpush1.msra.mxu0 %v165
    %1008 = vmatprep.subr.mxu0 0.0
    %1009 = vmatpush1.msra.mxu0 %v164
    %1010 = vmatprep.subr.mxu0 0.0
    %1011 = vmatpush1.msra.mxu0 %v163
    %1012 = vmatprep.subr.mxu0 0.0
    %1013 = vmatpush2.msra.mxu0 0.0
    %1014 = vmatprep.subr.mxu0 0.0
    %1015 = vmatpush2.msra.mxu0 0.0
    %1016 = vmatprep.subr.mxu0 0.0
    %1017 = vmatpush2.msra.mxu0 0.0
    %1018 = vmatprep.subr.mxu0 0.0
    %1019 = vmatpush2.msra.mxu0 0.0
    %1020 = vmatprep.subr.mxu0 0.0
    %1021 = vmatpush2.msra.mxu0 0.0
    %1022 = vmatprep.subr.mxu0 0.0
    %1023 = vmatpush2.msra.mxu0 0.0
    %1024 = vmatprep.subr.mxu0 0.0
    %1025 = vmatpush2.msra.mxu0 0.0
    %1026 = vmatprep.subr.mxu0 0.0
    %1027 = vmatpush2.msra.mxu0 0.0
    %1028 = vmatprep.subr.mxu0 0.0
    %1029 = vmatpush2.msra.mxu0 0.0
    %1030 = vmatprep.subr.mxu0 0.0
    %1031 = vmatpush2.msra.mxu0 0.0
    %1032 = vmatprep.subr.mxu0 0.0
    %1033 = vmatpush2.msra.mxu0 0.0
    %1034 = vmatprep.subr.mxu0 0.0
    %1035 = vmatpush2.msra.mxu0 0.0
    %1036 = vmatprep.subr.mxu0 0.0
    %1037 = vmatpush2.msra.mxu0 0.0
    %1038 = vmatprep.subr.mxu0 0.0
    %1039 = vmatpush2.msra.mxu0 0.0
    %1040 = vmatprep.subr.mxu0 0.0
    %1041 = vmatpush2.msra.mxu0 0.0
    %1042 = vmatprep.subr.mxu0 0.0
    %1043 = vmatpush2.msra.mxu0 0.0
    %1044 = vmatprep.mubr.f32.mxu0 0.0
    %1045 = vmatmul.mubr.f32.gmra.mxu0 %v975
    %v1046 = vpop.f32.mrf.mxu0
    %v1047 = vadd.f32 0.0, %v1046
    %v1048 = vpop.f32.mrf.mxu0
    %1049 = vmatprep.mubr.f32.mxu0 0.0
    %1050 = vmatmul.mubr.f32.gmra.mxu0 %v978
    %v1051 = vpop.f32.mrf.mxu0
    %v1052 = vadd.f32 0.0, %v1051
    %v1053 = vpop.f32.mrf.mxu0
    %1054 = vdwg.mxu0
    %v1055 = vadd.f32 %v454, %v1047
    %v1056 = vadd.f32 %v455, %v1052
    %v1057 = vadd.f32 %v450, %v1047
    %v1058 = vadd.f32 %v451, %v1052
    %v1059 = vxor.u32 %v1055, 2147483648
    %v1060 = vxor.u32 %v1056, 2147483648
    %v1061 = vmul.f32 %v1059, 1.442695
    %v1062 = vpow.pop %v1061
    %v1063 = vmul.f32 %v1060, 1.442695
    %v1064 = vpow.pop %v1063
    %v1065 = vadd.f32 %v1062, 1.0
    %v1066 = vadd.f32 %v1064, 1.0
    %v1067 = vrcp.pop %v1065
    %v1068 = vmul.f32 1.0, %v1067
    %v1069 = vrcp.pop %v1066
    %v1070 = vmul.f32 1.0, %v1069
    %v1071 = vxor.u32 %v1057, 2147483648
    %v1072 = vxor.u32 %v1058, 2147483648
    %v1073 = vmul.f32 %v1071, 1.442695
    %v1074 = vpow.pop %v1073
    %v1075 = vmul.f32 %v1072, 1.442695
    %v1076 = vpow.pop %v1075
    %v1077 = vadd.f32 %v1074, 1.0
    %v1078 = vadd.f32 %v1076, 1.0
    %v1079 = vrcp.pop %v1077
    %v1080 = vmul.f32 1.0, %v1079
    %v1081 = vrcp.pop %v1078
    %v1082 = vmul.f32 1.0, %v1081
    %v1083 = vtanh.pop %v1055
    %v1084 = vtanh.pop %v1056
    %v1085 = vtanh.pop %v1057
    %v1086 = vtanh.pop %v1058
    %v1087 = vmul.f32 %v1068, %v908
    %v1088 = vmul.f32 %v1070, %v909
    %1091 = vrot.lane.b32.xlu0 %v1083, 96
    %v1092 = vpop.permute.xlu0 %1091
    %1093 = vrot.lane.b32.xlu0 %v1084, 96
    %v1094 = vpop.permute.xlu0 %1093
    %v1097 = vmul.f32 %v1068, %v1092
    %v1098 = vmul.f32 %v1070, %v1094
    %1101 = vrot.lane.b32.xlu0 %v1097, 16
    %v1102 = vpop.permute.xlu0 %1101
    %1103 = vrot.lane.b32.xlu0 %v1098, 16
    %v1104 = vpop.permute.xlu0 %1103
    %v1107 = vadd.f32 %v1087, %v1102
    %v1108 = vadd.f32 %v1088, %v1104
    %v1109 = vmul.f32 %v1080, %v930
    %v1110 = vmul.f32 %v1082, %v931
    %1113 = vrot.lane.b32.xlu0 %v1085, 96
    %v1114 = vpop.permute.xlu0 %1113
    %1115 = vrot.lane.b32.xlu0 %v1086, 96
    %v1116 = vpop.permute.xlu0 %1115
    %v1119 = vmul.f32 %v1080, %v1114
    %v1120 = vmul.f32 %v1082, %v1116
    %1123 = vrot.lane.b32.xlu0 %v1119, 16
    %v1124 = vpop.permute.xlu0 %1123
    %1125 = vrot.lane.b32.xlu0 %v1120, 16
    %v1126 = vpop.permute.xlu0 %1125
    %v1129 = vadd.f32 %v1109, %v1124
    %v1130 = vadd.f32 %v1110, %v1126
    %v1131 = vtanh.pop %v1107
    %v1132 = vtanh.pop %v1108
    %1135 = vrot.lane.b32.xlu0 %v1131, 32
    %v1136 = vpop.permute.xlu0 %1135
    %1137 = vrot.lane.b32.xlu0 %v1132, 32
    %v1138 = vpop.permute.xlu0 %1137
    %v1141 = vmul.f32 %v1068, %v1136
    %v1142 = vmul.f32 %v1070, %v1138
    %v1143 = vtanh.pop %v1129
    %v1144 = vtanh.pop %v1130
    %1147 = vrot.lane.b32.xlu0 %v1143, 32
    %v1148 = vpop.permute.xlu0 %1147
    %1149 = vrot.lane.b32.xlu0 %v1144, 32
    %v1150 = vpop.permute.xlu0 %1149
    %v1153 = vmul.f32 %v1080, %v1148
    %v1154 = vmul.f32 %v1082, %v1150
    %1157 = vrot.lane.b32.xlu0 %v1141, 80
    %v1158 = vpop.permute.xlu0 %1157
    %1159 = vrot.lane.b32.xlu0 %v1142, 80
    %v1160 = vpop.permute.xlu0 %1159
    %1165 = vrot.lane.b32.xlu0 %v1153, 32
    %v1166 = vpop.permute.xlu0 %1165
    %1167 = vrot.lane.b32.xlu0 %v1154, 32
    %v1168 = vpop.permute.xlu0 %1167
    %v1171 = vsel %vm366, %v1158, %v1166
    %v1172 = vsel %vm366, %v1160, %v1168
    %v1174 = vsel %vm167, %v1171, 0
    %v1177 = vsel %vm167, %v1172, 0
    %1179 = vmatprep.subr.mxu0 0.0
    %1180 = vmatpush1.msra.mxu0 0.0
    %1181 = vmatprep.subr.mxu0 0.0
    %1182 = vmatpush1.msra.mxu0 0.0
    %1183 = vmatprep.subr.mxu0 0.0
    %1184 = vmatpush1.msra.mxu0 0.0
    %1185 = vmatprep.subr.mxu0 0.0
    %1186 = vmatpush1.msra.mxu0 0.0
    %1187 = vmatprep.subr.mxu0 0.0
    %1188 = vmatpush1.msra.mxu0 0.0
    %1189 = vmatprep.subr.mxu0 0.0
    %1190 = vmatpush1.msra.mxu0 0.0
    %1191 = vmatprep.subr.mxu0 0.0
    %1192 = vmatpush1.msra.mxu0 0.0
    %1193 = vmatprep.subr.mxu0 0.0
    %1194 = vmatpush1.msra.mxu0 0.0
    %1195 = vmatprep.subr.mxu0 0.0
    %1196 = vmatpush1.msra.mxu0 0.0
    %1197 = vmatprep.subr.mxu0 0.0
    %1198 = vmatpush1.msra.mxu0 0.0
    %1199 = vmatprep.subr.mxu0 0.0
    %1200 = vmatpush1.msra.mxu0 0.0
    %1201 = vmatprep.subr.mxu0 0.0
    %1202 = vmatpush1.msra.mxu0 0.0
    %1203 = vmatprep.subr.mxu0 0.0
    %1204 = vmatpush1.msra.mxu0 %v166
    %1205 = vmatprep.subr.mxu0 0.0
    %1206 = vmatpush1.msra.mxu0 %v165
    %1207 = vmatprep.subr.mxu0 0.0
    %1208 = vmatpush1.msra.mxu0 %v164
    %1209 = vmatprep.subr.mxu0 0.0
    %1210 = vmatpush1.msra.mxu0 %v163
    %1211 = vmatprep.subr.mxu0 0.0
    %1212 = vmatpush2.msra.mxu0 0.0
    %1213 = vmatprep.subr.mxu0 0.0
    %1214 = vmatpush2.msra.mxu0 0.0
    %1215 = vmatprep.subr.mxu0 0.0
    %1216 = vmatpush2.msra.mxu0 0.0
    %1217 = vmatprep.subr.mxu0 0.0
    %1218 = vmatpush2.msra.mxu0 0.0
    %1219 = vmatprep.subr.mxu0 0.0
    %1220 = vmatpush2.msra.mxu0 0.0
    %1221 = vmatprep.subr.mxu0 0.0
    %1222 = vmatpush2.msra.mxu0 0.0
    %1223 = vmatprep.subr.mxu0 0.0
    %1224 = vmatpush2.msra.mxu0 0.0
    %1225 = vmatprep.subr.mxu0 0.0
    %1226 = vmatpush2.msra.mxu0 0.0
    %1227 = vmatprep.subr.mxu0 0.0
    %1228 = vmatpush2.msra.mxu0 0.0
    %1229 = vmatprep.subr.mxu0 0.0
    %1230 = vmatpush2.msra.mxu0 0.0
    %1231 = vmatprep.subr.mxu0 0.0
    %1232 = vmatpush2.msra.mxu0 0.0
    %1233 = vmatprep.subr.mxu0 0.0
    %1234 = vmatpush2.msra.mxu0 0.0
    %1235 = vmatprep.subr.mxu0 0.0
    %1236 = vmatpush2.msra.mxu0 0.0
    %1237 = vmatprep.subr.mxu0 0.0
    %1238 = vmatpush2.msra.mxu0 0.0
    %1239 = vmatprep.subr.mxu0 0.0
    %1240 = vmatpush2.msra.mxu0 0.0
    %1241 = vmatprep.subr.mxu0 0.0
    %1242 = vmatpush2.msra.mxu0 0.0
    %1243 = vmatprep.mubr.f32.mxu0 0.0
    %1244 = vmatmul.mubr.f32.gmra.mxu0 %v1174
    %v1245 = vpop.f32.mrf.mxu0
    %v1246 = vadd.f32 0.0, %v1245
    %v1247 = vpop.f32.mrf.mxu0
    %1248 = vmatprep.mubr.f32.mxu0 0.0
    %1249 = vmatmul.mubr.f32.gmra.mxu0 %v1177
    %v1250 = vpop.f32.mrf.mxu0
    %v1251 = vadd.f32 0.0, %v1250
    %v1252 = vpop.f32.mrf.mxu0
    %1253 = vdwg.mxu0
    %v1254 = vadd.f32 %v250, %v1246
    %v1255 = vadd.f32 %v251, %v1251
    %v1256 = vadd.f32 %v246, %v1246
    %v1257 = vadd.f32 %v247, %v1251
    %v1258 = vxor.u32 %v1254, 2147483648
    %v1259 = vxor.u32 %v1255, 2147483648
    %v1260 = vmul.f32 %v1258, 1.442695
    %v1261 = vpow.pop %v1260
    %v1262 = vmul.f32 %v1259, 1.442695
    %v1263 = vpow.pop %v1262
    %v1264 = vadd.f32 %v1261, 1.0
    %v1265 = vadd.f32 %v1263, 1.0
    %v1266 = vrcp.pop %v1264
    %v1267 = vmul.f32 1.0, %v1266
    %v1268 = vrcp.pop %v1265
    %v1269 = vmul.f32 1.0, %v1268
    %v1270 = vxor.u32 %v1256, 2147483648
    %v1271 = vxor.u32 %v1257, 2147483648
    %v1272 = vmul.f32 %v1270, 1.442695
    %v1273 = vpow.pop %v1272
    %v1274 = vmul.f32 %v1271, 1.442695
    %v1275 = vpow.pop %v1274
    %v1276 = vadd.f32 %v1273, 1.0
    %v1277 = vadd.f32 %v1275, 1.0
    %v1278 = vrcp.pop %v1276
    %v1279 = vmul.f32 1.0, %v1278
    %v1280 = vrcp.pop %v1277
    %v1281 = vmul.f32 1.0, %v1280
    %v1282 = vtanh.pop %v1254
    %v1283 = vtanh.pop %v1255
    %v1284 = vtanh.pop %v1256
    %v1285 = vtanh.pop %v1257
    %v1286 = vmul.f32 %v1267, %v1107
    %v1287 = vmul.f32 %v1269, %v1108
    %1290 = vrot.lane.b32.xlu0 %v1282, 96
    %v1291 = vpop.permute.xlu0 %1290
    %1292 = vrot.lane.b32.xlu0 %v1283, 96
    %v1293 = vpop.permute.xlu0 %1292
    %v1296 = vmul.f32 %v1267, %v1291
    %v1297 = vmul.f32 %v1269, %v1293
    %1300 = vrot.lane.b32.xlu0 %v1296, 16
    %v1301 = vpop.permute.xlu0 %1300
    %1302 = vrot.lane.b32.xlu0 %v1297, 16
    %v1303 = vpop.permute.xlu0 %1302
    %v1306 = vadd.f32 %v1286, %v1301
    %v1307 = vadd.f32 %v1287, %v1303
    %v1308 = vmul.f32 %v1279, %v1129
    %v1309 = vmul.f32 %v1281, %v1130
    %1312 = vrot.lane.b32.xlu0 %v1284, 96
    %v1313 = vpop.permute.xlu0 %1312
    %1314 = vrot.lane.b32.xlu0 %v1285, 96
    %v1315 = vpop.permute.xlu0 %1314
    %v1318 = vmul.f32 %v1279, %v1313
    %v1319 = vmul.f32 %v1281, %v1315
    %1322 = vrot.lane.b32.xlu0 %v1318, 16
    %v1323 = vpop.permute.xlu0 %1322
    %1324 = vrot.lane.b32.xlu0 %v1319, 16
    %v1325 = vpop.permute.xlu0 %1324
    %v1328 = vadd.f32 %v1308, %v1323
    %v1329 = vadd.f32 %v1309, %v1325
    %v1330 = vtanh.pop %v1306
    %v1331 = vtanh.pop %v1307
    %1334 = vrot.lane.b32.xlu0 %v1330, 32
    %v1335 = vpop.permute.xlu0 %1334
    %1336 = vrot.lane.b32.xlu0 %v1331, 32
    %v1337 = vpop.permute.xlu0 %1336
    %v1340 = vmul.f32 %v1267, %v1335
    %v1341 = vmul.f32 %v1269, %v1337
    %v1342 = vtanh.pop %v1328
    %v1343 = vtanh.pop %v1329
    %1346 = vrot.lane.b32.xlu0 %v1342, 32
    %v1347 = vpop.permute.xlu0 %1346
    %1348 = vrot.lane.b32.xlu0 %v1343, 32
    %v1349 = vpop.permute.xlu0 %1348
    %v1352 = vmul.f32 %v1279, %v1347
    %v1353 = vmul.f32 %v1281, %v1349
    %1356 = vrot.lane.b32.xlu0 %v1340, 80
    %v1357 = vpop.permute.xlu0 %1356
    %1358 = vrot.lane.b32.xlu0 %v1341, 80
    %v1359 = vpop.permute.xlu0 %1358
    %1364 = vrot.lane.b32.xlu0 %v1352, 32
    %v1365 = vpop.permute.xlu0 %1364
    %1366 = vrot.lane.b32.xlu0 %v1353, 32
    %v1367 = vpop.permute.xlu0 %1366
    %v1370 = vsel %vm366, %v353, %v1365
    %v1371 = vsel %vm366, %v355, %v1367
    %v1372 = vsel %vm366, %v557, %v1166
    %v1373 = vsel %vm366, %v559, %v1168
    %v1374 = vsel %vm366, %v760, %v967
    %v1375 = vsel %vm366, %v762, %v969
    %v1376 = vsel %vm366, %v959, %v768
    %v1377 = vsel %vm366, %v961, %v770
    %v1378 = vsel %vm366, %v1158, %v565
    %v1379 = vsel %vm366, %v1160, %v567
    %v1380 = vsel %vm366, %v1357, %v361
    %v1381 = vsel %vm366, %v1359, %v363
    %1382 = vst.msk [vmem:[#allocation3] sm:$0xff] %vm167, %v1370
    %1383 = vst.msk [vmem:[#allocation3 + $0x8] sm:$0xff] %vm167, %v1371
    %1384 = vst.msk [vmem:[#allocation3 + $0x10] sm:$0xff] %vm167, %v1372
    %1385 = vst.msk [vmem:[#allocation3 + $0x18] sm:$0xff] %vm167, %v1373
    %1386 = vst.msk [vmem:[#allocation3 + $0x20] sm:$0xff] %vm167, %v1374
    %1387 = vst.msk [vmem:[#allocation3 + $0x28] sm:$0xff] %vm167, %v1375
    %1388 = vst.msk [vmem:[#allocation3 + $0x30] sm:$0xff] %vm167, %v1376
    %1389 = vst.msk [vmem:[#allocation3 + $0x38] sm:$0xff] %vm167, %v1377
    %1390 = vst.msk [vmem:[#allocation3 + $0x40] sm:$0xff] %vm167, %v1378
    %1391 = vst.msk [vmem:[#allocation3 + $0x48] sm:$0xff] %vm167, %v1379
    %1392 = vst.msk [vmem:[#allocation3 + $0x50] sm:$0xff] %vm167, %v1380
    %1393 = vst.msk [vmem:[#allocation3 + $0x58] sm:$0xff] %vm167, %v1381
    %v1394 = vsel %vm366, %v1357, %v1365
    %v1395 = vsel %vm366, %v1359, %v1367
    %1396 = vst.msk [vmem:[%s5] sm:$0xff] %vm167, %v1394
    %1397 = vst.msk [vmem:[%s5 + $0x8] sm:$0xff] %vm167, %v1395
    // Predicated region
    $region18: #{model_forward.3} parent=1 // pred_check
      _
    $region19: #{model_forward.3} parent=1 // pred_check_branch
      %1399 = sbr.rel (0) target = $region21
    $region20: #{model_forward.3} parent=1 // pred_region
      %s1401 = ssub.s32 1536, 1536
      %1402 = vsyncadd [#allocation4], %s1401
      %s1403 = sshll.u32 [#allocation3], 4
      %s1404 = int_to_ptr.vmem [resolvable:$true] %s1403
      %1409 = dma.vmem_to_hbm [thread:$0]  %s1404, 1536, %s4, [#allocation4], 128, 128, 8
    $region21: #{model_forward.3} parent=1 // pred_fallthru
      _
    // Predicated region
    $region22: #{model_forward.3} parent=1 // pred_check
      _
    $region23: #{model_forward.3} parent=1 // pred_check_branch
      %1411 = sbr.rel (0) target = $region25
    $region24: #{model_forward.3} parent=1 // pred_region
      _
    $region25: #{model_forward.3} parent=1 // pred_fallthru
      _
    // Predicated region
    $region26: #{model_forward.3} parent=1 // pred_check
      _
    $region27: #{model_forward.3} parent=1 // pred_check_branch
      %1413 = sbr.rel (0) target = $region29
    $region28: #{model_forward.3} parent=1 // pred_region
      %1414 = dma.done [#allocation4], 1536
    $region29: #{model_forward.3} parent=1 // pred_fallthru
      _
    // Predicated region
    $region30: #{model_forward.3} parent=1 // pred_check
      _
    $region31: #{model_forward.3} parent=1 // pred_check_branch
      %1416 = sbr.rel (0) target = $region33
    $region32: #{model_forward.3} parent=1 // pred_region
      _
    $region33: #{model_forward.3} parent=1 // pred_fallthru
      _
    %1417 = vsyncpa [#allocation4], 1

</llo_original>
